<compile_context>
chip_gen: v7x
topology: tpu7x:2x2x1
jax: 0.10.0
libtpu: 0.0.40
codegen_flags: <defaults>
</compile_context>

<pallas_src>
import functools

import jax
import jax.numpy as jnp
from jax.experimental import pallas as pl
from jax.experimental.pallas import tpu as pltpu

_VMEM_LIMIT = 32 * 1024 * 1024   # safe on v5e/v6e/v7x
_A = jnp.bfloat16                # activation dtype between kernels

NUM_HEADS = 4
MASK_RATIO = 0.75


def _round_up(v, m):
    return ((v + m - 1) // m) * m


# ----------------------- fused (LN) + matmul + epilogue ----------------------

def _fused_linear_kernel(*refs, act, has_ln, has_res, d_true, eps):
    it = iter(refs)
    x_ref = next(it)
    w_ref = next(it)
    b_ref = next(it)
    g_ref = next(it) if has_ln else None
    bb_ref = next(it) if has_ln else None
    r_ref = next(it) if has_res else None
    o_ref = next(it)
    acc_ref = next(it)

    @pl.when(pl.program_id(2) == 0)
    def _():
        acc_ref[...] = jnp.zeros_like(acc_ref)

    x = x_ref[...]
    if has_ln:
        # LayerNorm over the true feature dim (padded columns are zero so the
        # sums are exact); statistics in f32 on the VPU.
        xf = x.astype(jnp.float32)
        inv_d = 1.0 / d_true
        mean = jnp.sum(xf, axis=-1, keepdims=True) * inv_d
        ex2 = jnp.sum(xf * xf, axis=-1, keepdims=True) * inv_d
        var = ex2 - mean * mean
        xn = (xf - mean) * jax.lax.rsqrt(var + eps)
        x = (xn * g_ref[...] + bb_ref[...]).astype(jnp.bfloat16)
    else:
        x = x.astype(jnp.bfloat16)

    # bf16 MXU operands, f32 accumulation.
    acc_ref[...] += jnp.dot(x, w_ref[...].astype(jnp.bfloat16),
                            preferred_element_type=jnp.float32)

    @pl.when(pl.program_id(2) == pl.num_programs(2) - 1)
    def _():
        y = acc_ref[...] + b_ref[...].astype(jnp.float32)
        if act == "gelu":
            # tanh-approx GELU (PyTorch default is erf; small divergence).
            c = 0.7978845608028654  # sqrt(2/pi)
            y = 0.5 * y * (1.0 + jnp.tanh(c * (y + 0.044715 * y * y * y)))
        if has_res:
            y = y + r_ref[...].astype(jnp.float32)
        o_ref[...] = y.astype(o_ref.dtype)


def fused_linear(x, w, b, *, gamma=None, beta=None, residual=None,
                 act=None, out_dtype=_A, eps=1e-6):
    """y = act(LN(x) @ w + b) [+ residual], tiled with an f32 accumulator."""
    M, K = x.shape
    N = w.shape[1]
    has_ln = gamma is not None
    has_res = residual is not None

    # Tile sizes: full extent for small dims, capped for large ones.
    tm = min(256, _round_up(M, 8))
    tn = min(256, _round_up(N, 128))
    # LN needs the whole feature row per tile; otherwise tile K for pipelining.
    tk = _round_up(K, 128) if has_ln else min(512, _round_up(K, 128))
    Mp, Np, Kp = _round_up(M, tm), _round_up(N, tn), _round_up(K, tk)

    xp = jnp.pad(x, ((0, Mp - M), (0, Kp - K))) if (Mp, Kp) != (M, K) else x
    wp = jnp.pad(w, ((0, Kp - K), (0, Np - N))) if (Kp, Np) != (K, N) else w
    wp = wp.astype(jnp.bfloat16)                       # MXU-native operand
    bp = jnp.pad(b.astype(jnp.float32), (0, Np - N)).reshape(1, Np)

    args = [xp, wp, bp]
    in_specs = [
        pl.BlockSpec((tm, tk), lambda i, j, k: (i, k)),
        pl.BlockSpec((tk, tn), lambda i, j, k: (k, j)),
        pl.BlockSpec((1, tn), lambda i, j, k: (0, j)),
    ]
    if has_ln:
        gp = jnp.pad(gamma.astype(jnp.float32), (0, Kp - K)).reshape(1, Kp)
        bbp = jnp.pad(beta.astype(jnp.float32), (0, Kp - K)).reshape(1, Kp)
        args += [gp, bbp]
        in_specs += [pl.BlockSpec((1, tk), lambda i, j, k: (0, k)),
                     pl.BlockSpec((1, tk), lambda i, j, k: (0, k))]
    if has_res:
        rp = residual
        if (Mp, Np) != (M, N):
            rp = jnp.pad(residual, ((0, Mp - M), (0, Np - N)))
        args.append(rp)
        in_specs.append(pl.BlockSpec((tm, tn), lambda i, j, k: (i, j)))

    out = pl.pallas_call(
        functools.partial(_fused_linear_kernel, act=act, has_ln=has_ln,
                          has_res=has_res, d_true=float(K), eps=eps),
        out_shape=jax.ShapeDtypeStruct((Mp, Np), out_dtype),
        grid=(Mp // tm, Np // tn, Kp // tk),
        in_specs=in_specs,
        out_specs=pl.BlockSpec((tm, tn), lambda i, j, k: (i, j)),
        scratch_shapes=[pltpu.VMEM((tm, tn), jnp.float32)],
        compiler_params=pltpu.CompilerParams(
            dimension_semantics=("parallel", "parallel", "arbitrary"),
            vmem_limit_bytes=_VMEM_LIMIT),
    )(*args)
    return out[:M, :N]


# --------------------------------- attention ---------------------------------

def _attention_kernel(qkv_ref, o_ref, *, num_heads, scale):
    S = qkv_ref.shape[1]
    D3 = qkv_ref.shape[2]
    D = D3 // 3
    dh = D // num_heads
    qkv = qkv_ref[0]                                   # [S, 3D] (bf16)
    heads = []
    for h in range(num_heads):
        q = qkv[:, h * dh:(h + 1) * dh]
        k = qkv[:, D + h * dh:D + (h + 1) * dh]
        v = qkv[:, 2 * D + h * dh:2 * D + (h + 1) * dh]
        # Contract last dims directly: no explicit k.T materialized.
        s = jax.lax.dot_general(q, k, (((1,), (1,)), ((), ())),
                                preferred_element_type=jnp.float32) * scale
        s = s - jnp.max(s, axis=-1, keepdims=True)
        p = jnp.exp(s)
        inv = pl.reciprocal(jnp.sum(p, axis=-1, keepdims=True), approx=True)
        p = p * inv
        heads.append(jnp.dot(p.astype(qkv.dtype), v,
                             preferred_element_type=jnp.float32))
    # heads-contiguous [S, D] output -> output projection needs no relayout
    o_ref[0] = jnp.concatenate(heads, axis=-1).astype(o_ref.dtype)


def attention(qkv, num_heads):
    """qkv: [B, S, 3*D] (heads contiguous inside each of q/k/v) -> [B, S, D]."""
    B, S, D3 = qkv.shape
    D = D3 // 3
    scale = 1.0 / ((D // num_heads) ** 0.5)
    return pl.pallas_call(
        functools.partial(_attention_kernel, num_heads=num_heads, scale=scale),
        out_shape=jax.ShapeDtypeStruct((B, S, D), qkv.dtype),
        grid=(B,),
        in_specs=[pl.BlockSpec((1, S, D3), lambda b: (b, 0, 0))],
        out_specs=pl.BlockSpec((1, S, D), lambda b: (b, 0, 0)),
        compiler_params=pltpu.CompilerParams(
            dimension_semantics=("parallel",),
            vmem_limit_bytes=_VMEM_LIMIT),
    )(qkv)


# ------------------------------ masked MSE loss ------------------------------

def _masked_mse_kernel(p_ref, t_ref, m_ref, num_ref, den_ref, *, inv_d):
    @pl.when(pl.program_id(0) == 0)
    def _():
        num_ref[...] = jnp.zeros_like(num_ref)
        den_ref[...] = jnp.zeros_like(den_ref)
    d = p_ref[...].astype(jnp.float32) - t_ref[...].astype(jnp.float32)
    per_tok = jnp.sum(d * d, axis=-1, keepdims=True) * inv_d     # [tr, 1]
    m = m_ref[...].astype(jnp.float32)                           # [tr, 1]
    num_ref[...] += jnp.sum(per_tok * m, axis=0, keepdims=True)
    den_ref[...] += jnp.sum(m, axis=0, keepdims=True)


def masked_mse(pred, target, mask):
    B, N, D = pred.shape
    R = B * N
    p2 = pred.reshape(R, D).astype(jnp.float32)
    t2 = target.reshape(R, D).astype(jnp.float32)
    m2 = mask.reshape(R, 1).astype(jnp.float32)
    tr = min(512, _round_up(R, 8))
    Rp = _round_up(R, tr)
    if Rp != R:
        p2 = jnp.pad(p2, ((0, Rp - R), (0, 0)))
        t2 = jnp.pad(t2, ((0, Rp - R), (0, 0)))
        m2 = jnp.pad(m2, ((0, Rp - R), (0, 0)))
    num, den = pl.pallas_call(
        functools.partial(_masked_mse_kernel, inv_d=1.0 / D),
        out_shape=(jax.ShapeDtypeStruct((1, 1), jnp.float32),
                   jax.ShapeDtypeStruct((1, 1), jnp.float32)),
        grid=(Rp // tr,),
        in_specs=[pl.BlockSpec((tr, D), lambda i: (i, 0)),
                  pl.BlockSpec((tr, D), lambda i: (i, 0)),
                  pl.BlockSpec((tr, 1), lambda i: (i, 0))],
        out_specs=(pl.BlockSpec((1, 1), lambda i: (0, 0)),
                   pl.BlockSpec((1, 1), lambda i: (0, 0))),
        compiler_params=pltpu.CompilerParams(
            dimension_semantics=("arbitrary",),
            vmem_limit_bytes=_VMEM_LIMIT),
    )(p2, t2, m2)
    return (num / jnp.maximum(den, 1e-6))[0, 0]


# ---------------------------- model (JAX glue) -------------------------------

def transformer_block(x, p, num_heads):
    B, S, D = x.shape
    x2 = x.reshape(B * S, D)

    # LN1 + QKV projection fused
    qkv = fused_linear(x2, p["qkv_w"], p["qkv_b"],
                       gamma=p["ln1_g"], beta=p["ln1_b"])
    att = attention(qkv.reshape(B, S, 3 * D), num_heads)          # [B, S, D]
    # output projection + residual fused
    x2 = fused_linear(att.reshape(B * S, D), p["proj_w"], p["proj_b"],
                      residual=x2)
    # LN2 + FC1 + GELU fused
    h = fused_linear(x2, p["fc1_w"], p["fc1_b"],
                     gamma=p["ln2_g"], beta=p["ln2_b"], act="gelu")
    # FC2 + residual fused
    x2 = fused_linear(h, p["fc2_w"], p["fc2_b"], residual=x2)
    return x2.reshape(B, S, D)


def random_masking(x, mask_ratio, key):
    """Per-sample random shuffle masking (MAE-style). Plain JAX glue."""
    B, N, D = x.shape
    len_keep = int(N * (1.0 - mask_ratio))
    noise = jax.random.uniform(key, (B, N))
    ids_shuffle = jnp.argsort(noise, axis=1)
    ids_restore = jnp.argsort(ids_shuffle, axis=1)
    ids_keep = ids_shuffle[:, :len_keep]
    x_masked = jnp.take_along_axis(x, ids_keep[:, :, None], axis=1)
    mask = jnp.ones((B, N), jnp.float32)
    mask = mask.at[:, :len_keep].set(0.0)
    mask = jnp.take_along_axis(mask, ids_restore, axis=1)
    return x_masked, mask, ids_restore


def mae_forward(params, x, mask_key):
    """x: [B, N, D_in] latent embeddings. Returns (loss, pred, mask)."""
    B, N, D_in = x.shape

    # ---- encoder ----
    h = fused_linear(x.reshape(B * N, D_in),
                     params["embed_w"], params["embed_b"])        # [B*N, D] bf16
    D = params["embed_w"].shape[1]
    h = (h.reshape(B, N, D) + params["pos_embed"][:, 1:, :]).astype(_A)

    h_masked, mask, ids_restore = random_masking(h, MASK_RATIO, mask_key)

    cls = (params["cls_token"] + params["pos_embed"][:, :1, :]).astype(_A)
    cls = jnp.broadcast_to(cls, (B, 1, D))
    h = jnp.concatenate([cls, h_masked], axis=1)                  # [B, 1+keep, D]

    h = transformer_block(h, params["enc_block"], NUM_HEADS)
    S = h.shape[1]

    # ---- decoder (encoder-norm fused into decoder embed) ----
    y = fused_linear(h.reshape(B * S, D),
                     params["dec_embed_w"], params["dec_embed_b"],
                     gamma=params["enc_norm_g"], beta=params["enc_norm_b"])
    Dd = params["dec_embed_w"].shape[1]
    y = y.reshape(B, S, Dd)

    n_mask = N + 1 - S
    mask_tokens = jnp.broadcast_to(params["mask_token"].astype(_A),
                                   (B, n_mask, Dd))
    y_ = jnp.concatenate([y[:, 1:, :], mask_tokens], axis=1)      # [B, N, Dd]
    y_ = jnp.take_along_axis(y_, ids_restore[:, :, None], axis=1)
    y = jnp.concatenate([y[:, :1, :], y_], axis=1)                # [B, N+1, Dd]
    y = (y + params["dec_pos_embed"]).astype(_A)

    y = transformer_block(y, params["dec_block"], NUM_HEADS)
    Sd = y.shape[1]

    # decoder-norm fused into the prediction head; predictions in f32
    pred = fused_linear(y.reshape(B * Sd, Dd),
                        params["dec_pred_w"], params["dec_pred_b"],
                        gamma=params["dec_norm_g"], beta=params["dec_norm_b"],
                        out_dtype=jnp.float32).reshape(B, Sd, D_in)
    pred = pred[:, 1:, :]                                         # drop cls

    # ---- masked-MSE reconstruction loss ----
    loss = masked_mse(pred, x, mask)
    return loss, pred, mask


# ----------------------------- parameter init --------------------------------

def _w(key, shape, scale=0.02):
    return scale * jax.random.normal(key, shape, dtype=jnp.float32)


def init_block(key, d, mlp_ratio=4):
    ks = jax.random.split(key, 4)
    return dict(
        ln1_g=jnp.ones((d,), jnp.float32), ln1_b=jnp.zeros((d,), jnp.float32),
        qkv_w=_w(ks[0], (d, 3 * d)), qkv_b=jnp.zeros((3 * d,), jnp.float32),
        proj_w=_w(ks[1], (d, d)), proj_b=jnp.zeros((d,), jnp.float32),
        ln2_g=jnp.ones((d,), jnp.float32), ln2_b=jnp.zeros((d,), jnp.float32),
        fc1_w=_w(ks[2], (d, mlp_ratio * d)),
        fc1_b=jnp.zeros((mlp_ratio * d,), jnp.float32),
        fc2_w=_w(ks[3], (mlp_ratio * d, d)),
        fc2_b=jnp.zeros((d,), jnp.float32),
    )


def init_params(key, d_in, d, d_dec, n_tokens):
    ks = jax.random.split(key, 10)
    return dict(
        embed_w=_w(ks[0], (d_in, d)), embed_b=jnp.zeros((d,), jnp.float32),
        cls_token=_w(ks[1], (1, 1, d)),
        pos_embed=_w(ks[2], (1, n_tokens + 1, d)),
        enc_block=init_block(ks[3], d),
        enc_norm_g=jnp.ones((d,), jnp.float32),
        enc_norm_b=jnp.zeros((d,), jnp.float32),
        dec_embed_w=_w(ks[4], (d, d_dec)),
        dec_embed_b=jnp.zeros((d_dec,), jnp.float32),
        mask_token=_w(ks[5], (1, 1, d_dec)),
        dec_pos_embed=_w(ks[6], (1, n_tokens + 1, d_dec)),
        dec_block=init_block(ks[7], d_dec),
        dec_norm_g=jnp.ones((d_dec,), jnp.float32),
        dec_norm_b=jnp.zeros((d_dec,), jnp.float32),
        dec_pred_w=_w(ks[8], (d_dec, d_in)),
        dec_pred_b=jnp.zeros((d_in,), jnp.float32),
    )


# ---------------------------------- main -------------------------------------

if __name__ == "__main__":
    B, N, D_IN = 2, 16, 32
    D_ENC, D_DEC = 32, 32

    key = jax.random.PRNGKey(0)
    k_x, k_params, k_mask = jax.random.split(key, 3)

    x = jax.random.normal(k_x, (B, N, D_IN), dtype=jnp.float32)
    params = init_params(k_params, D_IN, D_ENC, D_DEC, N)

    fwd = jax.jit(mae_forward)
    loss, pred, mask = fwd(params, x, k_mask)
    jax.block_until_ready((loss, pred, mask))

    assert pred.shape == (B, N, D_IN)
    assert mask.shape == (B, N)
    assert jnp.isfinite(loss)
    print("KERNEL_OK")
</pallas_src>

<mosaic_0001>
module attributes {stable_mosaic.version = 11 : i64} {
  func.func @_fused_linear_kernel(%arg0: i32, %arg1: i32, %arg2: i32, %arg3: memref<32x128xf32, #tpu.memory_space<vmem>>, %arg4: memref<128x128xbf16, #tpu.memory_space<vmem>>, %arg5: memref<1x128xf32, #tpu.memory_space<vmem>>, %arg6: memref<32x128xbf16, #tpu.memory_space<vmem>>, %arg7: memref<32x128xf32, #tpu.memory_space<vmem>>) attributes {dimension_semantics = [#tpu.dimension_semantics<parallel>, #tpu.dimension_semantics<parallel>, #tpu.dimension_semantics<arbitrary>], iteration_bounds = array<i64: 1, 1, 1>, scalar_prefetch = 0 : i64, scratch_operands = 1 : i64, tpu.core_type = #tpu.core_type<tc>, window_params = [{transform_indices = @transform_0, window_bounds = array<i64: 32, 128>}, {transform_indices = @transform_1, window_bounds = array<i64: 128, 128>}, {transform_indices = @transform_2, window_bounds = array<i64: 1, 128>}, {transform_indices = @transform_3, window_bounds = array<i64: 32, 128>}]} {
    %c0_i32 = arith.constant 0 : i32
    %0 = arith.cmpi eq, %arg2, %c0_i32 : i32
    %1 = arith.extui %0 : i1 to i32
    %c0_i32_0 = arith.constant 0 : i32
    %2 = arith.cmpi ne, %1, %c0_i32_0 : i32
    scf.if %2 {
      %cst_10 = arith.constant 0.000000e+00 : f32
      %13 = vector.broadcast %cst_10 : f32 to vector<32x128xf32>
      %c0_11 = arith.constant 0 : index
      %c0_12 = arith.constant 0 : index
      %14 = vector.load %arg7[%c0_11, %c0_12] : memref<32x128xf32, #tpu.memory_space<vmem>>, vector<32x128xf32>
      tpu.vector_store %arg7[%c0_11, %c0_12], %13 {strides = array<i32>} : memref<32x128xf32, #tpu.memory_space<vmem>>, vector<32x128xf32>,
    } else {
    }
    %c0 = arith.constant 0 : index
    %c0_1 = arith.constant 0 : index
    %3 = vector.load %arg3[%c0, %c0_1] : memref<32x128xf32, #tpu.memory_space<vmem>>, vector<32x128xf32>
    %4 = arith.truncf %3 : vector<32x128xf32> to vector<32x128xbf16>
    %c0_2 = arith.constant 0 : index
    %c0_3 = arith.constant 0 : index
    %5 = vector.load %arg7[%c0_2, %c0_3] : memref<32x128xf32, #tpu.memory_space<vmem>>, vector<32x128xf32>
    %c0_4 = arith.constant 0 : index
    %c0_5 = arith.constant 0 : index
    %6 = vector.load %arg4[%c0_4, %c0_5] : memref<128x128xbf16, #tpu.memory_space<vmem>>, vector<128x128xbf16>
    %cst = arith.constant dense<0.000000e+00> : vector<32x128xf32>
    %7 = tpu.matmul %4, %6, %cst {dimension_numbers = #tpu.dot_dimension_numbers<[1], [0], [0], [1], [0, 0, 1, 1], [], []>} : vector<32x128xbf16>, vector<128x128xbf16>, vector<32x128xf32> -> vector<32x128xf32>
    %8 = arith.addf %5, %7 : vector<32x128xf32>
    %c0_6 = arith.constant 0 : index
    %c0_7 = arith.constant 0 : index
    %9 = vector.load %arg7[%c0_6, %c0_7] : memref<32x128xf32, #tpu.memory_space<vmem>>, vector<32x128xf32>
    tpu.vector_store %arg7[%c0_6, %c0_7], %8 {strides = array<i32>} : memref<32x128xf32, #tpu.memory_space<vmem>>, vector<32x128xf32>,
    %c0_i32_8 = arith.constant 0 : i32
    %10 = arith.cmpi eq, %arg2, %c0_i32_8 : i32
    %11 = arith.extui %10 : i1 to i32
    %c0_i32_9 = arith.constant 0 : i32
    %12 = arith.cmpi ne, %11, %c0_i32_9 : i32
    scf.if %12 {
      %c0_10 = arith.constant 0 : index
      %c0_11 = arith.constant 0 : index
      %13 = vector.load %arg7[%c0_10, %c0_11] : memref<32x128xf32, #tpu.memory_space<vmem>>, vector<32x128xf32>
      %c0_12 = arith.constant 0 : index
      %c0_13 = arith.constant 0 : index
      %14 = vector.load %arg5[%c0_12, %c0_13] : memref<1x128xf32, #tpu.memory_space<vmem>>, vector<1x128xf32>
      %15 = vector.broadcast %14 : vector<1x128xf32> to vector<32x128xf32>
      %16 = arith.addf %13, %15 : vector<32x128xf32>
      %17 = arith.truncf %16 : vector<32x128xf32> to vector<32x128xbf16>
      %c0_14 = arith.constant 0 : index
      %c0_15 = arith.constant 0 : index
      %18 = vector.load %arg6[%c0_14, %c0_15] : memref<32x128xbf16, #tpu.memory_space<vmem>>, vector<32x128xbf16>
      tpu.vector_store %arg6[%c0_14, %c0_15], %17 {strides = array<i32>} : memref<32x128xbf16, #tpu.memory_space<vmem>>, vector<32x128xbf16>,
    } else {
    }
    return
  }
  func.func @transform_0(%arg0: i32, %arg1: i32, %arg2: i32) -> (i32, i32) {
    %c0_i32 = arith.constant 0 : i32
    return %arg0, %arg2 : i32, i32
  }
  func.func @transform_1(%arg0: i32, %arg1: i32, %arg2: i32) -> (i32, i32) {
    %c0_i32 = arith.constant 0 : i32
    return %arg2, %arg1 : i32, i32
  }
  func.func @transform_2(%arg0: i32, %arg1: i32, %arg2: i32) -> (i32, i32) {
    %c0_i32 = arith.constant 0 : i32
    %c0_i32_0 = arith.constant 0 : i32
    return %c0_i32, %arg1 : i32, i32
  }
  func.func @transform_3(%arg0: i32, %arg1: i32, %arg2: i32) -> (i32, i32) {
    %c0_i32 = arith.constant 0 : i32
    return %arg0, %arg1 : i32, i32
  }
}

module attributes {stable_mosaic.version = 11 : i64} {
  func.func @_attention_kernel(%arg0: i32, %arg1: memref<1x5x96xbf16, #tpu.memory_space<vmem>>, %arg2: memref<1x5x32xbf16, #tpu.memory_space<vmem>>) attributes {dimension_semantics = [#tpu.dimension_semantics<parallel>], iteration_bounds = array<i64: 2>, scalar_prefetch = 0 : i64, scratch_operands = 0 : i64, tpu.core_type = #tpu.core_type<tc>, window_params = [{transform_indices = @transform_0, window_bounds = array<i64: 1, 5, 96>}, {transform_indices = @transform_1, window_bounds = array<i64: 1, 5, 32>}]} {
    %c0 = arith.constant 0 : index
    %c0_0 = arith.constant 0 : index
    %c0_1 = arith.constant 0 : index
    %0 = vector.load %arg1[%c0, %c0_0, %c0_1] : memref<1x5x96xbf16, #tpu.memory_space<vmem>>, vector<1x5x96xbf16>
    %1 = vector.shape_cast %0 : vector<1x5x96xbf16> to vector<5x96xbf16>
    %2 = vector.extract_strided_slice %1 {offsets = [0, 0], sizes = [5, 8], strides = [1, 1]} : vector<5x96xbf16> to vector<5x8xbf16>
    %3 = vector.extract_strided_slice %1 {offsets = [0, 32], sizes = [5, 8], strides = [1, 1]} : vector<5x96xbf16> to vector<5x8xbf16>
    %4 = vector.extract_strided_slice %1 {offsets = [0, 64], sizes = [5, 8], strides = [1, 1]} : vector<5x96xbf16> to vector<5x8xbf16>
    %cst = arith.constant dense<0.000000e+00> : vector<5x5xf32>
    %5 = tpu.matmul %2, %3, %cst {dimension_numbers = #tpu.dot_dimension_numbers<[1], [1], [0], [0], [0, 0, 1, 0], [], []>} : vector<5x8xbf16>, vector<5x8xbf16>, vector<5x5xf32> -> vector<5x5xf32>
    %cst_2 = arith.constant 0.353553385 : f32
    %6 = vector.broadcast %cst_2 : f32 to vector<5x5xf32>
    %7 = arith.mulf %5, %6 : vector<5x5xf32>
    %cst_3 = arith.constant dense<0xFF800000> : vector<5xf32>
    %8 = vector.multi_reduction <maximumf>, %7, %cst_3 [1] : vector<5x5xf32> to vector<5xf32>
    %9 = vector.shape_cast %8 : vector<5xf32> to vector<5x1xf32>
    %10 = vector.broadcast %9 : vector<5x1xf32> to vector<5x5xf32>
    %11 = arith.subf %7, %10 : vector<5x5xf32>
    %12 = math.exp %11 : vector<5x5xf32>
    %cst_4 = arith.constant dense<0.000000e+00> : vector<5xf32>
    %13 = vector.multi_reduction <add>, %12, %cst_4 [1] : vector<5x5xf32> to vector<5xf32>
    %14 = vector.shape_cast %13 : vector<5xf32> to vector<5x1xf32>
    %15 = tpu.reciprocal %14 {approx = true} : vector<5x1xf32> -> vector<5x1xf32>
    %16 = vector.broadcast %15 : vector<5x1xf32> to vector<5x5xf32>
    %17 = arith.mulf %12, %16 : vector<5x5xf32>
    %18 = arith.truncf %17 : vector<5x5xf32> to vector<5x5xbf16>
    %cst_5 = arith.constant dense<0.000000e+00> : vector<5x8xf32>
    %19 = tpu.matmul %18, %4, %cst_5 {dimension_numbers = #tpu.dot_dimension_numbers<[1], [0], [0], [1], [0, 0, 1, 1], [], []>} : vector<5x5xbf16>, vector<5x8xbf16>, vector<5x8xf32> -> vector<5x8xf32>
    %20 = vector.extract_strided_slice %1 {offsets = [0, 8], sizes = [5, 8], strides = [1, 1]} : vector<5x96xbf16> to vector<5x8xbf16>
    %21 = vector.extract_strided_slice %1 {offsets = [0, 40], sizes = [5, 8], strides = [1, 1]} : vector<5x96xbf16> to vector<5x8xbf16>
    %22 = vector.extract_strided_slice %1 {offsets = [0, 72], sizes = [5, 8], strides = [1, 1]} : vector<5x96xbf16> to vector<5x8xbf16>
    %cst_6 = arith.constant dense<0.000000e+00> : vector<5x5xf32>
    %23 = tpu.matmul %20, %21, %cst_6 {dimension_numbers = #tpu.dot_dimension_numbers<[1], [1], [0], [0], [0, 0, 1, 0], [], []>} : vector<5x8xbf16>, vector<5x8xbf16>, vector<5x5xf32> -> vector<5x5xf32>
    %cst_7 = arith.constant 0.353553385 : f32
    %24 = vector.broadcast %cst_7 : f32 to vector<5x5xf32>
    %25 = arith.mulf %23, %24 : vector<5x5xf32>
    %cst_8 = arith.constant dense<0xFF800000> : vector<5xf32>
    %26 = vector.multi_reduction <maximumf>, %25, %cst_8 [1] : vector<5x5xf32> to vector<5xf32>
    %27 = vector.shape_cast %26 : vector<5xf32> to vector<5x1xf32>
    %28 = vector.broadcast %27 : vector<5x1xf32> to vector<5x5xf32>
    %29 = arith.subf %25, %28 : vector<5x5xf32>
    %30 = math.exp %29 : vector<5x5xf32>
    %cst_9 = arith.constant dense<0.000000e+00> : vector<5xf32>
    %31 = vector.multi_reduction <add>, %30, %cst_9 [1] : vector<5x5xf32> to vector<5xf32>
    %32 = vector.shape_cast %31 : vector<5xf32> to vector<5x1xf32>
    %33 = tpu.reciprocal %32 {approx = true} : vector<5x1xf32> -> vector<5x1xf32>
    %34 = vector.broadcast %33 : vector<5x1xf32> to vector<5x5xf32>
    %35 = arith.mulf %30, %34 : vector<5x5xf32>
    %36 = arith.truncf %35 : vector<5x5xf32> to vector<5x5xbf16>
    %cst_10 = arith.constant dense<0.000000e+00> : vector<5x8xf32>
    %37 = tpu.matmul %36, %22, %cst_10 {dimension_numbers = #tpu.dot_dimension_numbers<[1], [0], [0], [1], [0, 0, 1, 1], [], []>} : vector<5x5xbf16>, vector<5x8xbf16>, vector<5x8xf32> -> vector<5x8xf32>
    %38 = vector.extract_strided_slice %1 {offsets = [0, 16], sizes = [5, 8], strides = [1, 1]} : vector<5x96xbf16> to vector<5x8xbf16>
    %39 = vector.extract_strided_slice %1 {offsets = [0, 48], sizes = [5, 8], strides = [1, 1]} : vector<5x96xbf16> to vector<5x8xbf16>
    %40 = vector.extract_strided_slice %1 {offsets = [0, 80], sizes = [5, 8], strides = [1, 1]} : vector<5x96xbf16> to vector<5x8xbf16>
    %cst_11 = arith.constant dense<0.000000e+00> : vector<5x5xf32>
    %41 = tpu.matmul %38, %39, %cst_11 {dimension_numbers = #tpu.dot_dimension_numbers<[1], [1], [0], [0], [0, 0, 1, 0], [], []>} : vector<5x8xbf16>, vector<5x8xbf16>, vector<5x5xf32> -> vector<5x5xf32>
    %cst_12 = arith.constant 0.353553385 : f32
    %42 = vector.broadcast %cst_12 : f32 to vector<5x5xf32>
    %43 = arith.mulf %41, %42 : vector<5x5xf32>
    %cst_13 = arith.constant dense<0xFF800000> : vector<5xf32>
    %44 = vector.multi_reduction <maximumf>, %43, %cst_13 [1] : vector<5x5xf32> to vector<5xf32>
    %45 = vector.shape_cast %44 : vector<5xf32> to vector<5x1xf32>
    %46 = vector.broadcast %45 : vector<5x1xf32> to vector<5x5xf32>
    %47 = arith.subf %43, %46 : vector<5x5xf32>
    %48 = math.exp %47 : vector<5x5xf32>
    %cst_14 = arith.constant dense<0.000000e+00> : vector<5xf32>
    %49 = vector.multi_reduction <add>, %48, %cst_14 [1] : vector<5x5xf32> to vector<5xf32>
    %50 = vector.shape_cast %49 : vector<5xf32> to vector<5x1xf32>
    %51 = tpu.reciprocal %50 {approx = true} : vector<5x1xf32> -> vector<5x1xf32>
    %52 = vector.broadcast %51 : vector<5x1xf32> to vector<5x5xf32>
    %53 = arith.mulf %48, %52 : vector<5x5xf32>
    %54 = arith.truncf %53 : vector<5x5xf32> to vector<5x5xbf16>
    %cst_15 = arith.constant dense<0.000000e+00> : vector<5x8xf32>
    %55 = tpu.matmul %54, %40, %cst_15 {dimension_numbers = #tpu.dot_dimension_numbers<[1], [0], [0], [1], [0, 0, 1, 1], [], []>} : vector<5x5xbf16>, vector<5x8xbf16>, vector<5x8xf32> -> vector<5x8xf32>
    %56 = vector.extract_strided_slice %1 {offsets = [0, 24], sizes = [5, 8], strides = [1, 1]} : vector<5x96xbf16> to vector<5x8xbf16>
    %57 = vector.extract_strided_slice %1 {offsets = [0, 56], sizes = [5, 8], strides = [1, 1]} : vector<5x96xbf16> to vector<5x8xbf16>
    %58 = vector.extract_strided_slice %1 {offsets = [0, 88], sizes = [5, 8], strides = [1, 1]} : vector<5x96xbf16> to vector<5x8xbf16>
    %cst_16 = arith.constant dense<0.000000e+00> : vector<5x5xf32>
    %59 = tpu.matmul %56, %57, %cst_16 {dimension_numbers = #tpu.dot_dimension_numbers<[1], [1], [0], [0], [0, 0, 1, 0], [], []>} : vector<5x8xbf16>, vector<5x8xbf16>, vector<5x5xf32> -> vector<5x5xf32>
    %cst_17 = arith.constant 0.353553385 : f32
    %60 = vector.broadcast %cst_17 : f32 to vector<5x5xf32>
    %61 = arith.mulf %59, %60 : vector<5x5xf32>
    %cst_18 = arith.constant dense<0xFF800000> : vector<5xf32>
    %62 = vector.multi_reduction <maximumf>, %61, %cst_18 [1] : vector<5x5xf32> to vector<5xf32>
    %63 = vector.shape_cast %62 : vector<5xf32> to vector<5x1xf32>
    %64 = vector.broadcast %63 : vector<5x1xf32> to vector<5x5xf32>
    %65 = arith.subf %61, %64 : vector<5x5xf32>
    %66 = math.exp %65 : vector<5x5xf32>
    %cst_19 = arith.constant dense<0.000000e+00> : vector<5xf32>
    %67 = vector.multi_reduction <add>, %66, %cst_19 [1] : vector<5x5xf32> to vector<5xf32>
    %68 = vector.shape_cast %67 : vector<5xf32> to vector<5x1xf32>
    %69 = tpu.reciprocal %68 {approx = true} : vector<5x1xf32> -> vector<5x1xf32>
    %70 = vector.broadcast %69 : vector<5x1xf32> to vector<5x5xf32>
    %71 = arith.mulf %66, %70 : vector<5x5xf32>
    %72 = arith.truncf %71 : vector<5x5xf32> to vector<5x5xbf16>
    %cst_20 = arith.constant dense<0.000000e+00> : vector<5x8xf32>
    %73 = tpu.matmul %72, %58, %cst_20 {dimension_numbers = #tpu.dot_dimension_numbers<[1], [0], [0], [1], [0, 0, 1, 1], [], []>} : vector<5x5xbf16>, vector<5x8xbf16>, vector<5x8xf32> -> vector<5x8xf32>
    %74 = tpu.concatenate %19, %37, %55, %73 in 1 : vector<5x8xf32>, vector<5x8xf32>, vector<5x8xf32>, vector<5x8xf32> -> vector<5x32xf32>
    %75 = arith.truncf %74 : vector<5x32xf32> to vector<5x32xbf16>
    %c0_21 = arith.constant 0 : index
    %c0_22 = arith.constant 0 : index
    %c0_23 = arith.constant 0 : index
    %76 = vector.load %arg2[%c0_21, %c0_22, %c0_23] : memref<1x5x32xbf16, #tpu.memory_space<vmem>>, vector<1x5x32xbf16>
    %77 = vector.shape_cast %76 : vector<1x5x32xbf16> to vector<5x32xbf16>
    %78 = vector.shape_cast %75 : vector<5x32xbf16> to vector<1x5x32xbf16>
    tpu.vector_store %arg2[%c0_21, %c0_22, %c0_23], %78 {strides = array<i32>} : memref<1x5x32xbf16, #tpu.memory_space<vmem>>, vector<1x5x32xbf16>,
    return
  }
  func.func @transform_0(%arg0: i32) -> (i32, i32, i32) {
    %c0_i32 = arith.constant 0 : i32
    %c0_i32_0 = arith.constant 0 : i32
    %c0_i32_1 = arith.constant 0 : i32
    return %arg0, %c0_i32, %c0_i32_0 : i32, i32, i32
  }
  func.func @transform_1(%arg0: i32) -> (i32, i32, i32) {
    %c0_i32 = arith.constant 0 : i32
    %c0_i32_0 = arith.constant 0 : i32
    %c0_i32_1 = arith.constant 0 : i32
    return %arg0, %c0_i32, %c0_i32_0 : i32, i32, i32
  }
}

module attributes {stable_mosaic.version = 11 : i64} {
  func.func @_fused_linear_kernel(%arg0: i32, %arg1: i32, %arg2: i32, %arg3: memref<16x128xbf16, #tpu.memory_space<vmem>>, %arg4: memref<128x128xbf16, #tpu.memory_space<vmem>>, %arg5: memref<1x128xf32, #tpu.memory_space<vmem>>, %arg6: memref<1x128xf32, #tpu.memory_space<vmem>>, %arg7: memref<1x128xf32, #tpu.memory_space<vmem>>, %arg8: memref<16x128xbf16, #tpu.memory_space<vmem>>, %arg9: memref<16x128xf32, #tpu.memory_space<vmem>>) attributes {dimension_semantics = [#tpu.dimension_semantics<parallel>, #tpu.dimension_semantics<parallel>, #tpu.dimension_semantics<arbitrary>], iteration_bounds = array<i64: 1, 1, 1>, scalar_prefetch = 0 : i64, scratch_operands = 1 : i64, tpu.core_type = #tpu.core_type<tc>, window_params = [{transform_indices = @transform_0, window_bounds = array<i64: 16, 128>}, {transform_indices = @transform_1, window_bounds = array<i64: 128, 128>}, {transform_indices = @transform_2, window_bounds = array<i64: 1, 128>}, {transform_indices = @transform_3, window_bounds = array<i64: 1, 128>}, {transform_indices = @transform_4, window_bounds = array<i64: 1, 128>}, {transform_indices = @transform_5, window_bounds = array<i64: 16, 128>}]} {
    %c0_i32 = arith.constant 0 : i32
    %0 = arith.cmpi eq, %arg2, %c0_i32 : i32
    %1 = arith.extui %0 : i1 to i32
    %c0_i32_0 = arith.constant 0 : i32
    %2 = arith.cmpi ne, %1, %c0_i32_0 : i32
    scf.if %2 {
      %cst_19 = arith.constant 0.000000e+00 : f32
      %38 = vector.broadcast %cst_19 : f32 to vector<16x128xf32>
      %c0_20 = arith.constant 0 : index
      %c0_21 = arith.constant 0 : index
      %39 = vector.load %arg9[%c0_20, %c0_21] : memref<16x128xf32, #tpu.memory_space<vmem>>, vector<16x128xf32>
      tpu.vector_store %arg9[%c0_20, %c0_21], %38 {strides = array<i32>} : memref<16x128xf32, #tpu.memory_space<vmem>>, vector<16x128xf32>,
    } else {
    }
    %c0 = arith.constant 0 : index
    %c0_1 = arith.constant 0 : index
    %3 = vector.load %arg3[%c0, %c0_1] : memref<16x128xbf16, #tpu.memory_space<vmem>>, vector<16x128xbf16>
    %4 = arith.extf %3 : vector<16x128xbf16> to vector<16x128xf32>
    %cst = arith.constant dense<0.000000e+00> : vector<16xf32>
    %5 = vector.multi_reduction <add>, %4, %cst [1] : vector<16x128xf32> to vector<16xf32>
    %6 = vector.shape_cast %5 : vector<16xf32> to vector<16x1xf32>
    %cst_2 = arith.constant 3.125000e-02 : f32
    %7 = vector.broadcast %cst_2 : f32 to vector<16x1xf32>
    %8 = arith.mulf %6, %7 : vector<16x1xf32>
    %9 = arith.mulf %4, %4 : vector<16x128xf32>
    %cst_3 = arith.constant dense<0.000000e+00> : vector<16xf32>
    %10 = vector.multi_reduction <add>, %9, %cst_3 [1] : vector<16x128xf32> to vector<16xf32>
    %11 = vector.shape_cast %10 : vector<16xf32> to vector<16x1xf32>
    %cst_4 = arith.constant 3.125000e-02 : f32
    %12 = vector.broadcast %cst_4 : f32 to vector<16x1xf32>
    %13 = arith.mulf %11, %12 : vector<16x1xf32>
    %14 = arith.mulf %8, %8 : vector<16x1xf32>
    %15 = arith.subf %13, %14 : vector<16x1xf32>
    %16 = vector.broadcast %8 : vector<16x1xf32> to vector<16x128xf32>
    %17 = arith.subf %4, %16 : vector<16x128xf32>
    %cst_5 = arith.constant 9.99999997E-7 : f32
    %18 = vector.broadcast %cst_5 : f32 to vector<16x1xf32>
    %19 = arith.addf %15, %18 : vector<16x1xf32>
    %20 = math.rsqrt %19 : vector<16x1xf32>
    %21 = vector.broadcast %20 : vector<16x1xf32> to vector<16x128xf32>
    %22 = arith.mulf %17, %21 : vector<16x128xf32>
    %c0_6 = arith.constant 0 : index
    %c0_7 = arith.constant 0 : index
    %23 = vector.load %arg6[%c0_6, %c0_7] : memref<1x128xf32, #tpu.memory_space<vmem>>, vector<1x128xf32>
    %24 = vector.broadcast %23 : vector<1x128xf32> to vector<16x128xf32>
    %25 = arith.mulf %22, %24 : vector<16x128xf32>
    %c0_8 = arith.constant 0 : index
    %c0_9 = arith.constant 0 : index
    %26 = vector.load %arg7[%c0_8, %c0_9] : memref<1x128xf32, #tpu.memory_space<vmem>>, vector<1x128xf32>
    %27 = vector.broadcast %26 : vector<1x128xf32> to vector<16x128xf32>
    %28 = arith.addf %25, %27 : vector<16x128xf32>
    %29 = arith.truncf %28 : vector<16x128xf32> to vector<16x128xbf16>
    %c0_10 = arith.constant 0 : index
    %c0_11 = arith.constant 0 : index
    %30 = vector.load %arg9[%c0_10, %c0_11] : memref<16x128xf32, #tpu.memory_space<vmem>>, vector<16x128xf32>
    %c0_12 = arith.constant 0 : index
    %c0_13 = arith.constant 0 : index
    %31 = vector.load %arg4[%c0_12, %c0_13] : memref<128x128xbf16, #tpu.memory_space<vmem>>, vector<128x128xbf16>
    %cst_14 = arith.constant dense<0.000000e+00> : vector<16x128xf32>
    %32 = tpu.matmul %29, %31, %cst_14 {dimension_numbers = #tpu.dot_dimension_numbers<[1], [0], [0], [1], [0, 0, 1, 1], [], []>} : vector<16x128xbf16>, vector<128x128xbf16>, vector<16x128xf32> -> vector<16x128xf32>
    %33 = arith.addf %30, %32 : vector<16x128xf32>
    %c0_15 = arith.constant 0 : index
    %c0_16 = arith.constant 0 : index
    %34 = vector.load %arg9[%c0_15, %c0_16] : memref<16x128xf32, #tpu.memory_space<vmem>>, vector<16x128xf32>
    tpu.vector_store %arg9[%c0_15, %c0_16], %33 {strides = array<i32>} : memref<16x128xf32, #tpu.memory_space<vmem>>, vector<16x128xf32>,
    %c0_i32_17 = arith.constant 0 : i32
    %35 = arith.cmpi eq, %arg2, %c0_i32_17 : i32
    %36 = arith.extui %35 : i1 to i32
    %c0_i32_18 = arith.constant 0 : i32
    %37 = arith.cmpi ne, %36, %c0_i32_18 : i32
    scf.if %37 {
      %c0_19 = arith.constant 0 : index
      %c0_20 = arith.constant 0 : index
      %38 = vector.load %arg9[%c0_19, %c0_20] : memref<16x128xf32, #tpu.memory_space<vmem>>, vector<16x128xf32>
      %c0_21 = arith.constant 0 : index
      %c0_22 = arith.constant 0 : index
      %39 = vector.load %arg5[%c0_21, %c0_22] : memref<1x128xf32, #tpu.memory_space<vmem>>, vector<1x128xf32>
      %40 = vector.broadcast %39 : vector<1x128xf32> to vector<16x128xf32>
      %41 = arith.addf %38, %40 : vector<16x128xf32>
      %42 = arith.truncf %41 : vector<16x128xf32> to vector<16x128xbf16>
      %c0_23 = arith.constant 0 : index
      %c0_24 = arith.constant 0 : index
      %43 = vector.load %arg8[%c0_23, %c0_24] : memref<16x128xbf16, #tpu.memory_space<vmem>>, vector<16x128xbf16>
      tpu.vector_store %arg8[%c0_23, %c0_24], %42 {strides = array<i32>} : memref<16x128xbf16, #tpu.memory_space<vmem>>, vector<16x128xbf16>,
    } else {
    }
    return
  }
  func.func @transform_0(%arg0: i32, %arg1: i32, %arg2: i32) -> (i32, i32) {
    %c0_i32 = arith.constant 0 : i32
    return %arg0, %arg2 : i32, i32
  }
  func.func @transform_1(%arg0: i32, %arg1: i32, %arg2: i32) -> (i32, i32) {
    %c0_i32 = arith.constant 0 : i32
    return %arg2, %arg1 : i32, i32
  }
  func.func @transform_2(%arg0: i32, %arg1: i32, %arg2: i32) -> (i32, i32) {
    %c0_i32 = arith.constant 0 : i32
    %c0_i32_0 = arith.constant 0 : i32
    return %c0_i32, %arg1 : i32, i32
  }
  func.func @transform_3(%arg0: i32, %arg1: i32, %arg2: i32) -> (i32, i32) {
    %c0_i32 = arith.constant 0 : i32
    %c0_i32_0 = arith.constant 0 : i32
    return %c0_i32, %arg2 : i32, i32
  }
  func.func @transform_4(%arg0: i32, %arg1: i32, %arg2: i32) -> (i32, i32) {
    %c0_i32 = arith.constant 0 : i32
    %c0_i32_0 = arith.constant 0 : i32
    return %c0_i32, %arg2 : i32, i32
  }
  func.func @transform_5(%arg0: i32, %arg1: i32, %arg2: i32) -> (i32, i32) {
    %c0_i32 = arith.constant 0 : i32
    return %arg0, %arg1 : i32, i32
  }
}

module attributes {stable_mosaic.version = 11 : i64} {
  func.func @_fused_linear_kernel(%arg0: i32, %arg1: i32, %arg2: i32, %arg3: memref<16x128xbf16, #tpu.memory_space<vmem>>, %arg4: memref<128x128xbf16, #tpu.memory_space<vmem>>, %arg5: memref<1x128xf32, #tpu.memory_space<vmem>>, %arg6: memref<16x128xbf16, #tpu.memory_space<vmem>>, %arg7: memref<16x128xbf16, #tpu.memory_space<vmem>>, %arg8: memref<16x128xf32, #tpu.memory_space<vmem>>) attributes {dimension_semantics = [#tpu.dimension_semantics<parallel>, #tpu.dimension_semantics<parallel>, #tpu.dimension_semantics<arbitrary>], iteration_bounds = array<i64: 1, 1, 1>, scalar_prefetch = 0 : i64, scratch_operands = 1 : i64, tpu.core_type = #tpu.core_type<tc>, window_params = [{transform_indices = @transform_0, window_bounds = array<i64: 16, 128>}, {transform_indices = @transform_1, window_bounds = array<i64: 128, 128>}, {transform_indices = @transform_2, window_bounds = array<i64: 1, 128>}, {transform_indices = @transform_3, window_bounds = array<i64: 16, 128>}, {transform_indices = @transform_4, window_bounds = array<i64: 16, 128>}]} {
    %c0_i32 = arith.constant 0 : i32
    %0 = arith.cmpi eq, %arg2, %c0_i32 : i32
    %1 = arith.extui %0 : i1 to i32
    %c0_i32_0 = arith.constant 0 : i32
    %2 = arith.cmpi ne, %1, %c0_i32_0 : i32
    scf.if %2 {
      %cst_10 = arith.constant 0.000000e+00 : f32
      %12 = vector.broadcast %cst_10 : f32 to vector<16x128xf32>
      %c0_11 = arith.constant 0 : index
      %c0_12 = arith.constant 0 : index
      %13 = vector.load %arg8[%c0_11, %c0_12] : memref<16x128xf32, #tpu.memory_space<vmem>>, vector<16x128xf32>
      tpu.vector_store %arg8[%c0_11, %c0_12], %12 {strides = array<i32>} : memref<16x128xf32, #tpu.memory_space<vmem>>, vector<16x128xf32>,
    } else {
    }
    %c0 = arith.constant 0 : index
    %c0_1 = arith.constant 0 : index
    %3 = vector.load %arg3[%c0, %c0_1] : memref<16x128xbf16, #tpu.memory_space<vmem>>, vector<16x128xbf16>
    %c0_2 = arith.constant 0 : index
    %c0_3 = arith.constant 0 : index
    %4 = vector.load %arg8[%c0_2, %c0_3] : memref<16x128xf32, #tpu.memory_space<vmem>>, vector<16x128xf32>
    %c0_4 = arith.constant 0 : index
    %c0_5 = arith.constant 0 : index
    %5 = vector.load %arg4[%c0_4, %c0_5] : memref<128x128xbf16, #tpu.memory_space<vmem>>, vector<128x128xbf16>
    %cst = arith.constant dense<0.000000e+00> : vector<16x128xf32>
    %6 = tpu.matmul %3, %5, %cst {dimension_numbers = #tpu.dot_dimension_numbers<[1], [0], [0], [1], [0, 0, 1, 1], [], []>} : vector<16x128xbf16>, vector<128x128xbf16>, vector<16x128xf32> -> vector<16x128xf32>
    %7 = arith.addf %4, %6 : vector<16x128xf32>
    %c0_6 = arith.constant 0 : index
    %c0_7 = arith.constant 0 : index
    %8 = vector.load %arg8[%c0_6, %c0_7] : memref<16x128xf32, #tpu.memory_space<vmem>>, vector<16x128xf32>
    tpu.vector_store %arg8[%c0_6, %c0_7], %7 {strides = array<i32>} : memref<16x128xf32, #tpu.memory_space<vmem>>, vector<16x128xf32>,
    %c0_i32_8 = arith.constant 0 : i32
    %9 = arith.cmpi eq, %arg2, %c0_i32_8 : i32
    %10 = arith.extui %9 : i1 to i32
    %c0_i32_9 = arith.constant 0 : i32
    %11 = arith.cmpi ne, %10, %c0_i32_9 : i32
    scf.if %11 {
      %c0_10 = arith.constant 0 : index
      %c0_11 = arith.constant 0 : index
      %12 = vector.load %arg8[%c0_10, %c0_11] : memref<16x128xf32, #tpu.memory_space<vmem>>, vector<16x128xf32>
      %c0_12 = arith.constant 0 : index
      %c0_13 = arith.constant 0 : index
      %13 = vector.load %arg5[%c0_12, %c0_13] : memref<1x128xf32, #tpu.memory_space<vmem>>, vector<1x128xf32>
      %14 = vector.broadcast %13 : vector<1x128xf32> to vector<16x128xf32>
      %15 = arith.addf %12, %14 : vector<16x128xf32>
      %c0_14 = arith.constant 0 : index
      %c0_15 = arith.constant 0 : index
      %16 = vector.load %arg6[%c0_14, %c0_15] : memref<16x128xbf16, #tpu.memory_space<vmem>>, vector<16x128xbf16>
      %17 = arith.extf %16 : vector<16x128xbf16> to vector<16x128xf32>
      %18 = arith.addf %15, %17 : vector<16x128xf32>
      %19 = arith.truncf %18 : vector<16x128xf32> to vector<16x128xbf16>
      %c0_16 = arith.constant 0 : index
      %c0_17 = arith.constant 0 : index
      %20 = vector.load %arg7[%c0_16, %c0_17] : memref<16x128xbf16, #tpu.memory_space<vmem>>, vector<16x128xbf16>
      tpu.vector_store %arg7[%c0_16, %c0_17], %19 {strides = array<i32>} : memref<16x128xbf16, #tpu.memory_space<vmem>>, vector<16x128xbf16>,
    } else {
    }
    return
  }
  func.func @transform_0(%arg0: i32, %arg1: i32, %arg2: i32) -> (i32, i32) {
    %c0_i32 = arith.constant 0 : i32
    return %arg0, %arg2 : i32, i32
  }
  func.func @transform_1(%arg0: i32, %arg1: i32, %arg2: i32) -> (i32, i32) {
    %c0_i32 = arith.constant 0 : i32
    return %arg2, %arg1 : i32, i32
  }
  func.func @transform_2(%arg0: i32, %arg1: i32, %arg2: i32) -> (i32, i32) {
    %c0_i32 = arith.constant 0 : i32
    %c0_i32_0 = arith.constant 0 : i32
    return %c0_i32, %arg1 : i32, i32
  }
  func.func @transform_3(%arg0: i32, %arg1: i32, %arg2: i32) -> (i32, i32) {
    %c0_i32 = arith.constant 0 : i32
    return %arg0, %arg1 : i32, i32
  }
  func.func @transform_4(%arg0: i32, %arg1: i32, %arg2: i32) -> (i32, i32) {
    %c0_i32 = arith.constant 0 : i32
    return %arg0, %arg1 : i32, i32
  }
}

module attributes {stable_mosaic.version = 11 : i64} {
  func.func @_fused_linear_kernel(%arg0: i32, %arg1: i32, %arg2: i32, %arg3: memref<16x128xbf16, #tpu.memory_space<vmem>>, %arg4: memref<128x128xbf16, #tpu.memory_space<vmem>>, %arg5: memref<1x128xf32, #tpu.memory_space<vmem>>, %arg6: memref<1x128xf32, #tpu.memory_space<vmem>>, %arg7: memref<1x128xf32, #tpu.memory_space<vmem>>, %arg8: memref<16x128xbf16, #tpu.memory_space<vmem>>, %arg9: memref<16x128xf32, #tpu.memory_space<vmem>>) attributes {dimension_semantics = [#tpu.dimension_semantics<parallel>, #tpu.dimension_semantics<parallel>, #tpu.dimension_semantics<arbitrary>], iteration_bounds = array<i64: 1, 1, 1>, scalar_prefetch = 0 : i64, scratch_operands = 1 : i64, tpu.core_type = #tpu.core_type<tc>, window_params = [{transform_indices = @transform_0, window_bounds = array<i64: 16, 128>}, {transform_indices = @transform_1, window_bounds = array<i64: 128, 128>}, {transform_indices = @transform_2, window_bounds = array<i64: 1, 128>}, {transform_indices = @transform_3, window_bounds = array<i64: 1, 128>}, {transform_indices = @transform_4, window_bounds = array<i64: 1, 128>}, {transform_indices = @transform_5, window_bounds = array<i64: 16, 128>}]} {
    %c0_i32 = arith.constant 0 : i32
    %0 = arith.cmpi eq, %arg2, %c0_i32 : i32
    %1 = arith.extui %0 : i1 to i32
    %c0_i32_0 = arith.constant 0 : i32
    %2 = arith.cmpi ne, %1, %c0_i32_0 : i32
    scf.if %2 {
      %cst_19 = arith.constant 0.000000e+00 : f32
      %38 = vector.broadcast %cst_19 : f32 to vector<16x128xf32>
      %c0_20 = arith.constant 0 : index
      %c0_21 = arith.constant 0 : index
      %39 = vector.load %arg9[%c0_20, %c0_21] : memref<16x128xf32, #tpu.memory_space<vmem>>, vector<16x128xf32>
      tpu.vector_store %arg9[%c0_20, %c0_21], %38 {strides = array<i32>} : memref<16x128xf32, #tpu.memory_space<vmem>>, vector<16x128xf32>,
    } else {
    }
    %c0 = arith.constant 0 : index
    %c0_1 = arith.constant 0 : index
    %3 = vector.load %arg3[%c0, %c0_1] : memref<16x128xbf16, #tpu.memory_space<vmem>>, vector<16x128xbf16>
    %4 = arith.extf %3 : vector<16x128xbf16> to vector<16x128xf32>
    %cst = arith.constant dense<0.000000e+00> : vector<16xf32>
    %5 = vector.multi_reduction <add>, %4, %cst [1] : vector<16x128xf32> to vector<16xf32>
    %6 = vector.shape_cast %5 : vector<16xf32> to vector<16x1xf32>
    %cst_2 = arith.constant 3.125000e-02 : f32
    %7 = vector.broadcast %cst_2 : f32 to vector<16x1xf32>
    %8 = arith.mulf %6, %7 : vector<16x1xf32>
    %9 = arith.mulf %4, %4 : vector<16x128xf32>
    %cst_3 = arith.constant dense<0.000000e+00> : vector<16xf32>
    %10 = vector.multi_reduction <add>, %9, %cst_3 [1] : vector<16x128xf32> to vector<16xf32>
    %11 = vector.shape_cast %10 : vector<16xf32> to vector<16x1xf32>
    %cst_4 = arith.constant 3.125000e-02 : f32
    %12 = vector.broadcast %cst_4 : f32 to vector<16x1xf32>
    %13 = arith.mulf %11, %12 : vector<16x1xf32>
    %14 = arith.mulf %8, %8 : vector<16x1xf32>
    %15 = arith.subf %13, %14 : vector<16x1xf32>
    %16 = vector.broadcast %8 : vector<16x1xf32> to vector<16x128xf32>
    %17 = arith.subf %4, %16 : vector<16x128xf32>
    %cst_5 = arith.constant 9.99999997E-7 : f32
    %18 = vector.broadcast %cst_5 : f32 to vector<16x1xf32>
    %19 = arith.addf %15, %18 : vector<16x1xf32>
    %20 = math.rsqrt %19 : vector<16x1xf32>
    %21 = vector.broadcast %20 : vector<16x1xf32> to vector<16x128xf32>
    %22 = arith.mulf %17, %21 : vector<16x128xf32>
    %c0_6 = arith.constant 0 : index
    %c0_7 = arith.constant 0 : index
    %23 = vector.load %arg6[%c0_6, %c0_7] : memref<1x128xf32, #tpu.memory_space<vmem>>, vector<1x128xf32>
    %24 = vector.broadcast %23 : vector<1x128xf32> to vector<16x128xf32>
    %25 = arith.mulf %22, %24 : vector<16x128xf32>
    %c0_8 = arith.constant 0 : index
    %c0_9 = arith.constant 0 : index
    %26 = vector.load %arg7[%c0_8, %c0_9] : memref<1x128xf32, #tpu.memory_space<vmem>>, vector<1x128xf32>
    %27 = vector.broadcast %26 : vector<1x128xf32> to vector<16x128xf32>
    %28 = arith.addf %25, %27 : vector<16x128xf32>
    %29 = arith.truncf %28 : vector<16x128xf32> to vector<16x128xbf16>
    %c0_10 = arith.constant 0 : index
    %c0_11 = arith.constant 0 : index
    %30 = vector.load %arg9[%c0_10, %c0_11] : memref<16x128xf32, #tpu.memory_space<vmem>>, vector<16x128xf32>
    %c0_12 = arith.constant 0 : index
    %c0_13 = arith.constant 0 : index
    %31 = vector.load %arg4[%c0_12, %c0_13] : memref<128x128xbf16, #tpu.memory_space<vmem>>, vector<128x128xbf16>
    %cst_14 = arith.constant dense<0.000000e+00> : vector<16x128xf32>
    %32 = tpu.matmul %29, %31, %cst_14 {dimension_numbers = #tpu.dot_dimension_numbers<[1], [0], [0], [1], [0, 0, 1, 1], [], []>} : vector<16x128xbf16>, vector<128x128xbf16>, vector<16x128xf32> -> vector<16x128xf32>
    %33 = arith.addf %30, %32 : vector<16x128xf32>
    %c0_15 = arith.constant 0 : index
    %c0_16 = arith.constant 0 : index
    %34 = vector.load %arg9[%c0_15, %c0_16] : memref<16x128xf32, #tpu.memory_space<vmem>>, vector<16x128xf32>
    tpu.vector_store %arg9[%c0_15, %c0_16], %33 {strides = array<i32>} : memref<16x128xf32, #tpu.memory_space<vmem>>, vector<16x128xf32>,
    %c0_i32_17 = arith.constant 0 : i32
    %35 = arith.cmpi eq, %arg2, %c0_i32_17 : i32
    %36 = arith.extui %35 : i1 to i32
    %c0_i32_18 = arith.constant 0 : i32
    %37 = arith.cmpi ne, %36, %c0_i32_18 : i32
    scf.if %37 {
      %c0_19 = arith.constant 0 : index
      %c0_20 = arith.constant 0 : index
      %38 = vector.load %arg9[%c0_19, %c0_20] : memref<16x128xf32, #tpu.memory_space<vmem>>, vector<16x128xf32>
      %c0_21 = arith.constant 0 : index
      %c0_22 = arith.constant 0 : index
      %39 = vector.load %arg5[%c0_21, %c0_22] : memref<1x128xf32, #tpu.memory_space<vmem>>, vector<1x128xf32>
      %40 = vector.broadcast %39 : vector<1x128xf32> to vector<16x128xf32>
      %41 = arith.addf %38, %40 : vector<16x128xf32>
      %cst_23 = arith.constant 5.000000e-01 : f32
      %42 = vector.broadcast %cst_23 : f32 to vector<16x128xf32>
      %43 = arith.mulf %42, %41 : vector<16x128xf32>
      %cst_24 = arith.constant 4.471500e-02 : f32
      %44 = vector.broadcast %cst_24 : f32 to vector<16x128xf32>
      %45 = arith.mulf %44, %41 : vector<16x128xf32>
      %46 = arith.mulf %45, %41 : vector<16x128xf32>
      %47 = arith.mulf %46, %41 : vector<16x128xf32>
      %48 = arith.addf %41, %47 : vector<16x128xf32>
      %cst_25 = arith.constant 0.797884583 : f32
      %49 = vector.broadcast %cst_25 : f32 to vector<16x128xf32>
      %50 = arith.mulf %49, %48 : vector<16x128xf32>
      %51 = math.tanh %50 : vector<16x128xf32>
      %cst_26 = arith.constant 1.000000e+00 : f32
      %52 = vector.broadcast %cst_26 : f32 to vector<16x128xf32>
      %53 = arith.addf %52, %51 : vector<16x128xf32>
      %54 = arith.mulf %43, %53 : vector<16x128xf32>
      %55 = arith.truncf %54 : vector<16x128xf32> to vector<16x128xbf16>
      %c0_27 = arith.constant 0 : index
      %c0_28 = arith.constant 0 : index
      %56 = vector.load %arg8[%c0_27, %c0_28] : memref<16x128xbf16, #tpu.memory_space<vmem>>, vector<16x128xbf16>
      tpu.vector_store %arg8[%c0_27, %c0_28], %55 {strides = array<i32>} : memref<16x128xbf16, #tpu.memory_space<vmem>>, vector<16x128xbf16>,
    } else {
    }
    return
  }
  func.func @transform_0(%arg0: i32, %arg1: i32, %arg2: i32) -> (i32, i32) {
    %c0_i32 = arith.constant 0 : i32
    return %arg0, %arg2 : i32, i32
  }
  func.func @transform_1(%arg0: i32, %arg1: i32, %arg2: i32) -> (i32, i32) {
    %c0_i32 = arith.constant 0 : i32
    return %arg2, %arg1 : i32, i32
  }
  func.func @transform_2(%arg0: i32, %arg1: i32, %arg2: i32) -> (i32, i32) {
    %c0_i32 = arith.constant 0 : i32
    %c0_i32_0 = arith.constant 0 : i32
    return %c0_i32, %arg1 : i32, i32
  }
  func.func @transform_3(%arg0: i32, %arg1: i32, %arg2: i32) -> (i32, i32) {
    %c0_i32 = arith.constant 0 : i32
    %c0_i32_0 = arith.constant 0 : i32
    return %c0_i32, %arg2 : i32, i32
  }
  func.func @transform_4(%arg0: i32, %arg1: i32, %arg2: i32) -> (i32, i32) {
    %c0_i32 = arith.constant 0 : i32
    %c0_i32_0 = arith.constant 0 : i32
    return %c0_i32, %arg2 : i32, i32
  }
  func.func @transform_5(%arg0: i32, %arg1: i32, %arg2: i32) -> (i32, i32) {
    %c0_i32 = arith.constant 0 : i32
    return %arg0, %arg1 : i32, i32
  }
}

module attributes {stable_mosaic.version = 11 : i64} {
  func.func @_fused_linear_kernel(%arg0: i32, %arg1: i32, %arg2: i32, %arg3: memref<40x128xbf16, #tpu.memory_space<vmem>>, %arg4: memref<128x128xbf16, #tpu.memory_space<vmem>>, %arg5: memref<1x128xf32, #tpu.memory_space<vmem>>, %arg6: memref<40x128xbf16, #tpu.memory_space<vmem>>, %arg7: memref<40x128xbf16, #tpu.memory_space<vmem>>, %arg8: memref<40x128xf32, #tpu.memory_space<vmem>>) attributes {dimension_semantics = [#tpu.dimension_semantics<parallel>, #tpu.dimension_semantics<parallel>, #tpu.dimension_semantics<arbitrary>], iteration_bounds = array<i64: 1, 1, 1>, scalar_prefetch = 0 : i64, scratch_operands = 1 : i64, tpu.core_type = #tpu.core_type<tc>, window_params = [{transform_indices = @transform_0, window_bounds = array<i64: 40, 128>}, {transform_indices = @transform_1, window_bounds = array<i64: 128, 128>}, {transform_indices = @transform_2, window_bounds = array<i64: 1, 128>}, {transform_indices = @transform_3, window_bounds = array<i64: 40, 128>}, {transform_indices = @transform_4, window_bounds = array<i64: 40, 128>}]} {
    %c0_i32 = arith.constant 0 : i32
    %0 = arith.cmpi eq, %arg2, %c0_i32 : i32
    %1 = arith.extui %0 : i1 to i32
    %c0_i32_0 = arith.constant 0 : i32
    %2 = arith.cmpi ne, %1, %c0_i32_0 : i32
    scf.if %2 {
      %cst_10 = arith.constant 0.000000e+00 : f32
      %12 = vector.broadcast %cst_10 : f32 to vector<40x128xf32>
      %c0_11 = arith.constant 0 : index
      %c0_12 = arith.constant 0 : index
      %13 = vector.load %arg8[%c0_11, %c0_12] : memref<40x128xf32, #tpu.memory_space<vmem>>, vector<40x128xf32>
      tpu.vector_store %arg8[%c0_11, %c0_12], %12 {strides = array<i32>} : memref<40x128xf32, #tpu.memory_space<vmem>>, vector<40x128xf32>,
    } else {
    }
    %c0 = arith.constant 0 : index
    %c0_1 = arith.constant 0 : index
    %3 = vector.load %arg3[%c0, %c0_1] : memref<40x128xbf16, #tpu.memory_space<vmem>>, vector<40x128xbf16>
    %c0_2 = arith.constant 0 : index
    %c0_3 = arith.constant 0 : index
    %4 = vector.load %arg8[%c0_2, %c0_3] : memref<40x128xf32, #tpu.memory_space<vmem>>, vector<40x128xf32>
    %c0_4 = arith.constant 0 : index
    %c0_5 = arith.constant 0 : index
    %5 = vector.load %arg4[%c0_4, %c0_5] : memref<128x128xbf16, #tpu.memory_space<vmem>>, vector<128x128xbf16>
    %cst = arith.constant dense<0.000000e+00> : vector<40x128xf32>
    %6 = tpu.matmul %3, %5, %cst {dimension_numbers = #tpu.dot_dimension_numbers<[1], [0], [0], [1], [0, 0, 1, 1], [], []>} : vector<40x128xbf16>, vector<128x128xbf16>, vector<40x128xf32> -> vector<40x128xf32>
    %7 = arith.addf %4, %6 : vector<40x128xf32>
    %c0_6 = arith.constant 0 : index
    %c0_7 = arith.constant 0 : index
    %8 = vector.load %arg8[%c0_6, %c0_7] : memref<40x128xf32, #tpu.memory_space<vmem>>, vector<40x128xf32>
    tpu.vector_store %arg8[%c0_6, %c0_7], %7 {strides = array<i32>} : memref<40x128xf32, #tpu.memory_space<vmem>>, vector<40x128xf32>,
    %c0_i32_8 = arith.constant 0 : i32
    %9 = arith.cmpi eq, %arg2, %c0_i32_8 : i32
    %10 = arith.extui %9 : i1 to i32
    %c0_i32_9 = arith.constant 0 : i32
    %11 = arith.cmpi ne, %10, %c0_i32_9 : i32
    scf.if %11 {
      %c0_10 = arith.constant 0 : index
      %c0_11 = arith.constant 0 : index
      %12 = vector.load %arg8[%c0_10, %c0_11] : memref<40x128xf32, #tpu.memory_space<vmem>>, vector<40x128xf32>
      %c0_12 = arith.constant 0 : index
      %c0_13 = arith.constant 0 : index
      %13 = vector.load %arg5[%c0_12, %c0_13] : memref<1x128xf32, #tpu.memory_space<vmem>>, vector<1x128xf32>
      %14 = vector.broadcast %13 : vector<1x128xf32> to vector<40x128xf32>
      %15 = arith.addf %12, %14 : vector<40x128xf32>
      %c0_14 = arith.constant 0 : index
      %c0_15 = arith.constant 0 : index
      %16 = vector.load %arg6[%c0_14, %c0_15] : memref<40x128xbf16, #tpu.memory_space<vmem>>, vector<40x128xbf16>
      %17 = arith.extf %16 : vector<40x128xbf16> to vector<40x128xf32>
      %18 = arith.addf %15, %17 : vector<40x128xf32>
      %19 = arith.truncf %18 : vector<40x128xf32> to vector<40x128xbf16>
      %c0_16 = arith.constant 0 : index
      %c0_17 = arith.constant 0 : index
      %20 = vector.load %arg7[%c0_16, %c0_17] : memref<40x128xbf16, #tpu.memory_space<vmem>>, vector<40x128xbf16>
      tpu.vector_store %arg7[%c0_16, %c0_17], %19 {strides = array<i32>} : memref<40x128xbf16, #tpu.memory_space<vmem>>, vector<40x128xbf16>,
    } else {
    }
    return
  }
  func.func @transform_0(%arg0: i32, %arg1: i32, %arg2: i32) -> (i32, i32) {
    %c0_i32 = arith.constant 0 : i32
    return %arg0, %arg2 : i32, i32
  }
  func.func @transform_1(%arg0: i32, %arg1: i32, %arg2: i32) -> (i32, i32) {
    %c0_i32 = arith.constant 0 : i32
    return %arg2, %arg1 : i32, i32
  }
  func.func @transform_2(%arg0: i32, %arg1: i32, %arg2: i32) -> (i32, i32) {
    %c0_i32 = arith.constant 0 : i32
    %c0_i32_0 = arith.constant 0 : i32
    return %c0_i32, %arg1 : i32, i32
  }
  func.func @transform_3(%arg0: i32, %arg1: i32, %arg2: i32) -> (i32, i32) {
    %c0_i32 = arith.constant 0 : i32
    return %arg0, %arg1 : i32, i32
  }
  func.func @transform_4(%arg0: i32, %arg1: i32, %arg2: i32) -> (i32, i32) {
    %c0_i32 = arith.constant 0 : i32
    return %arg0, %arg1 : i32, i32
  }
}

module attributes {stable_mosaic.version = 11 : i64} {
  func.func @_fused_linear_kernel(%arg0: i32, %arg1: i32, %arg2: i32, %arg3: memref<40x128xbf16, #tpu.memory_space<vmem>>, %arg4: memref<128x128xbf16, #tpu.memory_space<vmem>>, %arg5: memref<1x128xf32, #tpu.memory_space<vmem>>, %arg6: memref<1x128xf32, #tpu.memory_space<vmem>>, %arg7: memref<1x128xf32, #tpu.memory_space<vmem>>, %arg8: memref<40x128xbf16, #tpu.memory_space<vmem>>, %arg9: memref<40x128xf32, #tpu.memory_space<vmem>>) attributes {dimension_semantics = [#tpu.dimension_semantics<parallel>, #tpu.dimension_semantics<parallel>, #tpu.dimension_semantics<arbitrary>], iteration_bounds = array<i64: 1, 1, 1>, scalar_prefetch = 0 : i64, scratch_operands = 1 : i64, tpu.core_type = #tpu.core_type<tc>, window_params = [{transform_indices = @transform_0, window_bounds = array<i64: 40, 128>}, {transform_indices = @transform_1, window_bounds = array<i64: 128, 128>}, {transform_indices = @transform_2, window_bounds = array<i64: 1, 128>}, {transform_indices = @transform_3, window_bounds = array<i64: 1, 128>}, {transform_indices = @transform_4, window_bounds = array<i64: 1, 128>}, {transform_indices = @transform_5, window_bounds = array<i64: 40, 128>}]} {
    %c0_i32 = arith.constant 0 : i32
    %0 = arith.cmpi eq, %arg2, %c0_i32 : i32
    %1 = arith.extui %0 : i1 to i32
    %c0_i32_0 = arith.constant 0 : i32
    %2 = arith.cmpi ne, %1, %c0_i32_0 : i32
    scf.if %2 {
      %cst_19 = arith.constant 0.000000e+00 : f32
      %38 = vector.broadcast %cst_19 : f32 to vector<40x128xf32>
      %c0_20 = arith.constant 0 : index
      %c0_21 = arith.constant 0 : index
      %39 = vector.load %arg9[%c0_20, %c0_21] : memref<40x128xf32, #tpu.memory_space<vmem>>, vector<40x128xf32>
      tpu.vector_store %arg9[%c0_20, %c0_21], %38 {strides = array<i32>} : memref<40x128xf32, #tpu.memory_space<vmem>>, vector<40x128xf32>,
    } else {
    }
    %c0 = arith.constant 0 : index
    %c0_1 = arith.constant 0 : index
    %3 = vector.load %arg3[%c0, %c0_1] : memref<40x128xbf16, #tpu.memory_space<vmem>>, vector<40x128xbf16>
    %4 = arith.extf %3 : vector<40x128xbf16> to vector<40x128xf32>
    %cst = arith.constant dense<0.000000e+00> : vector<40xf32>
    %5 = vector.multi_reduction <add>, %4, %cst [1] : vector<40x128xf32> to vector<40xf32>
    %6 = vector.shape_cast %5 : vector<40xf32> to vector<40x1xf32>
    %cst_2 = arith.constant 3.125000e-02 : f32
    %7 = vector.broadcast %cst_2 : f32 to vector<40x1xf32>
    %8 = arith.mulf %6, %7 : vector<40x1xf32>
    %9 = arith.mulf %4, %4 : vector<40x128xf32>
    %cst_3 = arith.constant dense<0.000000e+00> : vector<40xf32>
    %10 = vector.multi_reduction <add>, %9, %cst_3 [1] : vector<40x128xf32> to vector<40xf32>
    %11 = vector.shape_cast %10 : vector<40xf32> to vector<40x1xf32>
    %cst_4 = arith.constant 3.125000e-02 : f32
    %12 = vector.broadcast %cst_4 : f32 to vector<40x1xf32>
    %13 = arith.mulf %11, %12 : vector<40x1xf32>
    %14 = arith.mulf %8, %8 : vector<40x1xf32>
    %15 = arith.subf %13, %14 : vector<40x1xf32>
    %16 = vector.broadcast %8 : vector<40x1xf32> to vector<40x128xf32>
    %17 = arith.subf %4, %16 : vector<40x128xf32>
    %cst_5 = arith.constant 9.99999997E-7 : f32
    %18 = vector.broadcast %cst_5 : f32 to vector<40x1xf32>
    %19 = arith.addf %15, %18 : vector<40x1xf32>
    %20 = math.rsqrt %19 : vector<40x1xf32>
    %21 = vector.broadcast %20 : vector<40x1xf32> to vector<40x128xf32>
    %22 = arith.mulf %17, %21 : vector<40x128xf32>
    %c0_6 = arith.constant 0 : index
    %c0_7 = arith.constant 0 : index
    %23 = vector.load %arg6[%c0_6, %c0_7] : memref<1x128xf32, #tpu.memory_space<vmem>>, vector<1x128xf32>
    %24 = vector.broadcast %23 : vector<1x128xf32> to vector<40x128xf32>
    %25 = arith.mulf %22, %24 : vector<40x128xf32>
    %c0_8 = arith.constant 0 : index
    %c0_9 = arith.constant 0 : index
    %26 = vector.load %arg7[%c0_8, %c0_9] : memref<1x128xf32, #tpu.memory_space<vmem>>, vector<1x128xf32>
    %27 = vector.broadcast %26 : vector<1x128xf32> to vector<40x128xf32>
    %28 = arith.addf %25, %27 : vector<40x128xf32>
    %29 = arith.truncf %28 : vector<40x128xf32> to vector<40x128xbf16>
    %c0_10 = arith.constant 0 : index
    %c0_11 = arith.constant 0 : index
    %30 = vector.load %arg9[%c0_10, %c0_11] : memref<40x128xf32, #tpu.memory_space<vmem>>, vector<40x128xf32>
    %c0_12 = arith.constant 0 : index
    %c0_13 = arith.constant 0 : index
    %31 = vector.load %arg4[%c0_12, %c0_13] : memref<128x128xbf16, #tpu.memory_space<vmem>>, vector<128x128xbf16>
    %cst_14 = arith.constant dense<0.000000e+00> : vector<40x128xf32>
    %32 = tpu.matmul %29, %31, %cst_14 {dimension_numbers = #tpu.dot_dimension_numbers<[1], [0], [0], [1], [0, 0, 1, 1], [], []>} : vector<40x128xbf16>, vector<128x128xbf16>, vector<40x128xf32> -> vector<40x128xf32>
    %33 = arith.addf %30, %32 : vector<40x128xf32>
    %c0_15 = arith.constant 0 : index
    %c0_16 = arith.constant 0 : index
    %34 = vector.load %arg9[%c0_15, %c0_16] : memref<40x128xf32, #tpu.memory_space<vmem>>, vector<40x128xf32>
    tpu.vector_store %arg9[%c0_15, %c0_16], %33 {strides = array<i32>} : memref<40x128xf32, #tpu.memory_space<vmem>>, vector<40x128xf32>,
    %c0_i32_17 = arith.constant 0 : i32
    %35 = arith.cmpi eq, %arg2, %c0_i32_17 : i32
    %36 = arith.extui %35 : i1 to i32
    %c0_i32_18 = arith.constant 0 : i32
    %37 = arith.cmpi ne, %36, %c0_i32_18 : i32
    scf.if %37 {
      %c0_19 = arith.constant 0 : index
      %c0_20 = arith.constant 0 : index
      %38 = vector.load %arg9[%c0_19, %c0_20] : memref<40x128xf32, #tpu.memory_space<vmem>>, vector<40x128xf32>
      %c0_21 = arith.constant 0 : index
      %c0_22 = arith.constant 0 : index
      %39 = vector.load %arg5[%c0_21, %c0_22] : memref<1x128xf32, #tpu.memory_space<vmem>>, vector<1x128xf32>
      %40 = vector.broadcast %39 : vector<1x128xf32> to vector<40x128xf32>
      %41 = arith.addf %38, %40 : vector<40x128xf32>
      %42 = arith.truncf %41 : vector<40x128xf32> to vector<40x128xbf16>
      %c0_23 = arith.constant 0 : index
      %c0_24 = arith.constant 0 : index
      %43 = vector.load %arg8[%c0_23, %c0_24] : memref<40x128xbf16, #tpu.memory_space<vmem>>, vector<40x128xbf16>
      tpu.vector_store %arg8[%c0_23, %c0_24], %42 {strides = array<i32>} : memref<40x128xbf16, #tpu.memory_space<vmem>>, vector<40x128xbf16>,
    } else {
    }
    return
  }
  func.func @transform_0(%arg0: i32, %arg1: i32, %arg2: i32) -> (i32, i32) {
    %c0_i32 = arith.constant 0 : i32
    return %arg0, %arg2 : i32, i32
  }
  func.func @transform_1(%arg0: i32, %arg1: i32, %arg2: i32) -> (i32, i32) {
    %c0_i32 = arith.constant 0 : i32
    return %arg2, %arg1 : i32, i32
  }
  func.func @transform_2(%arg0: i32, %arg1: i32, %arg2: i32) -> (i32, i32) {
    %c0_i32 = arith.constant 0 : i32
    %c0_i32_0 = arith.constant 0 : i32
    return %c0_i32, %arg1 : i32, i32
  }
  func.func @transform_3(%arg0: i32, %arg1: i32, %arg2: i32) -> (i32, i32) {
    %c0_i32 = arith.constant 0 : i32
    %c0_i32_0 = arith.constant 0 : i32
    return %c0_i32, %arg2 : i32, i32
  }
  func.func @transform_4(%arg0: i32, %arg1: i32, %arg2: i32) -> (i32, i32) {
    %c0_i32 = arith.constant 0 : i32
    %c0_i32_0 = arith.constant 0 : i32
    return %c0_i32, %arg2 : i32, i32
  }
  func.func @transform_5(%arg0: i32, %arg1: i32, %arg2: i32) -> (i32, i32) {
    %c0_i32 = arith.constant 0 : i32
    return %arg0, %arg1 : i32, i32
  }
}

module attributes {stable_mosaic.version = 11 : i64} {
  func.func @_attention_kernel(%arg0: i32, %arg1: memref<1x17x96xbf16, #tpu.memory_space<vmem>>, %arg2: memref<1x17x32xbf16, #tpu.memory_space<vmem>>) attributes {dimension_semantics = [#tpu.dimension_semantics<parallel>], iteration_bounds = array<i64: 2>, scalar_prefetch = 0 : i64, scratch_operands = 0 : i64, tpu.core_type = #tpu.core_type<tc>, window_params = [{transform_indices = @transform_0, window_bounds = array<i64: 1, 17, 96>}, {transform_indices = @transform_1, window_bounds = array<i64: 1, 17, 32>}]} {
    %c0 = arith.constant 0 : index
    %c0_0 = arith.constant 0 : index
    %c0_1 = arith.constant 0 : index
    %0 = vector.load %arg1[%c0, %c0_0, %c0_1] : memref<1x17x96xbf16, #tpu.memory_space<vmem>>, vector<1x17x96xbf16>
    %1 = vector.shape_cast %0 : vector<1x17x96xbf16> to vector<17x96xbf16>
    %2 = vector.extract_strided_slice %1 {offsets = [0, 0], sizes = [17, 8], strides = [1, 1]} : vector<17x96xbf16> to vector<17x8xbf16>
    %3 = vector.extract_strided_slice %1 {offsets = [0, 32], sizes = [17, 8], strides = [1, 1]} : vector<17x96xbf16> to vector<17x8xbf16>
    %4 = vector.extract_strided_slice %1 {offsets = [0, 64], sizes = [17, 8], strides = [1, 1]} : vector<17x96xbf16> to vector<17x8xbf16>
    %cst = arith.constant dense<0.000000e+00> : vector<17x17xf32>
    %5 = tpu.matmul %2, %3, %cst {dimension_numbers = #tpu.dot_dimension_numbers<[1], [1], [0], [0], [0, 0, 1, 0], [], []>} : vector<17x8xbf16>, vector<17x8xbf16>, vector<17x17xf32> -> vector<17x17xf32>
    %cst_2 = arith.constant 0.353553385 : f32
    %6 = vector.broadcast %cst_2 : f32 to vector<17x17xf32>
    %7 = arith.mulf %5, %6 : vector<17x17xf32>
    %cst_3 = arith.constant dense<0xFF800000> : vector<17xf32>
    %8 = vector.multi_reduction <maximumf>, %7, %cst_3 [1] : vector<17x17xf32> to vector<17xf32>
    %9 = vector.shape_cast %8 : vector<17xf32> to vector<17x1xf32>
    %10 = vector.broadcast %9 : vector<17x1xf32> to vector<17x17xf32>
    %11 = arith.subf %7, %10 : vector<17x17xf32>
    %12 = math.exp %11 : vector<17x17xf32>
    %cst_4 = arith.constant dense<0.000000e+00> : vector<17xf32>
    %13 = vector.multi_reduction <add>, %12, %cst_4 [1] : vector<17x17xf32> to vector<17xf32>
    %14 = vector.shape_cast %13 : vector<17xf32> to vector<17x1xf32>
    %15 = tpu.reciprocal %14 {approx = true} : vector<17x1xf32> -> vector<17x1xf32>
    %16 = vector.broadcast %15 : vector<17x1xf32> to vector<17x17xf32>
    %17 = arith.mulf %12, %16 : vector<17x17xf32>
    %18 = arith.truncf %17 : vector<17x17xf32> to vector<17x17xbf16>
    %cst_5 = arith.constant dense<0.000000e+00> : vector<17x8xf32>
    %19 = tpu.matmul %18, %4, %cst_5 {dimension_numbers = #tpu.dot_dimension_numbers<[1], [0], [0], [1], [0, 0, 1, 1], [], []>} : vector<17x17xbf16>, vector<17x8xbf16>, vector<17x8xf32> -> vector<17x8xf32>
    %20 = vector.extract_strided_slice %1 {offsets = [0, 8], sizes = [17, 8], strides = [1, 1]} : vector<17x96xbf16> to vector<17x8xbf16>
    %21 = vector.extract_strided_slice %1 {offsets = [0, 40], sizes = [17, 8], strides = [1, 1]} : vector<17x96xbf16> to vector<17x8xbf16>
    %22 = vector.extract_strided_slice %1 {offsets = [0, 72], sizes = [17, 8], strides = [1, 1]} : vector<17x96xbf16> to vector<17x8xbf16>
    %cst_6 = arith.constant dense<0.000000e+00> : vector<17x17xf32>
    %23 = tpu.matmul %20, %21, %cst_6 {dimension_numbers = #tpu.dot_dimension_numbers<[1], [1], [0], [0], [0, 0, 1, 0], [], []>} : vector<17x8xbf16>, vector<17x8xbf16>, vector<17x17xf32> -> vector<17x17xf32>
    %cst_7 = arith.constant 0.353553385 : f32
    %24 = vector.broadcast %cst_7 : f32 to vector<17x17xf32>
    %25 = arith.mulf %23, %24 : vector<17x17xf32>
    %cst_8 = arith.constant dense<0xFF800000> : vector<17xf32>
    %26 = vector.multi_reduction <maximumf>, %25, %cst_8 [1] : vector<17x17xf32> to vector<17xf32>
    %27 = vector.shape_cast %26 : vector<17xf32> to vector<17x1xf32>
    %28 = vector.broadcast %27 : vector<17x1xf32> to vector<17x17xf32>
    %29 = arith.subf %25, %28 : vector<17x17xf32>
    %30 = math.exp %29 : vector<17x17xf32>
    %cst_9 = arith.constant dense<0.000000e+00> : vector<17xf32>
    %31 = vector.multi_reduction <add>, %30, %cst_9 [1] : vector<17x17xf32> to vector<17xf32>
    %32 = vector.shape_cast %31 : vector<17xf32> to vector<17x1xf32>
    %33 = tpu.reciprocal %32 {approx = true} : vector<17x1xf32> -> vector<17x1xf32>
    %34 = vector.broadcast %33 : vector<17x1xf32> to vector<17x17xf32>
    %35 = arith.mulf %30, %34 : vector<17x17xf32>
    %36 = arith.truncf %35 : vector<17x17xf32> to vector<17x17xbf16>
    %cst_10 = arith.constant dense<0.000000e+00> : vector<17x8xf32>
    %37 = tpu.matmul %36, %22, %cst_10 {dimension_numbers = #tpu.dot_dimension_numbers<[1], [0], [0], [1], [0, 0, 1, 1], [], []>} : vector<17x17xbf16>, vector<17x8xbf16>, vector<17x8xf32> -> vector<17x8xf32>
    %38 = vector.extract_strided_slice %1 {offsets = [0, 16], sizes = [17, 8], strides = [1, 1]} : vector<17x96xbf16> to vector<17x8xbf16>
    %39 = vector.extract_strided_slice %1 {offsets = [0, 48], sizes = [17, 8], strides = [1, 1]} : vector<17x96xbf16> to vector<17x8xbf16>
    %40 = vector.extract_strided_slice %1 {offsets = [0, 80], sizes = [17, 8], strides = [1, 1]} : vector<17x96xbf16> to vector<17x8xbf16>
    %cst_11 = arith.constant dense<0.000000e+00> : vector<17x17xf32>
    %41 = tpu.matmul %38, %39, %cst_11 {dimension_numbers = #tpu.dot_dimension_numbers<[1], [1], [0], [0], [0, 0, 1, 0], [], []>} : vector<17x8xbf16>, vector<17x8xbf16>, vector<17x17xf32> -> vector<17x17xf32>
    %cst_12 = arith.constant 0.353553385 : f32
    %42 = vector.broadcast %cst_12 : f32 to vector<17x17xf32>
    %43 = arith.mulf %41, %42 : vector<17x17xf32>
    %cst_13 = arith.constant dense<0xFF800000> : vector<17xf32>
    %44 = vector.multi_reduction <maximumf>, %43, %cst_13 [1] : vector<17x17xf32> to vector<17xf32>
    %45 = vector.shape_cast %44 : vector<17xf32> to vector<17x1xf32>
    %46 = vector.broadcast %45 : vector<17x1xf32> to vector<17x17xf32>
    %47 = arith.subf %43, %46 : vector<17x17xf32>
    %48 = math.exp %47 : vector<17x17xf32>
    %cst_14 = arith.constant dense<0.000000e+00> : vector<17xf32>
    %49 = vector.multi_reduction <add>, %48, %cst_14 [1] : vector<17x17xf32> to vector<17xf32>
    %50 = vector.shape_cast %49 : vector<17xf32> to vector<17x1xf32>
    %51 = tpu.reciprocal %50 {approx = true} : vector<17x1xf32> -> vector<17x1xf32>
    %52 = vector.broadcast %51 : vector<17x1xf32> to vector<17x17xf32>
    %53 = arith.mulf %48, %52 : vector<17x17xf32>
    %54 = arith.truncf %53 : vector<17x17xf32> to vector<17x17xbf16>
    %cst_15 = arith.constant dense<0.000000e+00> : vector<17x8xf32>
    %55 = tpu.matmul %54, %40, %cst_15 {dimension_numbers = #tpu.dot_dimension_numbers<[1], [0], [0], [1], [0, 0, 1, 1], [], []>} : vector<17x17xbf16>, vector<17x8xbf16>, vector<17x8xf32> -> vector<17x8xf32>
    %56 = vector.extract_strided_slice %1 {offsets = [0, 24], sizes = [17, 8], strides = [1, 1]} : vector<17x96xbf16> to vector<17x8xbf16>
    %57 = vector.extract_strided_slice %1 {offsets = [0, 56], sizes = [17, 8], strides = [1, 1]} : vector<17x96xbf16> to vector<17x8xbf16>
    %58 = vector.extract_strided_slice %1 {offsets = [0, 88], sizes = [17, 8], strides = [1, 1]} : vector<17x96xbf16> to vector<17x8xbf16>
    %cst_16 = arith.constant dense<0.000000e+00> : vector<17x17xf32>
    %59 = tpu.matmul %56, %57, %cst_16 {dimension_numbers = #tpu.dot_dimension_numbers<[1], [1], [0], [0], [0, 0, 1, 0], [], []>} : vector<17x8xbf16>, vector<17x8xbf16>, vector<17x17xf32> -> vector<17x17xf32>
    %cst_17 = arith.constant 0.353553385 : f32
    %60 = vector.broadcast %cst_17 : f32 to vector<17x17xf32>
    %61 = arith.mulf %59, %60 : vector<17x17xf32>
    %cst_18 = arith.constant dense<0xFF800000> : vector<17xf32>
    %62 = vector.multi_reduction <maximumf>, %61, %cst_18 [1] : vector<17x17xf32> to vector<17xf32>
    %63 = vector.shape_cast %62 : vector<17xf32> to vector<17x1xf32>
    %64 = vector.broadcast %63 : vector<17x1xf32> to vector<17x17xf32>
    %65 = arith.subf %61, %64 : vector<17x17xf32>
    %66 = math.exp %65 : vector<17x17xf32>
    %cst_19 = arith.constant dense<0.000000e+00> : vector<17xf32>
    %67 = vector.multi_reduction <add>, %66, %cst_19 [1] : vector<17x17xf32> to vector<17xf32>
    %68 = vector.shape_cast %67 : vector<17xf32> to vector<17x1xf32>
    %69 = tpu.reciprocal %68 {approx = true} : vector<17x1xf32> -> vector<17x1xf32>
    %70 = vector.broadcast %69 : vector<17x1xf32> to vector<17x17xf32>
    %71 = arith.mulf %66, %70 : vector<17x17xf32>
    %72 = arith.truncf %71 : vector<17x17xf32> to vector<17x17xbf16>
    %cst_20 = arith.constant dense<0.000000e+00> : vector<17x8xf32>
    %73 = tpu.matmul %72, %58, %cst_20 {dimension_numbers = #tpu.dot_dimension_numbers<[1], [0], [0], [1], [0, 0, 1, 1], [], []>} : vector<17x17xbf16>, vector<17x8xbf16>, vector<17x8xf32> -> vector<17x8xf32>
    %74 = tpu.concatenate %19, %37, %55, %73 in 1 : vector<17x8xf32>, vector<17x8xf32>, vector<17x8xf32>, vector<17x8xf32> -> vector<17x32xf32>
    %75 = arith.truncf %74 : vector<17x32xf32> to vector<17x32xbf16>
    %c0_21 = arith.constant 0 : index
    %c0_22 = arith.constant 0 : index
    %c0_23 = arith.constant 0 : index
    %76 = vector.load %arg2[%c0_21, %c0_22, %c0_23] : memref<1x17x32xbf16, #tpu.memory_space<vmem>>, vector<1x17x32xbf16>
    %77 = vector.shape_cast %76 : vector<1x17x32xbf16> to vector<17x32xbf16>
    %78 = vector.shape_cast %75 : vector<17x32xbf16> to vector<1x17x32xbf16>
    tpu.vector_store %arg2[%c0_21, %c0_22, %c0_23], %78 {strides = array<i32>} : memref<1x17x32xbf16, #tpu.memory_space<vmem>>, vector<1x17x32xbf16>,
    return
  }
  func.func @transform_0(%arg0: i32) -> (i32, i32, i32) {
    %c0_i32 = arith.constant 0 : i32
    %c0_i32_0 = arith.constant 0 : i32
    %c0_i32_1 = arith.constant 0 : i32
    return %arg0, %c0_i32, %c0_i32_0 : i32, i32, i32
  }
  func.func @transform_1(%arg0: i32) -> (i32, i32, i32) {
    %c0_i32 = arith.constant 0 : i32
    %c0_i32_0 = arith.constant 0 : i32
    %c0_i32_1 = arith.constant 0 : i32
    return %arg0, %c0_i32, %c0_i32_0 : i32, i32, i32
  }
}

module attributes {stable_mosaic.version = 11 : i64} {
  func.func @_fused_linear_kernel(%arg0: i32, %arg1: i32, %arg2: i32, %arg3: memref<40x128xbf16, #tpu.memory_space<vmem>>, %arg4: memref<128x128xbf16, #tpu.memory_space<vmem>>, %arg5: memref<1x128xf32, #tpu.memory_space<vmem>>, %arg6: memref<1x128xf32, #tpu.memory_space<vmem>>, %arg7: memref<1x128xf32, #tpu.memory_space<vmem>>, %arg8: memref<40x128xbf16, #tpu.memory_space<vmem>>, %arg9: memref<40x128xf32, #tpu.memory_space<vmem>>) attributes {dimension_semantics = [#tpu.dimension_semantics<parallel>, #tpu.dimension_semantics<parallel>, #tpu.dimension_semantics<arbitrary>], iteration_bounds = array<i64: 1, 1, 1>, scalar_prefetch = 0 : i64, scratch_operands = 1 : i64, tpu.core_type = #tpu.core_type<tc>, window_params = [{transform_indices = @transform_0, window_bounds = array<i64: 40, 128>}, {transform_indices = @transform_1, window_bounds = array<i64: 128, 128>}, {transform_indices = @transform_2, window_bounds = array<i64: 1, 128>}, {transform_indices = @transform_3, window_bounds = array<i64: 1, 128>}, {transform_indices = @transform_4, window_bounds = array<i64: 1, 128>}, {transform_indices = @transform_5, window_bounds = array<i64: 40, 128>}]} {
    %c0_i32 = arith.constant 0 : i32
    %0 = arith.cmpi eq, %arg2, %c0_i32 : i32
    %1 = arith.extui %0 : i1 to i32
    %c0_i32_0 = arith.constant 0 : i32
    %2 = arith.cmpi ne, %1, %c0_i32_0 : i32
    scf.if %2 {
      %cst_19 = arith.constant 0.000000e+00 : f32
      %38 = vector.broadcast %cst_19 : f32 to vector<40x128xf32>
      %c0_20 = arith.constant 0 : index
      %c0_21 = arith.constant 0 : index
      %39 = vector.load %arg9[%c0_20, %c0_21] : memref<40x128xf32, #tpu.memory_space<vmem>>, vector<40x128xf32>
      tpu.vector_store %arg9[%c0_20, %c0_21], %38 {strides = array<i32>} : memref<40x128xf32, #tpu.memory_space<vmem>>, vector<40x128xf32>,
    } else {
    }
    %c0 = arith.constant 0 : index
    %c0_1 = arith.constant 0 : index
    %3 = vector.load %arg3[%c0, %c0_1] : memref<40x128xbf16, #tpu.memory_space<vmem>>, vector<40x128xbf16>
    %4 = arith.extf %3 : vector<40x128xbf16> to vector<40x128xf32>
    %cst = arith.constant dense<0.000000e+00> : vector<40xf32>
    %5 = vector.multi_reduction <add>, %4, %cst [1] : vector<40x128xf32> to vector<40xf32>
    %6 = vector.shape_cast %5 : vector<40xf32> to vector<40x1xf32>
    %cst_2 = arith.constant 3.125000e-02 : f32
    %7 = vector.broadcast %cst_2 : f32 to vector<40x1xf32>
    %8 = arith.mulf %6, %7 : vector<40x1xf32>
    %9 = arith.mulf %4, %4 : vector<40x128xf32>
    %cst_3 = arith.constant dense<0.000000e+00> : vector<40xf32>
    %10 = vector.multi_reduction <add>, %9, %cst_3 [1] : vector<40x128xf32> to vector<40xf32>
    %11 = vector.shape_cast %10 : vector<40xf32> to vector<40x1xf32>
    %cst_4 = arith.constant 3.125000e-02 : f32
    %12 = vector.broadcast %cst_4 : f32 to vector<40x1xf32>
    %13 = arith.mulf %11, %12 : vector<40x1xf32>
    %14 = arith.mulf %8, %8 : vector<40x1xf32>
    %15 = arith.subf %13, %14 : vector<40x1xf32>
    %16 = vector.broadcast %8 : vector<40x1xf32> to vector<40x128xf32>
    %17 = arith.subf %4, %16 : vector<40x128xf32>
    %cst_5 = arith.constant 9.99999997E-7 : f32
    %18 = vector.broadcast %cst_5 : f32 to vector<40x1xf32>
    %19 = arith.addf %15, %18 : vector<40x1xf32>
    %20 = math.rsqrt %19 : vector<40x1xf32>
    %21 = vector.broadcast %20 : vector<40x1xf32> to vector<40x128xf32>
    %22 = arith.mulf %17, %21 : vector<40x128xf32>
    %c0_6 = arith.constant 0 : index
    %c0_7 = arith.constant 0 : index
    %23 = vector.load %arg6[%c0_6, %c0_7] : memref<1x128xf32, #tpu.memory_space<vmem>>, vector<1x128xf32>
    %24 = vector.broadcast %23 : vector<1x128xf32> to vector<40x128xf32>
    %25 = arith.mulf %22, %24 : vector<40x128xf32>
    %c0_8 = arith.constant 0 : index
    %c0_9 = arith.constant 0 : index
    %26 = vector.load %arg7[%c0_8, %c0_9] : memref<1x128xf32, #tpu.memory_space<vmem>>, vector<1x128xf32>
    %27 = vector.broadcast %26 : vector<1x128xf32> to vector<40x128xf32>
    %28 = arith.addf %25, %27 : vector<40x128xf32>
    %29 = arith.truncf %28 : vector<40x128xf32> to vector<40x128xbf16>
    %c0_10 = arith.constant 0 : index
    %c0_11 = arith.constant 0 : index
    %30 = vector.load %arg9[%c0_10, %c0_11] : memref<40x128xf32, #tpu.memory_space<vmem>>, vector<40x128xf32>
    %c0_12 = arith.constant 0 : index
    %c0_13 = arith.constant 0 : index
    %31 = vector.load %arg4[%c0_12, %c0_13] : memref<128x128xbf16, #tpu.memory_space<vmem>>, vector<128x128xbf16>
    %cst_14 = arith.constant dense<0.000000e+00> : vector<40x128xf32>
    %32 = tpu.matmul %29, %31, %cst_14 {dimension_numbers = #tpu.dot_dimension_numbers<[1], [0], [0], [1], [0, 0, 1, 1], [], []>} : vector<40x128xbf16>, vector<128x128xbf16>, vector<40x128xf32> -> vector<40x128xf32>
    %33 = arith.addf %30, %32 : vector<40x128xf32>
    %c0_15 = arith.constant 0 : index
    %c0_16 = arith.constant 0 : index
    %34 = vector.load %arg9[%c0_15, %c0_16] : memref<40x128xf32, #tpu.memory_space<vmem>>, vector<40x128xf32>
    tpu.vector_store %arg9[%c0_15, %c0_16], %33 {strides = array<i32>} : memref<40x128xf32, #tpu.memory_space<vmem>>, vector<40x128xf32>,
    %c0_i32_17 = arith.constant 0 : i32
    %35 = arith.cmpi eq, %arg2, %c0_i32_17 : i32
    %36 = arith.extui %35 : i1 to i32
    %c0_i32_18 = arith.constant 0 : i32
    %37 = arith.cmpi ne, %36, %c0_i32_18 : i32
    scf.if %37 {
      %c0_19 = arith.constant 0 : index
      %c0_20 = arith.constant 0 : index
      %38 = vector.load %arg9[%c0_19, %c0_20] : memref<40x128xf32, #tpu.memory_space<vmem>>, vector<40x128xf32>
      %c0_21 = arith.constant 0 : index
      %c0_22 = arith.constant 0 : index
      %39 = vector.load %arg5[%c0_21, %c0_22] : memref<1x128xf32, #tpu.memory_space<vmem>>, vector<1x128xf32>
      %40 = vector.broadcast %39 : vector<1x128xf32> to vector<40x128xf32>
      %41 = arith.addf %38, %40 : vector<40x128xf32>
      %cst_23 = arith.constant 5.000000e-01 : f32
      %42 = vector.broadcast %cst_23 : f32 to vector<40x128xf32>
      %43 = arith.mulf %42, %41 : vector<40x128xf32>
      %cst_24 = arith.constant 4.471500e-02 : f32
      %44 = vector.broadcast %cst_24 : f32 to vector<40x128xf32>
      %45 = arith.mulf %44, %41 : vector<40x128xf32>
      %46 = arith.mulf %45, %41 : vector<40x128xf32>
      %47 = arith.mulf %46, %41 : vector<40x128xf32>
      %48 = arith.addf %41, %47 : vector<40x128xf32>
      %cst_25 = arith.constant 0.797884583 : f32
      %49 = vector.broadcast %cst_25 : f32 to vector<40x128xf32>
      %50 = arith.mulf %49, %48 : vector<40x128xf32>
      %51 = math.tanh %50 : vector<40x128xf32>
      %cst_26 = arith.constant 1.000000e+00 : f32
      %52 = vector.broadcast %cst_26 : f32 to vector<40x128xf32>
      %53 = arith.addf %52, %51 : vector<40x128xf32>
      %54 = arith.mulf %43, %53 : vector<40x128xf32>
      %55 = arith.truncf %54 : vector<40x128xf32> to vector<40x128xbf16>
      %c0_27 = arith.constant 0 : index
      %c0_28 = arith.constant 0 : index
      %56 = vector.load %arg8[%c0_27, %c0_28] : memref<40x128xbf16, #tpu.memory_space<vmem>>, vector<40x128xbf16>
      tpu.vector_store %arg8[%c0_27, %c0_28], %55 {strides = array<i32>} : memref<40x128xbf16, #tpu.memory_space<vmem>>, vector<40x128xbf16>,
    } else {
    }
    return
  }
  func.func @transform_0(%arg0: i32, %arg1: i32, %arg2: i32) -> (i32, i32) {
    %c0_i32 = arith.constant 0 : i32
    return %arg0, %arg2 : i32, i32
  }
  func.func @transform_1(%arg0: i32, %arg1: i32, %arg2: i32) -> (i32, i32) {
    %c0_i32 = arith.constant 0 : i32
    return %arg2, %arg1 : i32, i32
  }
  func.func @transform_2(%arg0: i32, %arg1: i32, %arg2: i32) -> (i32, i32) {
    %c0_i32 = arith.constant 0 : i32
    %c0_i32_0 = arith.constant 0 : i32
    return %c0_i32, %arg1 : i32, i32
  }
  func.func @transform_3(%arg0: i32, %arg1: i32, %arg2: i32) -> (i32, i32) {
    %c0_i32 = arith.constant 0 : i32
    %c0_i32_0 = arith.constant 0 : i32
    return %c0_i32, %arg2 : i32, i32
  }
  func.func @transform_4(%arg0: i32, %arg1: i32, %arg2: i32) -> (i32, i32) {
    %c0_i32 = arith.constant 0 : i32
    %c0_i32_0 = arith.constant 0 : i32
    return %c0_i32, %arg2 : i32, i32
  }
  func.func @transform_5(%arg0: i32, %arg1: i32, %arg2: i32) -> (i32, i32) {
    %c0_i32 = arith.constant 0 : i32
    return %arg0, %arg1 : i32, i32
  }
}

module attributes {stable_mosaic.version = 11 : i64} {
  func.func @_fused_linear_kernel(%arg0: i32, %arg1: i32, %arg2: i32, %arg3: memref<40x128xbf16, #tpu.memory_space<vmem>>, %arg4: memref<128x128xbf16, #tpu.memory_space<vmem>>, %arg5: memref<1x128xf32, #tpu.memory_space<vmem>>, %arg6: memref<1x128xf32, #tpu.memory_space<vmem>>, %arg7: memref<1x128xf32, #tpu.memory_space<vmem>>, %arg8: memref<40x128xf32, #tpu.memory_space<vmem>>, %arg9: memref<40x128xf32, #tpu.memory_space<vmem>>) attributes {dimension_semantics = [#tpu.dimension_semantics<parallel>, #tpu.dimension_semantics<parallel>, #tpu.dimension_semantics<arbitrary>], iteration_bounds = array<i64: 1, 1, 1>, scalar_prefetch = 0 : i64, scratch_operands = 1 : i64, tpu.core_type = #tpu.core_type<tc>, window_params = [{transform_indices = @transform_0, window_bounds = array<i64: 40, 128>}, {transform_indices = @transform_1, window_bounds = array<i64: 128, 128>}, {transform_indices = @transform_2, window_bounds = array<i64: 1, 128>}, {transform_indices = @transform_3, window_bounds = array<i64: 1, 128>}, {transform_indices = @transform_4, window_bounds = array<i64: 1, 128>}, {transform_indices = @transform_5, window_bounds = array<i64: 40, 128>}]} {
    %c0_i32 = arith.constant 0 : i32
    %0 = arith.cmpi eq, %arg2, %c0_i32 : i32
    %1 = arith.extui %0 : i1 to i32
    %c0_i32_0 = arith.constant 0 : i32
    %2 = arith.cmpi ne, %1, %c0_i32_0 : i32
    scf.if %2 {
      %cst_19 = arith.constant 0.000000e+00 : f32
      %38 = vector.broadcast %cst_19 : f32 to vector<40x128xf32>
      %c0_20 = arith.constant 0 : index
      %c0_21 = arith.constant 0 : index
      %39 = vector.load %arg9[%c0_20, %c0_21] : memref<40x128xf32, #tpu.memory_space<vmem>>, vector<40x128xf32>
      tpu.vector_store %arg9[%c0_20, %c0_21], %38 {strides = array<i32>} : memref<40x128xf32, #tpu.memory_space<vmem>>, vector<40x128xf32>,
    } else {
    }
    %c0 = arith.constant 0 : index
    %c0_1 = arith.constant 0 : index
    %3 = vector.load %arg3[%c0, %c0_1] : memref<40x128xbf16, #tpu.memory_space<vmem>>, vector<40x128xbf16>
    %4 = arith.extf %3 : vector<40x128xbf16> to vector<40x128xf32>
    %cst = arith.constant dense<0.000000e+00> : vector<40xf32>
    %5 = vector.multi_reduction <add>, %4, %cst [1] : vector<40x128xf32> to vector<40xf32>
    %6 = vector.shape_cast %5 : vector<40xf32> to vector<40x1xf32>
    %cst_2 = arith.constant 3.125000e-02 : f32
    %7 = vector.broadcast %cst_2 : f32 to vector<40x1xf32>
    %8 = arith.mulf %6, %7 : vector<40x1xf32>
    %9 = arith.mulf %4, %4 : vector<40x128xf32>
    %cst_3 = arith.constant dense<0.000000e+00> : vector<40xf32>
    %10 = vector.multi_reduction <add>, %9, %cst_3 [1] : vector<40x128xf32> to vector<40xf32>
    %11 = vector.shape_cast %10 : vector<40xf32> to vector<40x1xf32>
    %cst_4 = arith.constant 3.125000e-02 : f32
    %12 = vector.broadcast %cst_4 : f32 to vector<40x1xf32>
    %13 = arith.mulf %11, %12 : vector<40x1xf32>
    %14 = arith.mulf %8, %8 : vector<40x1xf32>
    %15 = arith.subf %13, %14 : vector<40x1xf32>
    %16 = vector.broadcast %8 : vector<40x1xf32> to vector<40x128xf32>
    %17 = arith.subf %4, %16 : vector<40x128xf32>
    %cst_5 = arith.constant 9.99999997E-7 : f32
    %18 = vector.broadcast %cst_5 : f32 to vector<40x1xf32>
    %19 = arith.addf %15, %18 : vector<40x1xf32>
    %20 = math.rsqrt %19 : vector<40x1xf32>
    %21 = vector.broadcast %20 : vector<40x1xf32> to vector<40x128xf32>
    %22 = arith.mulf %17, %21 : vector<40x128xf32>
    %c0_6 = arith.constant 0 : index
    %c0_7 = arith.constant 0 : index
    %23 = vector.load %arg6[%c0_6, %c0_7] : memref<1x128xf32, #tpu.memory_space<vmem>>, vector<1x128xf32>
    %24 = vector.broadcast %23 : vector<1x128xf32> to vector<40x128xf32>
    %25 = arith.mulf %22, %24 : vector<40x128xf32>
    %c0_8 = arith.constant 0 : index
    %c0_9 = arith.constant 0 : index
    %26 = vector.load %arg7[%c0_8, %c0_9] : memref<1x128xf32, #tpu.memory_space<vmem>>, vector<1x128xf32>
    %27 = vector.broadcast %26 : vector<1x128xf32> to vector<40x128xf32>
    %28 = arith.addf %25, %27 : vector<40x128xf32>
    %29 = arith.truncf %28 : vector<40x128xf32> to vector<40x128xbf16>
    %c0_10 = arith.constant 0 : index
    %c0_11 = arith.constant 0 : index
    %30 = vector.load %arg9[%c0_10, %c0_11] : memref<40x128xf32, #tpu.memory_space<vmem>>, vector<40x128xf32>
    %c0_12 = arith.constant 0 : index
    %c0_13 = arith.constant 0 : index
    %31 = vector.load %arg4[%c0_12, %c0_13] : memref<128x128xbf16, #tpu.memory_space<vmem>>, vector<128x128xbf16>
    %cst_14 = arith.constant dense<0.000000e+00> : vector<40x128xf32>
    %32 = tpu.matmul %29, %31, %cst_14 {dimension_numbers = #tpu.dot_dimension_numbers<[1], [0], [0], [1], [0, 0, 1, 1], [], []>} : vector<40x128xbf16>, vector<128x128xbf16>, vector<40x128xf32> -> vector<40x128xf32>
    %33 = arith.addf %30, %32 : vector<40x128xf32>
    %c0_15 = arith.constant 0 : index
    %c0_16 = arith.constant 0 : index
    %34 = vector.load %arg9[%c0_15, %c0_16] : memref<40x128xf32, #tpu.memory_space<vmem>>, vector<40x128xf32>
    tpu.vector_store %arg9[%c0_15, %c0_16], %33 {strides = array<i32>} : memref<40x128xf32, #tpu.memory_space<vmem>>, vector<40x128xf32>,
    %c0_i32_17 = arith.constant 0 : i32
    %35 = arith.cmpi eq, %arg2, %c0_i32_17 : i32
    %36 = arith.extui %35 : i1 to i32
    %c0_i32_18 = arith.constant 0 : i32
    %37 = arith.cmpi ne, %36, %c0_i32_18 : i32
    scf.if %37 {
      %c0_19 = arith.constant 0 : index
      %c0_20 = arith.constant 0 : index
      %38 = vector.load %arg9[%c0_19, %c0_20] : memref<40x128xf32, #tpu.memory_space<vmem>>, vector<40x128xf32>
      %c0_21 = arith.constant 0 : index
      %c0_22 = arith.constant 0 : index
      %39 = vector.load %arg5[%c0_21, %c0_22] : memref<1x128xf32, #tpu.memory_space<vmem>>, vector<1x128xf32>
      %40 = vector.broadcast %39 : vector<1x128xf32> to vector<40x128xf32>
      %41 = arith.addf %38, %40 : vector<40x128xf32>
      %c0_23 = arith.constant 0 : index
      %c0_24 = arith.constant 0 : index
      %42 = vector.load %arg8[%c0_23, %c0_24] : memref<40x128xf32, #tpu.memory_space<vmem>>, vector<40x128xf32>
      tpu.vector_store %arg8[%c0_23, %c0_24], %41 {strides = array<i32>} : memref<40x128xf32, #tpu.memory_space<vmem>>, vector<40x128xf32>,
    } else {
    }
    return
  }
  func.func @transform_0(%arg0: i32, %arg1: i32, %arg2: i32) -> (i32, i32) {
    %c0_i32 = arith.constant 0 : i32
    return %arg0, %arg2 : i32, i32
  }
  func.func @transform_1(%arg0: i32, %arg1: i32, %arg2: i32) -> (i32, i32) {
    %c0_i32 = arith.constant 0 : i32
    return %arg2, %arg1 : i32, i32
  }
  func.func @transform_2(%arg0: i32, %arg1: i32, %arg2: i32) -> (i32, i32) {
    %c0_i32 = arith.constant 0 : i32
    %c0_i32_0 = arith.constant 0 : i32
    return %c0_i32, %arg1 : i32, i32
  }
  func.func @transform_3(%arg0: i32, %arg1: i32, %arg2: i32) -> (i32, i32) {
    %c0_i32 = arith.constant 0 : i32
    %c0_i32_0 = arith.constant 0 : i32
    return %c0_i32, %arg2 : i32, i32
  }
  func.func @transform_4(%arg0: i32, %arg1: i32, %arg2: i32) -> (i32, i32) {
    %c0_i32 = arith.constant 0 : i32
    %c0_i32_0 = arith.constant 0 : i32
    return %c0_i32, %arg2 : i32, i32
  }
  func.func @transform_5(%arg0: i32, %arg1: i32, %arg2: i32) -> (i32, i32) {
    %c0_i32 = arith.constant 0 : i32
    return %arg0, %arg1 : i32, i32
  }
}

module attributes {stable_mosaic.version = 11 : i64} {
  func.func @_masked_mse_kernel(%arg0: i32, %arg1: memref<32x32xf32, #tpu.memory_space<vmem>>, %arg2: memref<32x32xf32, #tpu.memory_space<vmem>>, %arg3: memref<32x1xf32, #tpu.memory_space<vmem>>, %arg4: memref<1x1xf32, #tpu.memory_space<vmem>>, %arg5: memref<1x1xf32, #tpu.memory_space<vmem>>) attributes {dimension_semantics = [#tpu.dimension_semantics<arbitrary>], iteration_bounds = array<i64: 1>, scalar_prefetch = 0 : i64, scratch_operands = 0 : i64, tpu.core_type = #tpu.core_type<tc>, window_params = [{transform_indices = @transform_0, window_bounds = array<i64: 32, 32>}, {transform_indices = @transform_1, window_bounds = array<i64: 32, 32>}, {transform_indices = @transform_2, window_bounds = array<i64: 32, 1>}, {pipeline_mode = #tpu.pipeline_mode<synchronous>, transform_indices = @transform_3, window_bounds = array<i64: 1, 1>}, {pipeline_mode = #tpu.pipeline_mode<synchronous>, transform_indices = @transform_4, window_bounds = array<i64: 1, 1>}]} {
    %c0_i32 = arith.constant 0 : i32
    %0 = arith.cmpi eq, %arg0, %c0_i32 : i32
    %1 = arith.extui %0 : i1 to i32
    %c0_i32_0 = arith.constant 0 : i32
    %2 = arith.cmpi ne, %1, %c0_i32_0 : i32
    scf.if %2 {
      %cst_17 = arith.constant 0.000000e+00 : f32
      %23 = vector.broadcast %cst_17 : f32 to vector<1x1xf32>
      %c0_18 = arith.constant 0 : index
      %c0_19 = arith.constant 0 : index
      %24 = vector.load %arg4[%c0_18, %c0_19] : memref<1x1xf32, #tpu.memory_space<vmem>>, vector<1x1xf32>
      tpu.vector_store %arg4[%c0_18, %c0_19], %23 {strides = array<i32>} : memref<1x1xf32, #tpu.memory_space<vmem>>, vector<1x1xf32>,
      %cst_20 = arith.constant 0.000000e+00 : f32
      %25 = vector.broadcast %cst_20 : f32 to vector<1x1xf32>
      %c0_21 = arith.constant 0 : index
      %c0_22 = arith.constant 0 : index
      %26 = vector.load %arg5[%c0_21, %c0_22] : memref<1x1xf32, #tpu.memory_space<vmem>>, vector<1x1xf32>
      tpu.vector_store %arg5[%c0_21, %c0_22], %25 {strides = array<i32>} : memref<1x1xf32, #tpu.memory_space<vmem>>, vector<1x1xf32>,
    } else {
    }
    %c0 = arith.constant 0 : index
    %c0_1 = arith.constant 0 : index
    %3 = vector.load %arg1[%c0, %c0_1] : memref<32x32xf32, #tpu.memory_space<vmem>>, vector<32x32xf32>
    %c0_2 = arith.constant 0 : index
    %c0_3 = arith.constant 0 : index
    %4 = vector.load %arg2[%c0_2, %c0_3] : memref<32x32xf32, #tpu.memory_space<vmem>>, vector<32x32xf32>
    %5 = arith.subf %3, %4 : vector<32x32xf32>
    %6 = arith.mulf %5, %5 : vector<32x32xf32>
    %cst = arith.constant dense<0.000000e+00> : vector<32xf32>
    %7 = vector.multi_reduction <add>, %6, %cst [1] : vector<32x32xf32> to vector<32xf32>
    %8 = vector.shape_cast %7 : vector<32xf32> to vector<32x1xf32>
    %cst_4 = arith.constant 3.125000e-02 : f32
    %9 = vector.broadcast %cst_4 : f32 to vector<32x1xf32>
    %10 = arith.mulf %8, %9 : vector<32x1xf32>
    %c0_5 = arith.constant 0 : index
    %c0_6 = arith.constant 0 : index
    %11 = vector.load %arg3[%c0_5, %c0_6] : memref<32x1xf32, #tpu.memory_space<vmem>>, vector<32x1xf32>
    %c0_7 = arith.constant 0 : index
    %c0_8 = arith.constant 0 : index
    %12 = vector.load %arg4[%c0_7, %c0_8] : memref<1x1xf32, #tpu.memory_space<vmem>>, vector<1x1xf32>
    %13 = arith.mulf %10, %11 : vector<32x1xf32>
    %cst_9 = arith.constant dense<0.000000e+00> : vector<1xf32>
    %14 = vector.multi_reduction <add>, %13, %cst_9 [0] : vector<32x1xf32> to vector<1xf32>
    %15 = vector.shape_cast %14 : vector<1xf32> to vector<1x1xf32>
    %16 = arith.addf %12, %15 : vector<1x1xf32>
    %c0_10 = arith.constant 0 : index
    %c0_11 = arith.constant 0 : index
    %17 = vector.load %arg4[%c0_10, %c0_11] : memref<1x1xf32, #tpu.memory_space<vmem>>, vector<1x1xf32>
    tpu.vector_store %arg4[%c0_10, %c0_11], %16 {strides = array<i32>} : memref<1x1xf32, #tpu.memory_space<vmem>>, vector<1x1xf32>,
    %c0_12 = arith.constant 0 : index
    %c0_13 = arith.constant 0 : index
    %18 = vector.load %arg5[%c0_12, %c0_13] : memref<1x1xf32, #tpu.memory_space<vmem>>, vector<1x1xf32>
    %cst_14 = arith.constant dense<0.000000e+00> : vector<1xf32>
    %19 = vector.multi_reduction <add>, %11, %cst_14 [0] : vector<32x1xf32> to vector<1xf32>
    %20 = vector.shape_cast %19 : vector<1xf32> to vector<1x1xf32>
    %21 = arith.addf %18, %20 : vector<1x1xf32>
    %c0_15 = arith.constant 0 : index
    %c0_16 = arith.constant 0 : index
    %22 = vector.load %arg5[%c0_15, %c0_16] : memref<1x1xf32, #tpu.memory_space<vmem>>, vector<1x1xf32>
    tpu.vector_store %arg5[%c0_15, %c0_16], %21 {strides = array<i32>} : memref<1x1xf32, #tpu.memory_space<vmem>>, vector<1x1xf32>,
    return
  }
  func.func @transform_0(%arg0: i32) -> (i32, i32) {
    %c0_i32 = arith.constant 0 : i32
    %c0_i32_0 = arith.constant 0 : i32
    return %arg0, %c0_i32 : i32, i32
  }
  func.func @transform_1(%arg0: i32) -> (i32, i32) {
    %c0_i32 = arith.constant 0 : i32
    %c0_i32_0 = arith.constant 0 : i32
    return %arg0, %c0_i32 : i32, i32
  }
  func.func @transform_2(%arg0: i32) -> (i32, i32) {
    %c0_i32 = arith.constant 0 : i32
    %c0_i32_0 = arith.constant 0 : i32
    return %arg0, %c0_i32 : i32, i32
  }
  func.func @transform_3(%arg0: i32) -> (i32, i32) {
    %c0_i32 = arith.constant 0 : i32
    %c0_i32_0 = arith.constant 0 : i32
    %c0_i32_1 = arith.constant 0 : i32
    return %c0_i32, %c0_i32_0 : i32, i32
  }
  func.func @transform_4(%arg0: i32) -> (i32, i32) {
    %c0_i32 = arith.constant 0 : i32
    %c0_i32_0 = arith.constant 0 : i32
    %c0_i32_1 = arith.constant 0 : i32
    return %c0_i32, %c0_i32_0 : i32, i32
  }
}

</mosaic_0001>

<llo_original>
// kernel: mae_forward.16
$region0: #{mae_forward.16}
  #allocation0 [shape = 'u32[]', space=smem, size = 0x4, offset = 0x4, fixed_abs, tag = 'smem constant byte address 0x4 - core index']
  #allocation1 [shape = 'u32[144,128]{1,0:T(1,128)}', space=vmem, size = 0x12000, scoped, tag = 'internal scratch']
  %s0 = inlined_call_operand.vmem [shape: bf16[2,5,96], index: 0, kind: input, shape index: {}]
  %s1 = inlined_call_operand.vmem [shape: bf16[2,5,32], index: 1, kind: output, shape index: {}]
  %s2 = sld [smem:[#allocation0]]
  $region37: #{mae_forward.16} parent=0
    _
  %s4 = ssub.s32 1, %s2
  %s5 = scalar_select 0, %s4, %s2
  loop: start=0, step=1, limit=4
  $region2: #{mae_forward.16} parent=0 // loop_pre_header
    _
  $region3: #{mae_forward.16} parent=0 // loop_header
    %s7 = sphi 0, %s11
    %p8 = scmp.ge.s32.totalorder %s7, 4
    %s17 = sphi 0, %s19
    %s20 = sphi 0, %s17
    %s21 = sphi 0, %s20
    %s37 = sphi 0, %s21
    %s43 = sphi 0, %s45
    %s46 = sphi 0, %s43
    %s47 = sphi 0, %s46
    %s63 = sphi 0, %s47
  $region4: #{mae_forward.16} parent=0 // loop_header_branch
    %10 = sbr.rel (%p8) target = $region8
  $region5: #{mae_forward.16} parent=0 // loop_body
    %s12 = ssub.s32 %s7, 1
    %s13 = ssub.s32 %s7, 2
    %s14 = sadd.s32 %s7, 1
    %s15 = ssub.s32 %s7, %s14
    %p16 = scmp.eq.s32.totalorder %s15, 0
    %s18 = sadd.s32 %s17, 1
    %s19 = scalar_select %p16, %s17, %s18
    %p22 = pneg %p16
    %p23 = scmp.eq.s32.totalorder %s7, 1
    %p24 = por %p22, %p23
    %p25 = scmp.ne.s32.totalorder %s17, %s20
    %p26 = scmp.eq.s32.totalorder %s7, 0
    %p27 = por %p25, %p26
    %p28 = scmp.ne.s32.totalorder %s17, %s20
    %p29 = scmp.eq.s32.totalorder %s12, 1
    %p30 = por %p28, %p29
    %p31 = scmp.ne.s32.totalorder %s20, %s21
    %p32 = scmp.eq.s32.totalorder %s12, 0
    %p33 = por %p31, %p32
    %p34 = scmp.ne.s32.totalorder %s20, %s21
    %p35 = scmp.eq.s32.totalorder %s13, 1
    %p36 = por %p34, %p35
    %p38 = scmp.ne.s32.totalorder %s21, %s37
    %p39 = scmp.eq.s32.totalorder %s13, 0
    %p40 = por %p38, %p39
    %s41 = ssub.s32 %s7, %s14
    %p42 = scmp.eq.s32.totalorder %s41, 0
    %s44 = sadd.s32 %s43, 1
    %s45 = scalar_select %p42, %s43, %s44
    %p48 = pneg %p42
    %p49 = scmp.eq.s32.totalorder %s7, 1
    %p50 = por %p48, %p49
    %p51 = scmp.ne.s32.totalorder %s43, %s46
    %p52 = scmp.eq.s32.totalorder %s7, 0
    %p53 = por %p51, %p52
    %p54 = scmp.ne.s32.totalorder %s43, %s46
    %p55 = scmp.eq.s32.totalorder %s12, 1
    %p56 = por %p54, %p55
    %p57 = scmp.ne.s32.totalorder %s46, %s47
    %p58 = scmp.eq.s32.totalorder %s12, 0
    %p59 = por %p57, %p58
    %p60 = scmp.ne.s32.totalorder %s46, %s47
    %p61 = scmp.eq.s32.totalorder %s13, 1
    %p62 = por %p60, %p61
    %p64 = scmp.ne.s32.totalorder %s47, %s63
    %p65 = scmp.eq.s32.totalorder %s13, 0
    %p66 = por %p64, %p65
    %p67 = scmp.le.s32.totalorder 1, %s7
    %p68 = scmp.lt.s32.totalorder %s7, 3
    %p69 = pnand %p67, %p68
    %p70 = pneg %p69
    // Predicated region
    $region9: #{mae_forward.16} parent=5 // pred_check
      _
    $region10: #{mae_forward.16} parent=5 // pred_check_branch
      %72 = sbr.rel (%p69) target = $region12
    $region11: #{mae_forward.16} parent=5 // pred_region
      %s73 = ssub.s32 %s7, 1
    $region12: #{mae_forward.16} parent=5 // pred_fallthru
      _
    %p74 = scmp.lt.s32.totalorder %s7, 2
    // Predicated region
    $region13: #{mae_forward.16} parent=5 // pred_check
      %p75 = pneg %p74
    $region14: #{mae_forward.16} parent=5 // pred_check_branch
      %77 = sbr.rel (%p75) target = $region16
    $region15: #{mae_forward.16} parent=5 // pred_region
      // Predicated region
      $region17: #{mae_forward.16} parent=15 // pred_check
        %p78 = pneg %p27
      $region18: #{mae_forward.16} parent=15 // pred_check_branch
        %80 = sbr.rel (%p78) target = $region20
      $region19: #{mae_forward.16} parent=15 // pred_region
        %p81 = scmp.lt.s32.totalorder %s7, 1
        %s82 = scalar_select %p81, %s7, 1
        %s83 = smul.addr %s82, 4
        %s84 = scalar_lea.vmem %s0, %s83
      $region20: #{mae_forward.16} parent=15 // pred_fallthru
        _
    $region16: #{mae_forward.16} parent=5 // pred_fallthru
      _
    %p85 = scmp.le.s32.totalorder 1, %s7
    %p86 = scmp.lt.s32.totalorder %s7, 3
    %p87 = pnand %p85, %p86
    %p88 = pneg %p87
    // Predicated region
    $region21: #{mae_forward.16} parent=5 // pred_check
      _
    $region22: #{mae_forward.16} parent=5 // pred_check_branch
      %90 = sbr.rel (%p87) target = $region24
    $region23: #{mae_forward.16} parent=5 // pred_region
      %s91 = ssub.s32 %s7, 1
      %p92 = scmp.lt.s32.totalorder %s12, 1
      %s93 = scalar_select %p92, %s12, 1
      %s94 = smul.addr %s93, 4
      %s95 = scalar_lea.vmem %s0, %s94
      %p96 = pneg %p33
      %p97 = pneg %p30
      %p98 = pneg %p59
      %p99 = pneg %p56
      %p100 = scmp.lt.s32.totalorder %s12, 1
      %s101 = scalar_select %p100, %s12, 1
      %s102 = smul.addr %s101, 4
      %s103 = scalar_lea.vmem %s1, %s102
      %p104 = scmp.lt.s32.totalorder %s12, 1
      %s105 = scalar_select %p104, %s12, 1
      %s106 = smul.addr %s105, 4
      %s107 = scalar_lea.vmem %s0, %s106
      %p108 = scmp.lt.s32.totalorder %s12, 1
      %s109 = scalar_select %p108, %s12, 1
      %s110 = smul.addr %s109, 4
      %s111 = scalar_lea.vmem %s1, %s110
      %v113 = vld [vmem:[%s107] sm:$0x7]
      %v115 = vunpack.c.l.b16 %v113
      %v116 = vpack.c.b16 %v115, %v115
      %117 = vrot.lane.b32.xlu0 %v116, 96
      %v118 = vpop.permute.xlu0 %117
      %vm119 = vcmask 64512
      %v121 = vsel %vm119, %v113, 0
      %v124 = vsel %vm119, %v118, 0
      %126 = vmatprep.subr.bf16.mxu0 0
      %127 = vmatpush1.bf16.xpose.msra.mxu0 %v124
      %128 = vmatprep.subr.bf16.mxu0 0
      %129 = vmatpush1.bf16.xpose.msra.mxu0 0
      %130 = vmatprep.subr.bf16.mxu0 0
      %131 = vmatpush1.bf16.xpose.msra.mxu0 0
      %132 = vmatprep.subr.bf16.mxu0 0
      %133 = vmatpush1.bf16.xpose.msra.mxu0 0
      %134 = vmatprep.subr.bf16.mxu0 0
      %135 = vmatpush1.bf16.xpose.msra.mxu0 0
      %136 = vmatprep.subr.bf16.mxu0 0
      %137 = vmatpush1.bf16.xpose.msra.mxu0 0
      %138 = vmatprep.subr.bf16.mxu0 0
      %139 = vmatpush1.bf16.xpose.msra.mxu0 0
      %140 = vmatprep.subr.bf16.mxu0 0
      %141 = vmatpush1.bf16.xpose.msra.mxu0 0
      %142 = vmatprep.subr.bf16.mxu0 0
      %143 = vmatpush1.bf16.xpose.msra.mxu0 0
      %144 = vmatprep.subr.bf16.mxu0 0
      %145 = vmatpush1.bf16.xpose.msra.mxu0 0
      %146 = vmatprep.subr.bf16.mxu0 0
      %147 = vmatpush1.bf16.xpose.msra.mxu0 0
      %148 = vmatprep.subr.bf16.mxu0 0
      %149 = vmatpush1.bf16.xpose.msra.mxu0 0
      %150 = vmatprep.subr.bf16.mxu0 0
      %151 = vmatpush1.bf16.xpose.msra.mxu0 0
      %152 = vmatprep.subr.bf16.mxu0 0
      %153 = vmatpush1.bf16.xpose.msra.mxu0 0
      %154 = vmatprep.subr.bf16.mxu0 0
      %155 = vmatpush1.bf16.xpose.msra.mxu0 0
      %156 = vmatprep.subr.bf16.mxu0 0
      %157 = vmatpush1.bf16.xpose.msra.mxu0 0
      %158 = vmatprep.mubr.bf16.mxu0 0
      %159 = vmatmul.mubr.bf16.gmra.mrb[0].mxu0 %v121
      %v160 = vpop.f32.mrb[0].mxu0
      %v161 = vadd.f32 0.0, %v160
      %v162 = vpop.f32.mrb[0].mxu0
      %v163 = vpop.f32.mrb[0].mxu0
      %v164 = vpop.f32.mrb[0].mxu0
      %165 = vdwg.mxu0
      %v166 = vmul.f32 %v161, 0.35355338
      %vm167 = vcmask 36864
      %v168 = vsel %vm167, %v166, -inf
      %169 = vmax.xlane.f32.xlu0 %v168
      %v170 = vpop.xlane.xlu0 %169
      %v171 = vsub.f32 %v166, %v170
      %v172 = vmul.f32 %v171, 1.442695
      %v173 = vpow.pop %v172
      %v174 = vsel %vm167, %v173, 0.0
      %175 = vadd.xlane.f32.xlu0 %v174
      %v176 = vpop.xlane.xlu0 %175
      %v177 = vrcp.pop %v176
      %v178 = vmul.f32 %v173, %v177
      %v179 = vpack.c.bf16 %v178, %v178
      %180 = vrot.lane.b32.xlu0 %v116, 64
      %v181 = vpop.permute.xlu0 %180
      %vm182 = vcmask 39936
      %v184 = vsel %vm182, %v179, 0
      %vm186 = vcmask 1041408
      %vm187 = vcmask 1042432
      %v188 = vsel %vm186, 4294967295, 65535
      %v189 = vsel %vm187, %v188, 0
      %v191 = vand.u32 %v181, %v189
      %193 = vmatprep.subr.bf16.mxu0 0
      %194 = vmatpush1.bf16.msra.mxu0 %v191
      %195 = vmatprep.subr.bf16.mxu0 0
      %196 = vmatpush1.bf16.msra.mxu0 0
      %197 = vmatprep.subr.bf16.mxu0 0
      %198 = vmatpush1.bf16.msra.mxu0 0
      %199 = vmatprep.subr.bf16.mxu0 0
      %200 = vmatpush1.bf16.msra.mxu0 0
      %201 = vmatprep.subr.bf16.mxu0 0
      %202 = vmatpush1.bf16.msra.mxu0 0
      %203 = vmatprep.subr.bf16.mxu0 0
      %204 = vmatpush1.bf16.msra.mxu0 0
      %205 = vmatprep.subr.bf16.mxu0 0
      %206 = vmatpush1.bf16.msra.mxu0 0
      %207 = vmatprep.subr.bf16.mxu0 0
      %208 = vmatpush1.bf16.msra.mxu0 0
      %209 = vmatprep.subr.bf16.mxu0 0
      %210 = vmatpush1.bf16.msra.mxu0 0
      %211 = vmatprep.subr.bf16.mxu0 0
      %212 = vmatpush1.bf16.msra.mxu0 0
      %213 = vmatprep.subr.bf16.mxu0 0
      %214 = vmatpush1.bf16.msra.mxu0 0
      %215 = vmatprep.subr.bf16.mxu0 0
      %216 = vmatpush1.bf16.msra.mxu0 0
      %217 = vmatprep.subr.bf16.mxu0 0
      %218 = vmatpush1.bf16.msra.mxu0 0
      %219 = vmatprep.subr.bf16.mxu0 0
      %220 = vmatpush1.bf16.msra.mxu0 0
      %221 = vmatprep.subr.bf16.mxu0 0
      %222 = vmatpush1.bf16.msra.mxu0 0
      %223 = vmatprep.subr.bf16.mxu0 0
      %224 = vmatpush1.bf16.msra.mxu0 0
      %225 = vmatprep.mubr.bf16.mxu0 0
      %226 = vmatmul.mubr.bf16.gmra.mrb[0].mxu0 %v184
      %v227 = vpop.f32.mrb[0].mxu0
      %v228 = vadd.f32 0.0, %v227
      %v229 = vpop.f32.mrb[0].mxu0
      %v230 = vpop.f32.mrb[0].mxu0
      %v231 = vpop.f32.mrb[0].mxu0
      %232 = vdwg.mxu0
      %233 = vrot.lane.b32.xlu0 %v116, 120
      %v234 = vpop.permute.xlu0 %233
      %235 = vrot.lane.b32.xlu0 %v116, 88
      %v236 = vpop.permute.xlu0 %235
      %v238 = vsel %vm119, %v234, 0
      %v241 = vsel %vm119, %v236, 0
      %243 = vmatprep.subr.bf16.mxu0 0
      %244 = vmatpush1.bf16.xpose.msra.mxu0 %v241
      %245 = vmatprep.subr.bf16.mxu0 0
      %246 = vmatpush1.bf16.xpose.msra.mxu0 0
      %247 = vmatprep.subr.bf16.mxu0 0
      %248 = vmatpush1.bf16.xpose.msra.mxu0 0
      %249 = vmatprep.subr.bf16.mxu0 0
      %250 = vmatpush1.bf16.xpose.msra.mxu0 0
      %251 = vmatprep.subr.bf16.mxu0 0
      %252 = vmatpush1.bf16.xpose.msra.mxu0 0
      %253 = vmatprep.subr.bf16.mxu0 0
      %254 = vmatpush1.bf16.xpose.msra.mxu0 0
      %255 = vmatprep.subr.bf16.mxu0 0
      %256 = vmatpush1.bf16.xpose.msra.mxu0 0
      %257 = vmatprep.subr.bf16.mxu0 0
      %258 = vmatpush1.bf16.xpose.msra.mxu0 0
      %259 = vmatprep.subr.bf16.mxu0 0
      %260 = vmatpush1.bf16.xpose.msra.mxu0 0
      %261 = vmatprep.subr.bf16.mxu0 0
      %262 = vmatpush1.bf16.xpose.msra.mxu0 0
      %263 = vmatprep.subr.bf16.mxu0 0
      %264 = vmatpush1.bf16.xpose.msra.mxu0 0
      %265 = vmatprep.subr.bf16.mxu0 0
      %266 = vmatpush1.bf16.xpose.msra.mxu0 0
      %267 = vmatprep.subr.bf16.mxu0 0
      %268 = vmatpush1.bf16.xpose.msra.mxu0 0
      %269 = vmatprep.subr.bf16.mxu0 0
      %270 = vmatpush1.bf16.xpose.msra.mxu0 0
      %271 = vmatprep.subr.bf16.mxu0 0
      %272 = vmatpush1.bf16.xpose.msra.mxu0 0
      %273 = vmatprep.subr.bf16.mxu0 0
      %274 = vmatpush1.bf16.xpose.msra.mxu0 0
      %275 = vmatprep.mubr.bf16.mxu0 0
      %276 = vmatmul.mubr.bf16.gmra.mrb[0].mxu0 %v238
      %v277 = vpop.f32.mrb[0].mxu0
      %v278 = vadd.f32 0.0, %v277
      %v279 = vpop.f32.mrb[0].mxu0
      %v280 = vpop.f32.mrb[0].mxu0
      %v281 = vpop.f32.mrb[0].mxu0
      %282 = vdwg.mxu0
      %v283 = vmul.f32 %v278, 0.35355338
      %v284 = vsel %vm167, %v283, -inf
      %285 = vmax.xlane.f32.xlu0 %v284
      %v286 = vpop.xlane.xlu0 %285
      %v287 = vsub.f32 %v283, %v286
      %v288 = vmul.f32 %v287, 1.442695
      %v289 = vpow.pop %v288
      %v290 = vsel %vm167, %v289, 0.0
      %291 = vadd.xlane.f32.xlu0 %v290
      %v292 = vpop.xlane.xlu0 %291
      %v293 = vrcp.pop %v292
      %v294 = vmul.f32 %v289, %v293
      %v295 = vpack.c.bf16 %v294, %v294
      %296 = vrot.lane.b32.xlu0 %v116, 56
      %v297 = vpop.permute.xlu0 %296
      %v299 = vsel %vm182, %v295, 0
      %v302 = vand.u32 %v297, %v189
      %304 = vmatprep.subr.bf16.mxu0 0
      %305 = vmatpush1.bf16.msra.mxu0 %v302
      %306 = vmatprep.subr.bf16.mxu0 0
      %307 = vmatpush1.bf16.msra.mxu0 0
      %308 = vmatprep.subr.bf16.mxu0 0
      %309 = vmatpush1.bf16.msra.mxu0 0
      %310 = vmatprep.subr.bf16.mxu0 0
      %311 = vmatpush1.bf16.msra.mxu0 0
      %312 = vmatprep.subr.bf16.mxu0 0
      %313 = vmatpush1.bf16.msra.mxu0 0
      %314 = vmatprep.subr.bf16.mxu0 0
      %315 = vmatpush1.bf16.msra.mxu0 0
      %316 = vmatprep.subr.bf16.mxu0 0
      %317 = vmatpush1.bf16.msra.mxu0 0
      %318 = vmatprep.subr.bf16.mxu0 0
      %319 = vmatpush1.bf16.msra.mxu0 0
      %320 = vmatprep.subr.bf16.mxu0 0
      %321 = vmatpush1.bf16.msra.mxu0 0
      %322 = vmatprep.subr.bf16.mxu0 0
      %323 = vmatpush1.bf16.msra.mxu0 0
      %324 = vmatprep.subr.bf16.mxu0 0
      %325 = vmatpush1.bf16.msra.mxu0 0
      %326 = vmatprep.subr.bf16.mxu0 0
      %327 = vmatpush1.bf16.msra.mxu0 0
      %328 = vmatprep.subr.bf16.mxu0 0
      %329 = vmatpush1.bf16.msra.mxu0 0
      %330 = vmatprep.subr.bf16.mxu0 0
      %331 = vmatpush1.bf16.msra.mxu0 0
      %332 = vmatprep.subr.bf16.mxu0 0
      %333 = vmatpush1.bf16.msra.mxu0 0
      %334 = vmatprep.subr.bf16.mxu0 0
      %335 = vmatpush1.bf16.msra.mxu0 0
      %336 = vmatprep.mubr.bf16.mxu0 0
      %337 = vmatmul.mubr.bf16.gmra.mrb[0].mxu0 %v299
      %v338 = vpop.f32.mrb[0].mxu0
      %v339 = vadd.f32 0.0, %v338
      %v340 = vpop.f32.mrb[0].mxu0
      %v341 = vpop.f32.mrb[0].mxu0
      %v342 = vpop.f32.mrb[0].mxu0
      %343 = vdwg.mxu0
      %344 = vrot.lane.b32.xlu0 %v116, 112
      %v345 = vpop.permute.xlu0 %344
      %346 = vrot.lane.b32.xlu0 %v116, 80
      %v347 = vpop.permute.xlu0 %346
      %v349 = vsel %vm119, %v345, 0
      %v352 = vsel %vm119, %v347, 0
      %354 = vmatprep.subr.bf16.mxu0 0
      %355 = vmatpush1.bf16.xpose.msra.mxu0 %v352
      %356 = vmatprep.subr.bf16.mxu0 0
      %357 = vmatpush1.bf16.xpose.msra.mxu0 0
      %358 = vmatprep.subr.bf16.mxu0 0
      %359 = vmatpush1.bf16.xpose.msra.mxu0 0
      %360 = vmatprep.subr.bf16.mxu0 0
      %361 = vmatpush1.bf16.xpose.msra.mxu0 0
      %362 = vmatprep.subr.bf16.mxu0 0
      %363 = vmatpush1.bf16.xpose.msra.mxu0 0
      %364 = vmatprep.subr.bf16.mxu0 0
      %365 = vmatpush1.bf16.xpose.msra.mxu0 0
      %366 = vmatprep.subr.bf16.mxu0 0
      %367 = vmatpush1.bf16.xpose.msra.mxu0 0
      %368 = vmatprep.subr.bf16.mxu0 0
      %369 = vmatpush1.bf16.xpose.msra.mxu0 0
      %370 = vmatprep.subr.bf16.mxu0 0
      %371 = vmatpush1.bf16.xpose.msra.mxu0 0
      %372 = vmatprep.subr.bf16.mxu0 0
      %373 = vmatpush1.bf16.xpose.msra.mxu0 0
      %374 = vmatprep.subr.bf16.mxu0 0
      %375 = vmatpush1.bf16.xpose.msra.mxu0 0
      %376 = vmatprep.subr.bf16.mxu0 0
      %377 = vmatpush1.bf16.xpose.msra.mxu0 0
      %378 = vmatprep.subr.bf16.mxu0 0
      %379 = vmatpush1.bf16.xpose.msra.mxu0 0
      %380 = vmatprep.subr.bf16.mxu0 0
      %381 = vmatpush1.bf16.xpose.msra.mxu0 0
      %382 = vmatprep.subr.bf16.mxu0 0
      %383 = vmatpush1.bf16.xpose.msra.mxu0 0
      %384 = vmatprep.subr.bf16.mxu0 0
      %385 = vmatpush1.bf16.xpose.msra.mxu0 0
      %386 = vmatprep.mubr.bf16.mxu0 0
      %387 = vmatmul.mubr.bf16.gmra.mrb[0].mxu0 %v349
      %v388 = vpop.f32.mrb[0].mxu0
      %v389 = vadd.f32 0.0, %v388
      %v390 = vpop.f32.mrb[0].mxu0
      %v391 = vpop.f32.mrb[0].mxu0
      %v392 = vpop.f32.mrb[0].mxu0
      %393 = vdwg.mxu0
      %v394 = vmul.f32 %v389, 0.35355338
      %v395 = vsel %vm167, %v394, -inf
      %396 = vmax.xlane.f32.xlu0 %v395
      %v397 = vpop.xlane.xlu0 %396
      %v398 = vsub.f32 %v394, %v397
      %v399 = vmul.f32 %v398, 1.442695
      %v400 = vpow.pop %v399
      %v401 = vsel %vm167, %v400, 0.0
      %402 = vadd.xlane.f32.xlu0 %v401
      %v403 = vpop.xlane.xlu0 %402
      %v404 = vrcp.pop %v403
      %v405 = vmul.f32 %v400, %v404
      %v406 = vpack.c.bf16 %v405, %v405
      %407 = vrot.lane.b32.xlu0 %v116, 48
      %v408 = vpop.permute.xlu0 %407
      %v410 = vsel %vm182, %v406, 0
      %v413 = vand.u32 %v408, %v189
      %415 = vmatprep.subr.bf16.mxu0 0
      %416 = vmatpush1.bf16.msra.mxu0 %v413
      %417 = vmatprep.subr.bf16.mxu0 0
      %418 = vmatpush1.bf16.msra.mxu0 0
      %419 = vmatprep.subr.bf16.mxu0 0
      %420 = vmatpush1.bf16.msra.mxu0 0
      %421 = vmatprep.subr.bf16.mxu0 0
      %422 = vmatpush1.bf16.msra.mxu0 0
      %423 = vmatprep.subr.bf16.mxu0 0
      %424 = vmatpush1.bf16.msra.mxu0 0
      %425 = vmatprep.subr.bf16.mxu0 0
      %426 = vmatpush1.bf16.msra.mxu0 0
      %427 = vmatprep.subr.bf16.mxu0 0
      %428 = vmatpush1.bf16.msra.mxu0 0
      %429 = vmatprep.subr.bf16.mxu0 0
      %430 = vmatpush1.bf16.msra.mxu0 0
      %431 = vmatprep.subr.bf16.mxu0 0
      %432 = vmatpush1.bf16.msra.mxu0 0
      %433 = vmatprep.subr.bf16.mxu0 0
      %434 = vmatpush1.bf16.msra.mxu0 0
      %435 = vmatprep.subr.bf16.mxu0 0
      %436 = vmatpush1.bf16.msra.mxu0 0
      %437 = vmatprep.subr.bf16.mxu0 0
      %438 = vmatpush1.bf16.msra.mxu0 0
      %439 = vmatprep.subr.bf16.mxu0 0
      %440 = vmatpush1.bf16.msra.mxu0 0
      %441 = vmatprep.subr.bf16.mxu0 0
      %442 = vmatpush1.bf16.msra.mxu0 0
      %443 = vmatprep.subr.bf16.mxu0 0
      %444 = vmatpush1.bf16.msra.mxu0 0
      %445 = vmatprep.subr.bf16.mxu0 0
      %446 = vmatpush1.bf16.msra.mxu0 0
      %447 = vmatprep.mubr.bf16.mxu0 0
      %448 = vmatmul.mubr.bf16.gmra.mrb[0].mxu0 %v410
      %v449 = vpop.f32.mrb[0].mxu0
      %v450 = vadd.f32 0.0, %v449
      %v451 = vpop.f32.mrb[0].mxu0
      %v452 = vpop.f32.mrb[0].mxu0
      %v453 = vpop.f32.mrb[0].mxu0
      %454 = vdwg.mxu0
      %455 = vrot.lane.b32.xlu0 %v116, 104
      %v456 = vpop.permute.xlu0 %455
      %457 = vrot.lane.b32.xlu0 %v116, 72
      %v458 = vpop.permute.xlu0 %457
      %v460 = vsel %vm119, %v456, 0
      %v463 = vsel %vm119, %v458, 0
      %465 = vmatprep.subr.bf16.mxu0 0
      %466 = vmatpush1.bf16.xpose.msra.mxu0 %v463
      %467 = vmatprep.subr.bf16.mxu0 0
      %468 = vmatpush1.bf16.xpose.msra.mxu0 0
      %469 = vmatprep.subr.bf16.mxu0 0
      %470 = vmatpush1.bf16.xpose.msra.mxu0 0
      %471 = vmatprep.subr.bf16.mxu0 0
      %472 = vmatpush1.bf16.xpose.msra.mxu0 0
      %473 = vmatprep.subr.bf16.mxu0 0
      %474 = vmatpush1.bf16.xpose.msra.mxu0 0
      %475 = vmatprep.subr.bf16.mxu0 0
      %476 = vmatpush1.bf16.xpose.msra.mxu0 0
      %477 = vmatprep.subr.bf16.mxu0 0
      %478 = vmatpush1.bf16.xpose.msra.mxu0 0
      %479 = vmatprep.subr.bf16.mxu0 0
      %480 = vmatpush1.bf16.xpose.msra.mxu0 0
      %481 = vmatprep.subr.bf16.mxu0 0
      %482 = vmatpush1.bf16.xpose.msra.mxu0 0
      %483 = vmatprep.subr.bf16.mxu0 0
      %484 = vmatpush1.bf16.xpose.msra.mxu0 0
      %485 = vmatprep.subr.bf16.mxu0 0
      %486 = vmatpush1.bf16.xpose.msra.mxu0 0
      %487 = vmatprep.subr.bf16.mxu0 0
      %488 = vmatpush1.bf16.xpose.msra.mxu0 0
      %489 = vmatprep.subr.bf16.mxu0 0
      %490 = vmatpush1.bf16.xpose.msra.mxu0 0
      %491 = vmatprep.subr.bf16.mxu0 0
      %492 = vmatpush1.bf16.xpose.msra.mxu0 0
      %493 = vmatprep.subr.bf16.mxu0 0
      %494 = vmatpush1.bf16.xpose.msra.mxu0 0
      %495 = vmatprep.subr.bf16.mxu0 0
      %496 = vmatpush1.bf16.xpose.msra.mxu0 0
      %497 = vmatprep.mubr.bf16.mxu0 0
      %498 = vmatmul.mubr.bf16.gmra.mrb[0].mxu0 %v460
      %v499 = vpop.f32.mrb[0].mxu0
      %v500 = vadd.f32 0.0, %v499
      %v501 = vpop.f32.mrb[0].mxu0
      %v502 = vpop.f32.mrb[0].mxu0
      %v503 = vpop.f32.mrb[0].mxu0
      %504 = vdwg.mxu0
      %v505 = vmul.f32 %v500, 0.35355338
      %v506 = vsel %vm167, %v505, -inf
      %507 = vmax.xlane.f32.xlu0 %v506
      %v508 = vpop.xlane.xlu0 %507
      %v509 = vsub.f32 %v505, %v508
      %v510 = vmul.f32 %v509, 1.442695
      %v511 = vpow.pop %v510
      %v512 = vsel %vm167, %v511, 0.0
      %513 = vadd.xlane.f32.xlu0 %v512
      %v514 = vpop.xlane.xlu0 %513
      %v515 = vrcp.pop %v514
      %v516 = vmul.f32 %v511, %v515
      %v517 = vpack.c.bf16 %v516, %v516
      %518 = vrot.lane.b32.xlu0 %v116, 40
      %v519 = vpop.permute.xlu0 %518
      %v521 = vsel %vm182, %v517, 0
      %v524 = vand.u32 %v519, %v189
      %526 = vmatprep.subr.bf16.mxu0 0
      %527 = vmatpush1.bf16.msra.mxu0 %v524
      %528 = vmatprep.subr.bf16.mxu0 0
      %529 = vmatpush1.bf16.msra.mxu0 0
      %530 = vmatprep.subr.bf16.mxu0 0
      %531 = vmatpush1.bf16.msra.mxu0 0
      %532 = vmatprep.subr.bf16.mxu0 0
      %533 = vmatpush1.bf16.msra.mxu0 0
      %534 = vmatprep.subr.bf16.mxu0 0
      %535 = vmatpush1.bf16.msra.mxu0 0
      %536 = vmatprep.subr.bf16.mxu0 0
      %537 = vmatpush1.bf16.msra.mxu0 0
      %538 = vmatprep.subr.bf16.mxu0 0
      %539 = vmatpush1.bf16.msra.mxu0 0
      %540 = vmatprep.subr.bf16.mxu0 0
      %541 = vmatpush1.bf16.msra.mxu0 0
      %542 = vmatprep.subr.bf16.mxu0 0
      %543 = vmatpush1.bf16.msra.mxu0 0
      %544 = vmatprep.subr.bf16.mxu0 0
      %545 = vmatpush1.bf16.msra.mxu0 0
      %546 = vmatprep.subr.bf16.mxu0 0
      %547 = vmatpush1.bf16.msra.mxu0 0
      %548 = vmatprep.subr.bf16.mxu0 0
      %549 = vmatpush1.bf16.msra.mxu0 0
      %550 = vmatprep.subr.bf16.mxu0 0
      %551 = vmatpush1.bf16.msra.mxu0 0
      %552 = vmatprep.subr.bf16.mxu0 0
      %553 = vmatpush1.bf16.msra.mxu0 0
      %554 = vmatprep.subr.bf16.mxu0 0
      %555 = vmatpush1.bf16.msra.mxu0 0
      %556 = vmatprep.subr.bf16.mxu0 0
      %557 = vmatpush1.bf16.msra.mxu0 0
      %558 = vmatprep.mubr.bf16.mxu0 0
      %559 = vmatmul.mubr.bf16.gmra.mrb[0].mxu0 %v521
      %v560 = vpop.f32.mrb[0].mxu0
      %v561 = vadd.f32 0.0, %v560
      %v562 = vpop.f32.mrb[0].mxu0
      %v563 = vpop.f32.mrb[0].mxu0
      %v564 = vpop.f32.mrb[0].mxu0
      %565 = vdwg.mxu0
      %567 = vrot.lane.b32.xlu0 %v339, 8
      %v568 = vpop.permute.xlu0 %567
      %571 = vrot.lane.b32.xlu0 %v450, 16
      %v572 = vpop.permute.xlu0 %571
      %575 = vrot.lane.b32.xlu0 %v561, 24
      %v576 = vpop.permute.xlu0 %575
      %v578 = vsel %vm119, %v228, %v568
      %vm579 = vcmask 130048
      %v580 = vsel %vm579, %v578, %v572
      %vm581 = vcmask 195584
      %v582 = vsel %vm581, %v580, %v576
      %v583 = vpack.c.bf16 %v582, %v582
      %vm584 = vcmask 256000
      %vm585 = vsmask.f32 2304
      %vm586 = vmand %vm584, %vm585
      %v587 = vld [vmem:[%s111] sm:$0x7]
      %v588 = vsel %vm586, %v583, %v587
      %589 = vst [vmem:[%s111] sm:$0x7] %v588
      %p590 = scmp.lt.s32.totalorder %s12, 1
      %s591 = scalar_select %p590, %s12, 1
      %s592 = smul.addr %s591, 4
      %s593 = scalar_lea.vmem %s1, %s592
      // Predicated region
      $region25: #{mae_forward.16} parent=23 // pred_check
        %p594 = pneg %p56
      $region26: #{mae_forward.16} parent=23 // pred_check_branch
        %596 = sbr.rel (%p594) target = $region28
      $region27: #{mae_forward.16} parent=23 // pred_region
        _
      $region28: #{mae_forward.16} parent=23 // pred_fallthru
        _
    $region24: #{mae_forward.16} parent=5 // pred_fallthru
      _
    %p597 = scmp.le.s32.totalorder 2, %s7
    // Predicated region
    $region29: #{mae_forward.16} parent=5 // pred_check
      %p598 = pneg %p597
    $region30: #{mae_forward.16} parent=5 // pred_check_branch
      %600 = sbr.rel (%p598) target = $region32
    $region31: #{mae_forward.16} parent=5 // pred_region
      %s601 = ssub.s32 %s7, 2
      // Predicated region
      $region33: #{mae_forward.16} parent=31 // pred_check
        %p602 = pneg %p62
      $region34: #{mae_forward.16} parent=31 // pred_check_branch
        %604 = sbr.rel (%p602) target = $region36
      $region35: #{mae_forward.16} parent=31 // pred_region
        %p605 = scmp.lt.s32.totalorder %s13, 1
        %s606 = scalar_select %p605, %s13, 1
        %s607 = smul.addr %s606, 4
        %s608 = scalar_lea.vmem %s1, %s607
      $region36: #{mae_forward.16} parent=31 // pred_fallthru
        _
    $region32: #{mae_forward.16} parent=5 // pred_fallthru
      _
  $region6: #{mae_forward.16} parent=0 // loop_footer
    %s11 = sadd.s32 1, %s7
  $region7: #{mae_forward.16} parent=0 // loop_footer_branch
    %6 = sbr.rel target = $region3
  $region8: #{mae_forward.16} parent=0 // loop_exit
    _

// kernel: mae_forward.14
$region0: #{mae_forward.14}
  #allocation0 [shape = 'u32[]', space=smem, size = 0x4, offset = 0x4, fixed_abs, tag = 'smem constant byte address 0x4 - core index']
  #allocation1 [shape = 'u32[144,128]{1,0:T(1,128)}', space=vmem, size = 0x12000, scoped, tag = 'internal scratch']
  #allocation2 [shape = 'f32[32,128]{1,0:T(8,128)}', space=vmem, size = 0x4000, scoped, tag = 'scratch operand']
  %s0 = inlined_call_operand.vmem [shape: f32[32,128], index: 0, kind: input, shape index: {}]
  %s1 = inlined_call_operand.vmem [shape: bf16[128,128], index: 1, kind: input, shape index: {}]
  %s2 = inlined_call_operand.vmem [shape: f32[1,128], index: 2, kind: input, shape index: {}]
  %s3 = inlined_call_operand.vmem [shape: bf16[32,128], index: 3, kind: output, shape index: {}]
  %s4 = sld [smem:[#allocation0]]
  $region30: #{mae_forward.14} parent=0
    _
  %s6 = ssub.s32 1, %s4
  %s7 = scalar_select 0, %s6, %s4
  // Predicated region
  $region2: #{mae_forward.14} parent=0 // pred_check
    _
  $region3: #{mae_forward.14} parent=0 // pred_check_branch
    %9 = sbr.rel (0) target = $region5
  $region4: #{mae_forward.14} parent=0 // pred_region
    _
  $region5: #{mae_forward.14} parent=0 // pred_fallthru
    _
  // Predicated region
  $region6: #{mae_forward.14} parent=0 // pred_check
    _
  $region7: #{mae_forward.14} parent=0 // pred_check_branch
    %11 = sbr.rel (0) target = $region9
  $region8: #{mae_forward.14} parent=0 // pred_region
    _
  $region9: #{mae_forward.14} parent=0 // pred_fallthru
    _
  // Predicated region
  $region10: #{mae_forward.14} parent=0 // pred_check
    _
  $region11: #{mae_forward.14} parent=0 // pred_check_branch
    %13 = sbr.rel (0) target = $region13
  $region12: #{mae_forward.14} parent=0 // pred_region
    _
  $region13: #{mae_forward.14} parent=0 // pred_fallthru
    _
  %p15 = scmp.eq.s32.totalorder 0, 0
  // Predicated region
  $region14: #{mae_forward.14} parent=0 // pred_check
    %p16 = pneg %p15
  $region15: #{mae_forward.14} parent=0 // pred_check_branch
    %18 = sbr.rel (%p16) target = $region17
  $region16: #{mae_forward.14} parent=0 // pred_region
    %19 = vst [vmem:[#allocation2] sm:$0xff] 0.0
    %20 = vst [vmem:[#allocation2 + $0x8] sm:$0xff] 0.0
    %21 = vst [vmem:[#allocation2 + $0x10] sm:$0xff] 0.0
    %22 = vst [vmem:[#allocation2 + $0x18] sm:$0xff] 0.0
  $region17: #{mae_forward.14} parent=0 // pred_fallthru
    _
  %v23 = vld [vmem:[%s0] sm:$0xff]
  %v24 = vld [vmem:[%s0 + $0x8] sm:$0xff]
  %v25 = vld [vmem:[%s0 + $0x10] sm:$0xff]
  %v26 = vld [vmem:[%s0 + $0x18] sm:$0xff]
  %v27 = vpack.c.bf16 %v24, %v23
  %v28 = vpack.c.bf16 %v26, %v25
  %v29 = vld [vmem:[#allocation2] sm:$0xff]
  %v30 = vld [vmem:[#allocation2 + $0x8] sm:$0xff]
  %v31 = vld [vmem:[#allocation2 + $0x10] sm:$0xff]
  %v32 = vld [vmem:[#allocation2 + $0x18] sm:$0xff]
  %v33 = vld [vmem:[%s1] sm:$0xf]
  %v34 = vld [vmem:[%s1 + $0x4] sm:$0xf]
  %v35 = vld [vmem:[%s1 + $0x8] sm:$0xf]
  %v36 = vld [vmem:[%s1 + $0xc] sm:$0xf]
  %v37 = vld [vmem:[%s1 + $0x10] sm:$0xf]
  %v38 = vld [vmem:[%s1 + $0x14] sm:$0xf]
  %v39 = vld [vmem:[%s1 + $0x18] sm:$0xf]
  %v40 = vld [vmem:[%s1 + $0x1c] sm:$0xf]
  %v41 = vld [vmem:[%s1 + $0x20] sm:$0xf]
  %v42 = vld [vmem:[%s1 + $0x24] sm:$0xf]
  %v43 = vld [vmem:[%s1 + $0x28] sm:$0xf]
  %v44 = vld [vmem:[%s1 + $0x2c] sm:$0xf]
  %v45 = vld [vmem:[%s1 + $0x30] sm:$0xf]
  %v46 = vld [vmem:[%s1 + $0x34] sm:$0xf]
  %v47 = vld [vmem:[%s1 + $0x38] sm:$0xf]
  %v48 = vld [vmem:[%s1 + $0x3c] sm:$0xf]
  %v65 = vunpack.c.l.b16 %v33
  %v66 = vunpack.c.l.b16 %v34
  %v67 = vunpack.c.l.b16 %v35
  %v68 = vunpack.c.l.b16 %v36
  %v69 = vunpack.c.l.b16 %v37
  %v70 = vunpack.c.l.b16 %v38
  %v71 = vunpack.c.l.b16 %v39
  %v72 = vunpack.c.l.b16 %v40
  %v73 = vunpack.c.l.b16 %v41
  %v74 = vunpack.c.l.b16 %v42
  %v75 = vunpack.c.l.b16 %v43
  %v76 = vunpack.c.l.b16 %v44
  %v77 = vunpack.c.l.b16 %v45
  %v78 = vunpack.c.l.b16 %v46
  %v79 = vunpack.c.l.b16 %v47
  %v80 = vunpack.c.l.b16 %v48
  %v81 = vpack.c.b16 %v66, %v65
  %v82 = vpack.c.b16 %v68, %v67
  %v83 = vpack.c.b16 %v70, %v69
  %v84 = vpack.c.b16 %v72, %v71
  %v85 = vpack.c.b16 %v74, %v73
  %v86 = vpack.c.b16 %v76, %v75
  %v87 = vpack.c.b16 %v78, %v77
  %v88 = vpack.c.b16 %v80, %v79
  %97 = vmatprep.subr.bf16.mxu0 0
  %98 = vmatpush1.bf16.msra.mxu0 %v81
  %99 = vmatprep.subr.bf16.mxu0 0
  %100 = vmatpush1.bf16.msra.mxu0 %v82
  %101 = vmatprep.subr.bf16.mxu0 0
  %102 = vmatpush1.bf16.msra.mxu0 %v83
  %103 = vmatprep.subr.bf16.mxu0 0
  %104 = vmatpush1.bf16.msra.mxu0 %v84
  %105 = vmatprep.subr.bf16.mxu0 0
  %106 = vmatpush1.bf16.msra.mxu0 %v85
  %107 = vmatprep.subr.bf16.mxu0 0
  %108 = vmatpush1.bf16.msra.mxu0 %v86
  %109 = vmatprep.subr.bf16.mxu0 0
  %110 = vmatpush1.bf16.msra.mxu0 %v87
  %111 = vmatprep.subr.bf16.mxu0 0
  %112 = vmatpush1.bf16.msra.mxu0 %v88
  %113 = vmatprep.subr.bf16.mxu0 0
  %114 = vmatpush1.bf16.msra.mxu0 0
  %115 = vmatprep.subr.bf16.mxu0 0
  %116 = vmatpush1.bf16.msra.mxu0 0
  %117 = vmatprep.subr.bf16.mxu0 0
  %118 = vmatpush1.bf16.msra.mxu0 0
  %119 = vmatprep.subr.bf16.mxu0 0
  %120 = vmatpush1.bf16.msra.mxu0 0
  %121 = vmatprep.subr.bf16.mxu0 0
  %122 = vmatpush1.bf16.msra.mxu0 0
  %123 = vmatprep.subr.bf16.mxu0 0
  %124 = vmatpush1.bf16.msra.mxu0 0
  %125 = vmatprep.subr.bf16.mxu0 0
  %126 = vmatpush1.bf16.msra.mxu0 0
  %127 = vmatprep.subr.bf16.mxu0 0
  %128 = vmatpush1.bf16.msra.mxu0 0
  %129 = vmatprep.mubr.bf16.mxu0 0
  %130 = vmatmul.mubr.bf16.gmra.mrb[0].mxu0 %v27
  %v131 = vpop.f32.mrb[0].mxu0
  %v132 = vadd.f32 0.0, %v131
  %v133 = vpop.f32.mrb[0].mxu0
  %v134 = vpop.f32.mrb[0].mxu0
  %v135 = vadd.f32 0.0, %v134
  %v136 = vpop.f32.mrb[0].mxu0
  %137 = vmatprep.mubr.bf16.mxu0 0
  %138 = vmatmul.mubr.bf16.gmra.mrb[0].mxu0 %v28
  %v139 = vpop.f32.mrb[0].mxu0
  %v140 = vadd.f32 0.0, %v139
  %v141 = vpop.f32.mrb[0].mxu0
  %v142 = vpop.f32.mrb[0].mxu0
  %v143 = vadd.f32 0.0, %v142
  %v144 = vpop.f32.mrb[0].mxu0
  %145 = vdwg.mxu0
  %v146 = vadd.f32 %v29, %v132
  %v147 = vadd.f32 %v30, %v135
  %v148 = vadd.f32 %v31, %v140
  %v149 = vadd.f32 %v32, %v143
  %150 = vst [vmem:[#allocation2] sm:$0xff] %v146
  %151 = vst [vmem:[#allocation2 + $0x8] sm:$0xff] %v147
  %152 = vst [vmem:[#allocation2 + $0x10] sm:$0xff] %v148
  %153 = vst [vmem:[#allocation2 + $0x18] sm:$0xff] %v149
  // Predicated region
  $region18: #{mae_forward.14} parent=0 // pred_check
    %p154 = pneg %p15
  $region19: #{mae_forward.14} parent=0 // pred_check_branch
    %156 = sbr.rel (%p154) target = $region21
  $region20: #{mae_forward.14} parent=0 // pred_region
    %v157 = vld [vmem:[#allocation2] sm:$0xff]
    %v158 = vld [vmem:[#allocation2 + $0x8] sm:$0xff]
    %v159 = vld [vmem:[#allocation2 + $0x10] sm:$0xff]
    %v160 = vld [vmem:[#allocation2 + $0x18] sm:$0xff]
    %v161 = vld [vmem:[%s2] sm:$0x1]
    %v163 = vlaneseq
    %v164 = vshrl.u32 %v163, 7
    %v165 = vsub.s32 0, %v164
    %v166 = vrot.slane %v161, %v165
    %v168 = vadd.f32 %v157, %v166
    %v169 = vadd.f32 %v158, %v166
    %v170 = vadd.f32 %v159, %v166
    %v171 = vadd.f32 %v160, %v166
    %v172 = vpack.c.bf16 %v169, %v168
    %v173 = vpack.c.bf16 %v171, %v170
    %v176 = vunpack.c.l.b16 %v172
    %v177 = vunpack.c.h.b16 %v172
    %v178 = vunpack.c.l.b16 %v173
    %v179 = vunpack.c.h.b16 %v173
    %v180 = vpack.c.b16 %v176, %v176
    %v181 = vpack.c.b16 %v177, %v177
    %v182 = vpack.c.b16 %v178, %v178
    %v183 = vpack.c.b16 %v179, %v179
    %188 = vst [vmem:[%s3] sm:$0xf] %v180
    %189 = vst [vmem:[%s3 + $0x4] sm:$0xf] %v181
    %190 = vst [vmem:[%s3 + $0x8] sm:$0xf] %v182
    %191 = vst [vmem:[%s3 + $0xc] sm:$0xf] %v183
  $region21: #{mae_forward.14} parent=0 // pred_fallthru
    _
  // Predicated region
  $region22: #{mae_forward.14} parent=0 // pred_check
    _
  $region23: #{mae_forward.14} parent=0 // pred_check_branch
    %193 = sbr.rel (0) target = $region25
  $region24: #{mae_forward.14} parent=0 // pred_region
    _
  $region25: #{mae_forward.14} parent=0 // pred_fallthru
    _
  // Predicated region
  $region26: #{mae_forward.14} parent=0 // pred_check
    _
  $region27: #{mae_forward.14} parent=0 // pred_check_branch
    %195 = sbr.rel (0) target = $region29
  $region28: #{mae_forward.14} parent=0 // pred_region
    _
  $region29: #{mae_forward.14} parent=0 // pred_fallthru
    _

// kernel: mae_forward.15
$region0: #{mae_forward.15}
  #allocation0 [shape = 'u32[]', space=smem, size = 0x4, offset = 0x4, fixed_abs, tag = 'smem constant byte address 0x4 - core index']
  #allocation1 [shape = 'u32[144,128]{1,0:T(1,128)}', space=vmem, size = 0x12000, scoped, tag = 'internal scratch']
  #allocation2 [shape = 'f32[16,128]{1,0:T(8,128)}', space=vmem, size = 0x2000, scoped, tag = 'scratch operand']
  %s0 = inlined_call_operand.vmem [shape: bf16[16,128], index: 0, kind: input, shape index: {}]
  %s1 = inlined_call_operand.vmem [shape: bf16[128,128], index: 1, kind: input, shape index: {}]
  %s2 = inlined_call_operand.vmem [shape: f32[1,128], index: 2, kind: input, shape index: {}]
  %s3 = inlined_call_operand.vmem [shape: f32[1,128], index: 3, kind: input, shape index: {}]
  %s4 = inlined_call_operand.vmem [shape: f32[1,128], index: 4, kind: input, shape index: {}]
  %s5 = inlined_call_operand.vmem [shape: bf16[16,128], index: 5, kind: output, shape index: {}]
  %s6 = sld [smem:[#allocation0]]
  $region38: #{mae_forward.15} parent=0
    _
  %s8 = ssub.s32 1, %s6
  %s9 = scalar_select 0, %s8, %s6
  // Predicated region
  $region2: #{mae_forward.15} parent=0 // pred_check
    _
  $region3: #{mae_forward.15} parent=0 // pred_check_branch
    %11 = sbr.rel (0) target = $region5
  $region4: #{mae_forward.15} parent=0 // pred_region
    _
  $region5: #{mae_forward.15} parent=0 // pred_fallthru
    _
  // Predicated region
  $region6: #{mae_forward.15} parent=0 // pred_check
    _
  $region7: #{mae_forward.15} parent=0 // pred_check_branch
    %13 = sbr.rel (0) target = $region9
  $region8: #{mae_forward.15} parent=0 // pred_region
    _
  $region9: #{mae_forward.15} parent=0 // pred_fallthru
    _
  // Predicated region
  $region10: #{mae_forward.15} parent=0 // pred_check
    _
  $region11: #{mae_forward.15} parent=0 // pred_check_branch
    %15 = sbr.rel (0) target = $region13
  $region12: #{mae_forward.15} parent=0 // pred_region
    _
  $region13: #{mae_forward.15} parent=0 // pred_fallthru
    _
  // Predicated region
  $region14: #{mae_forward.15} parent=0 // pred_check
    _
  $region15: #{mae_forward.15} parent=0 // pred_check_branch
    %17 = sbr.rel (0) target = $region17
  $region16: #{mae_forward.15} parent=0 // pred_region
    _
  $region17: #{mae_forward.15} parent=0 // pred_fallthru
    _
  // Predicated region
  $region18: #{mae_forward.15} parent=0 // pred_check
    _
  $region19: #{mae_forward.15} parent=0 // pred_check_branch
    %19 = sbr.rel (0) target = $region21
  $region20: #{mae_forward.15} parent=0 // pred_region
    _
  $region21: #{mae_forward.15} parent=0 // pred_fallthru
    _
  %p21 = scmp.eq.s32.totalorder 0, 0
  // Predicated region
  $region22: #{mae_forward.15} parent=0 // pred_check
    %p22 = pneg %p21
  $region23: #{mae_forward.15} parent=0 // pred_check_branch
    %24 = sbr.rel (%p22) target = $region25
  $region24: #{mae_forward.15} parent=0 // pred_region
    %25 = vst [vmem:[#allocation2] sm:$0xff] 0.0
    %26 = vst [vmem:[#allocation2 + $0x8] sm:$0xff] 0.0
  $region25: #{mae_forward.15} parent=0 // pred_fallthru
    _
  %v27 = vld [vmem:[%s0] sm:$0xf]
  %v28 = vld [vmem:[%s0 + $0x4] sm:$0xf]
  %v29 = vunpack.c.l.bf16 %v27
  %v30 = vunpack.c.l.bf16 %v28
  %31 = vadd.xlane.f32.xlu0 %v29
  %v32 = vpop.xlane.xlu0 %31
  %33 = vadd.xlane.f32.xlu0 %v30
  %v34 = vpop.xlane.xlu0 %33
  %v35 = vmul.f32 %v32, 0.03125
  %v36 = vmul.f32 %v34, 0.03125
  %v37 = vmul.f32 %v29, %v29
  %v38 = vmul.f32 %v30, %v30
  %39 = vadd.xlane.f32.xlu0 %v37
  %v40 = vpop.xlane.xlu0 %39
  %41 = vadd.xlane.f32.xlu0 %v38
  %v42 = vpop.xlane.xlu0 %41
  %v43 = vmul.f32 %v40, 0.03125
  %v44 = vmul.f32 %v42, 0.03125
  %v45 = vmul.f32 %v35, %v35
  %v46 = vmul.f32 %v36, %v36
  %v47 = vsub.f32 %v43, %v45
  %v48 = vsub.f32 %v44, %v46
  %v49 = vsub.f32 %v29, %v35
  %v50 = vsub.f32 %v30, %v36
  %v51 = vadd.f32 %v47, 1e-06
  %v52 = vadd.f32 %v48, 1e-06
  %v53 = vrsqrt.pop %v51
  %v54 = vrsqrt.pop %v52
  %v55 = vmul.f32 %v49, %v53
  %v56 = vmul.f32 %v50, %v54
  %v57 = vld [vmem:[%s3] sm:$0x1]
  %v59 = vlaneseq
  %v60 = vshrl.u32 %v59, 7
  %v61 = vsub.s32 0, %v60
  %v62 = vrot.slane %v57, %v61
  %v64 = vmul.f32 %v55, %v62
  %v65 = vmul.f32 %v56, %v62
  %v66 = vld [vmem:[%s4] sm:$0x1]
  %v68 = vlaneseq
  %v69 = vshrl.u32 %v68, 7
  %v70 = vsub.s32 0, %v69
  %v71 = vrot.slane %v66, %v70
  %v73 = vadd.f32 %v64, %v71
  %v74 = vadd.f32 %v65, %v71
  %v75 = vpack.c.bf16 %v74, %v73
  %v76 = vld [vmem:[#allocation2] sm:$0xff]
  %v77 = vld [vmem:[#allocation2 + $0x8] sm:$0xff]
  %v78 = vld [vmem:[%s1] sm:$0xf]
  %v79 = vld [vmem:[%s1 + $0x4] sm:$0xf]
  %v80 = vld [vmem:[%s1 + $0x8] sm:$0xf]
  %v81 = vld [vmem:[%s1 + $0xc] sm:$0xf]
  %v82 = vld [vmem:[%s1 + $0x10] sm:$0xf]
  %v83 = vld [vmem:[%s1 + $0x14] sm:$0xf]
  %v84 = vld [vmem:[%s1 + $0x18] sm:$0xf]
  %v85 = vld [vmem:[%s1 + $0x1c] sm:$0xf]
  %v86 = vld [vmem:[%s1 + $0x20] sm:$0xf]
  %v87 = vld [vmem:[%s1 + $0x24] sm:$0xf]
  %v88 = vld [vmem:[%s1 + $0x28] sm:$0xf]
  %v89 = vld [vmem:[%s1 + $0x2c] sm:$0xf]
  %v90 = vld [vmem:[%s1 + $0x30] sm:$0xf]
  %v91 = vld [vmem:[%s1 + $0x34] sm:$0xf]
  %v92 = vld [vmem:[%s1 + $0x38] sm:$0xf]
  %v93 = vld [vmem:[%s1 + $0x3c] sm:$0xf]
  %v110 = vunpack.c.l.b16 %v78
  %v111 = vunpack.c.l.b16 %v79
  %v112 = vunpack.c.l.b16 %v80
  %v113 = vunpack.c.l.b16 %v81
  %v114 = vunpack.c.l.b16 %v82
  %v115 = vunpack.c.l.b16 %v83
  %v116 = vunpack.c.l.b16 %v84
  %v117 = vunpack.c.l.b16 %v85
  %v118 = vunpack.c.l.b16 %v86
  %v119 = vunpack.c.l.b16 %v87
  %v120 = vunpack.c.l.b16 %v88
  %v121 = vunpack.c.l.b16 %v89
  %v122 = vunpack.c.l.b16 %v90
  %v123 = vunpack.c.l.b16 %v91
  %v124 = vunpack.c.l.b16 %v92
  %v125 = vunpack.c.l.b16 %v93
  %v126 = vpack.c.b16 %v111, %v110
  %v127 = vpack.c.b16 %v113, %v112
  %v128 = vpack.c.b16 %v115, %v114
  %v129 = vpack.c.b16 %v117, %v116
  %v130 = vpack.c.b16 %v119, %v118
  %v131 = vpack.c.b16 %v121, %v120
  %v132 = vpack.c.b16 %v123, %v122
  %v133 = vpack.c.b16 %v125, %v124
  %142 = vmatprep.subr.bf16.mxu0 0
  %143 = vmatpush1.bf16.msra.mxu0 %v126
  %144 = vmatprep.subr.bf16.mxu0 0
  %145 = vmatpush1.bf16.msra.mxu0 %v127
  %146 = vmatprep.subr.bf16.mxu0 0
  %147 = vmatpush1.bf16.msra.mxu0 %v128
  %148 = vmatprep.subr.bf16.mxu0 0
  %149 = vmatpush1.bf16.msra.mxu0 %v129
  %150 = vmatprep.subr.bf16.mxu0 0
  %151 = vmatpush1.bf16.msra.mxu0 %v130
  %152 = vmatprep.subr.bf16.mxu0 0
  %153 = vmatpush1.bf16.msra.mxu0 %v131
  %154 = vmatprep.subr.bf16.mxu0 0
  %155 = vmatpush1.bf16.msra.mxu0 %v132
  %156 = vmatprep.subr.bf16.mxu0 0
  %157 = vmatpush1.bf16.msra.mxu0 %v133
  %158 = vmatprep.subr.bf16.mxu0 0
  %159 = vmatpush1.bf16.msra.mxu0 0
  %160 = vmatprep.subr.bf16.mxu0 0
  %161 = vmatpush1.bf16.msra.mxu0 0
  %162 = vmatprep.subr.bf16.mxu0 0
  %163 = vmatpush1.bf16.msra.mxu0 0
  %164 = vmatprep.subr.bf16.mxu0 0
  %165 = vmatpush1.bf16.msra.mxu0 0
  %166 = vmatprep.subr.bf16.mxu0 0
  %167 = vmatpush1.bf16.msra.mxu0 0
  %168 = vmatprep.subr.bf16.mxu0 0
  %169 = vmatpush1.bf16.msra.mxu0 0
  %170 = vmatprep.subr.bf16.mxu0 0
  %171 = vmatpush1.bf16.msra.mxu0 0
  %172 = vmatprep.subr.bf16.mxu0 0
  %173 = vmatpush1.bf16.msra.mxu0 0
  %174 = vmatprep.mubr.bf16.mxu0 0
  %175 = vmatmul.mubr.bf16.gmra.mrb[0].mxu0 %v75
  %v176 = vpop.f32.mrb[0].mxu0
  %v177 = vadd.f32 0.0, %v176
  %v178 = vpop.f32.mrb[0].mxu0
  %v179 = vpop.f32.mrb[0].mxu0
  %v180 = vadd.f32 0.0, %v179
  %v181 = vpop.f32.mrb[0].mxu0
  %182 = vdwg.mxu0
  %v183 = vadd.f32 %v76, %v177
  %v184 = vadd.f32 %v77, %v180
  %185 = vst [vmem:[#allocation2] sm:$0xff] %v183
  %186 = vst [vmem:[#allocation2 + $0x8] sm:$0xff] %v184
  // Predicated region
  $region26: #{mae_forward.15} parent=0 // pred_check
    %p187 = pneg %p21
  $region27: #{mae_forward.15} parent=0 // pred_check_branch
    %189 = sbr.rel (%p187) target = $region29
  $region28: #{mae_forward.15} parent=0 // pred_region
    %v190 = vld [vmem:[#allocation2] sm:$0xff]
    %v191 = vld [vmem:[#allocation2 + $0x8] sm:$0xff]
    %v192 = vld [vmem:[%s2] sm:$0x1]
    %v194 = vlaneseq
    %v195 = vshrl.u32 %v194, 7
    %v196 = vsub.s32 0, %v195
    %v197 = vrot.slane %v192, %v196
    %v199 = vadd.f32 %v190, %v197
    %v200 = vadd.f32 %v191, %v197
    %v201 = vpack.c.bf16 %v200, %v199
    %v203 = vunpack.c.l.b16 %v201
    %v204 = vunpack.c.h.b16 %v201
    %v205 = vpack.c.b16 %v203, %v203
    %v206 = vpack.c.b16 %v204, %v204
    %209 = vst [vmem:[%s5] sm:$0xf] %v205
    %210 = vst [vmem:[%s5 + $0x4] sm:$0xf] %v206
  $region29: #{mae_forward.15} parent=0 // pred_fallthru
    _
  // Predicated region
  $region30: #{mae_forward.15} parent=0 // pred_check
    _
  $region31: #{mae_forward.15} parent=0 // pred_check_branch
    %212 = sbr.rel (0) target = $region33
  $region32: #{mae_forward.15} parent=0 // pred_region
    _
  $region33: #{mae_forward.15} parent=0 // pred_fallthru
    _
  // Predicated region
  $region34: #{mae_forward.15} parent=0 // pred_check
    _
  $region35: #{mae_forward.15} parent=0 // pred_check_branch
    %214 = sbr.rel (0) target = $region37
  $region36: #{mae_forward.15} parent=0 // pred_region
    _
  $region37: #{mae_forward.15} parent=0 // pred_fallthru
    _

// kernel: mae_forward.17
$region0: #{mae_forward.17}
  #allocation0 [shape = 'u32[]', space=smem, size = 0x4, offset = 0x4, fixed_abs, tag = 'smem constant byte address 0x4 - core index']
  #allocation1 [shape = 'u32[144,128]{1,0:T(1,128)}', space=vmem, size = 0x12000, scoped, tag = 'internal scratch']
  #allocation2 [shape = 'f32[16,128]{1,0:T(8,128)}', space=vmem, size = 0x2000, scoped, tag = 'scratch operand']
  %s0 = inlined_call_operand.vmem [shape: bf16[16,128], index: 0, kind: input, shape index: {}]
  %s1 = inlined_call_operand.vmem [shape: bf16[128,128], index: 1, kind: input, shape index: {}]
  %s2 = inlined_call_operand.vmem [shape: f32[1,128], index: 2, kind: input, shape index: {}]
  %s3 = inlined_call_operand.vmem [shape: bf16[16,128], index: 3, kind: input, shape index: {}]
  %s4 = inlined_call_operand.vmem [shape: bf16[16,128], index: 4, kind: output, shape index: {}]
  %s5 = sld [smem:[#allocation0]]
  $region34: #{mae_forward.17} parent=0
    _
  %s7 = ssub.s32 1, %s5
  %s8 = scalar_select 0, %s7, %s5
  // Predicated region
  $region2: #{mae_forward.17} parent=0 // pred_check
    _
  $region3: #{mae_forward.17} parent=0 // pred_check_branch
    %10 = sbr.rel (0) target = $region5
  $region4: #{mae_forward.17} parent=0 // pred_region
    _
  $region5: #{mae_forward.17} parent=0 // pred_fallthru
    _
  // Predicated region
  $region6: #{mae_forward.17} parent=0 // pred_check
    _
  $region7: #{mae_forward.17} parent=0 // pred_check_branch
    %12 = sbr.rel (0) target = $region9
  $region8: #{mae_forward.17} parent=0 // pred_region
    _
  $region9: #{mae_forward.17} parent=0 // pred_fallthru
    _
  // Predicated region
  $region10: #{mae_forward.17} parent=0 // pred_check
    _
  $region11: #{mae_forward.17} parent=0 // pred_check_branch
    %14 = sbr.rel (0) target = $region13
  $region12: #{mae_forward.17} parent=0 // pred_region
    _
  $region13: #{mae_forward.17} parent=0 // pred_fallthru
    _
  // Predicated region
  $region14: #{mae_forward.17} parent=0 // pred_check
    _
  $region15: #{mae_forward.17} parent=0 // pred_check_branch
    %16 = sbr.rel (0) target = $region17
  $region16: #{mae_forward.17} parent=0 // pred_region
    _
  $region17: #{mae_forward.17} parent=0 // pred_fallthru
    _
  %p18 = scmp.eq.s32.totalorder 0, 0
  // Predicated region
  $region18: #{mae_forward.17} parent=0 // pred_check
    %p19 = pneg %p18
  $region19: #{mae_forward.17} parent=0 // pred_check_branch
    %21 = sbr.rel (%p19) target = $region21
  $region20: #{mae_forward.17} parent=0 // pred_region
    %22 = vst [vmem:[#allocation2] sm:$0xff] 0.0
    %23 = vst [vmem:[#allocation2 + $0x8] sm:$0xff] 0.0
  $region21: #{mae_forward.17} parent=0 // pred_fallthru
    _
  %v24 = vld [vmem:[%s0] sm:$0xf]
  %v25 = vld [vmem:[%s0 + $0x4] sm:$0xf]
  %v26 = vld [vmem:[#allocation2] sm:$0xff]
  %v27 = vld [vmem:[#allocation2 + $0x8] sm:$0xff]
  %v28 = vld [vmem:[%s1] sm:$0xf]
  %v29 = vld [vmem:[%s1 + $0x4] sm:$0xf]
  %v30 = vld [vmem:[%s1 + $0x8] sm:$0xf]
  %v31 = vld [vmem:[%s1 + $0xc] sm:$0xf]
  %v32 = vld [vmem:[%s1 + $0x10] sm:$0xf]
  %v33 = vld [vmem:[%s1 + $0x14] sm:$0xf]
  %v34 = vld [vmem:[%s1 + $0x18] sm:$0xf]
  %v35 = vld [vmem:[%s1 + $0x1c] sm:$0xf]
  %v36 = vld [vmem:[%s1 + $0x20] sm:$0xf]
  %v37 = vld [vmem:[%s1 + $0x24] sm:$0xf]
  %v38 = vld [vmem:[%s1 + $0x28] sm:$0xf]
  %v39 = vld [vmem:[%s1 + $0x2c] sm:$0xf]
  %v40 = vld [vmem:[%s1 + $0x30] sm:$0xf]
  %v41 = vld [vmem:[%s1 + $0x34] sm:$0xf]
  %v42 = vld [vmem:[%s1 + $0x38] sm:$0xf]
  %v43 = vld [vmem:[%s1 + $0x3c] sm:$0xf]
  %v46 = vunpack.c.l.b16 %v24
  %v47 = vunpack.c.l.b16 %v25
  %v48 = vpack.c.b16 %v47, %v46
  %v66 = vunpack.c.l.b16 %v28
  %v67 = vunpack.c.l.b16 %v29
  %v68 = vunpack.c.l.b16 %v30
  %v69 = vunpack.c.l.b16 %v31
  %v70 = vunpack.c.l.b16 %v32
  %v71 = vunpack.c.l.b16 %v33
  %v72 = vunpack.c.l.b16 %v34
  %v73 = vunpack.c.l.b16 %v35
  %v74 = vunpack.c.l.b16 %v36
  %v75 = vunpack.c.l.b16 %v37
  %v76 = vunpack.c.l.b16 %v38
  %v77 = vunpack.c.l.b16 %v39
  %v78 = vunpack.c.l.b16 %v40
  %v79 = vunpack.c.l.b16 %v41
  %v80 = vunpack.c.l.b16 %v42
  %v81 = vunpack.c.l.b16 %v43
  %v82 = vpack.c.b16 %v67, %v66
  %v83 = vpack.c.b16 %v69, %v68
  %v84 = vpack.c.b16 %v71, %v70
  %v85 = vpack.c.b16 %v73, %v72
  %v86 = vpack.c.b16 %v75, %v74
  %v87 = vpack.c.b16 %v77, %v76
  %v88 = vpack.c.b16 %v79, %v78
  %v89 = vpack.c.b16 %v81, %v80
  %98 = vmatprep.subr.bf16.mxu0 0
  %99 = vmatpush1.bf16.msra.mxu0 %v82
  %100 = vmatprep.subr.bf16.mxu0 0
  %101 = vmatpush1.bf16.msra.mxu0 %v83
  %102 = vmatprep.subr.bf16.mxu0 0
  %103 = vmatpush1.bf16.msra.mxu0 %v84
  %104 = vmatprep.subr.bf16.mxu0 0
  %105 = vmatpush1.bf16.msra.mxu0 %v85
  %106 = vmatprep.subr.bf16.mxu0 0
  %107 = vmatpush1.bf16.msra.mxu0 %v86
  %108 = vmatprep.subr.bf16.mxu0 0
  %109 = vmatpush1.bf16.msra.mxu0 %v87
  %110 = vmatprep.subr.bf16.mxu0 0
  %111 = vmatpush1.bf16.msra.mxu0 %v88
  %112 = vmatprep.subr.bf16.mxu0 0
  %113 = vmatpush1.bf16.msra.mxu0 %v89
  %114 = vmatprep.subr.bf16.mxu0 0
  %115 = vmatpush1.bf16.msra.mxu0 0
  %116 = vmatprep.subr.bf16.mxu0 0
  %117 = vmatpush1.bf16.msra.mxu0 0
  %118 = vmatprep.subr.bf16.mxu0 0
  %119 = vmatpush1.bf16.msra.mxu0 0
  %120 = vmatprep.subr.bf16.mxu0 0
  %121 = vmatpush1.bf16.msra.mxu0 0
  %122 = vmatprep.subr.bf16.mxu0 0
  %123 = vmatpush1.bf16.msra.mxu0 0
  %124 = vmatprep.subr.bf16.mxu0 0
  %125 = vmatpush1.bf16.msra.mxu0 0
  %126 = vmatprep.subr.bf16.mxu0 0
  %127 = vmatpush1.bf16.msra.mxu0 0
  %128 = vmatprep.subr.bf16.mxu0 0
  %129 = vmatpush1.bf16.msra.mxu0 0
  %130 = vmatprep.mubr.bf16.mxu0 0
  %131 = vmatmul.mubr.bf16.gmra.mrb[0].mxu0 %v48
  %v132 = vpop.f32.mrb[0].mxu0
  %v133 = vadd.f32 0.0, %v132
  %v134 = vpop.f32.mrb[0].mxu0
  %v135 = vpop.f32.mrb[0].mxu0
  %v136 = vadd.f32 0.0, %v135
  %v137 = vpop.f32.mrb[0].mxu0
  %138 = vdwg.mxu0
  %v139 = vadd.f32 %v26, %v133
  %v140 = vadd.f32 %v27, %v136
  %141 = vst [vmem:[#allocation2] sm:$0xff] %v139
  %142 = vst [vmem:[#allocation2 + $0x8] sm:$0xff] %v140
  // Predicated region
  $region22: #{mae_forward.17} parent=0 // pred_check
    %p143 = pneg %p18
  $region23: #{mae_forward.17} parent=0 // pred_check_branch
    %145 = sbr.rel (%p143) target = $region25
  $region24: #{mae_forward.17} parent=0 // pred_region
    %v146 = vld [vmem:[#allocation2] sm:$0xff]
    %v147 = vld [vmem:[#allocation2 + $0x8] sm:$0xff]
    %v148 = vld [vmem:[%s2] sm:$0x1]
    %v150 = vlaneseq
    %v151 = vshrl.u32 %v150, 7
    %v152 = vsub.s32 0, %v151
    %v153 = vrot.slane %v148, %v152
    %v155 = vadd.f32 %v146, %v153
    %v156 = vadd.f32 %v147, %v153
    %v157 = vld [vmem:[%s3] sm:$0xf]
    %v158 = vld [vmem:[%s3 + $0x4] sm:$0xf]
    %v159 = vunpack.c.l.bf16 %v157
    %v160 = vunpack.c.l.bf16 %v158
    %v161 = vadd.f32 %v155, %v159
    %v162 = vadd.f32 %v156, %v160
    %v163 = vpack.c.bf16 %v162, %v161
    %v165 = vunpack.c.l.b16 %v163
    %v166 = vunpack.c.h.b16 %v163
    %v167 = vpack.c.b16 %v165, %v165
    %v168 = vpack.c.b16 %v166, %v166
    %171 = vst [vmem:[%s4] sm:$0xf] %v167
    %172 = vst [vmem:[%s4 + $0x4] sm:$0xf] %v168
  $region25: #{mae_forward.17} parent=0 // pred_fallthru
    _
  // Predicated region
  $region26: #{mae_forward.17} parent=0 // pred_check
    _
  $region27: #{mae_forward.17} parent=0 // pred_check_branch
    %174 = sbr.rel (0) target = $region29
  $region28: #{mae_forward.17} parent=0 // pred_region
    _
  $region29: #{mae_forward.17} parent=0 // pred_fallthru
    _
  // Predicated region
  $region30: #{mae_forward.17} parent=0 // pred_check
    _
  $region31: #{mae_forward.17} parent=0 // pred_check_branch
    %176 = sbr.rel (0) target = $region33
  $region32: #{mae_forward.17} parent=0 // pred_region
    _
  $region33: #{mae_forward.17} parent=0 // pred_fallthru
    _

// kernel: mae_forward.18
$region0: #{mae_forward.18}
  #allocation0 [shape = 'u32[]', space=smem, size = 0x4, offset = 0x4, fixed_abs, tag = 'smem constant byte address 0x4 - core index']
  #allocation1 [shape = 'u32[144,128]{1,0:T(1,128)}', space=vmem, size = 0x12000, scoped, tag = 'internal scratch']
  #allocation2 [shape = 'f32[16,128]{1,0:T(8,128)}', space=vmem, size = 0x2000, scoped, tag = 'scratch operand']
  %s0 = inlined_call_operand.vmem [shape: bf16[16,128], index: 0, kind: input, shape index: {}]
  %s1 = inlined_call_operand.vmem [shape: bf16[128,128], index: 1, kind: input, shape index: {}]
  %s2 = inlined_call_operand.vmem [shape: f32[1,128], index: 2, kind: input, shape index: {}]
  %s3 = inlined_call_operand.vmem [shape: f32[1,128], index: 3, kind: input, shape index: {}]
  %s4 = inlined_call_operand.vmem [shape: f32[1,128], index: 4, kind: input, shape index: {}]
  %s5 = inlined_call_operand.vmem [shape: bf16[16,128], index: 5, kind: output, shape index: {}]
  %s6 = sld [smem:[#allocation0]]
  $region38: #{mae_forward.18} parent=0
    _
  %s8 = ssub.s32 1, %s6
  %s9 = scalar_select 0, %s8, %s6
  // Predicated region
  $region2: #{mae_forward.18} parent=0 // pred_check
    _
  $region3: #{mae_forward.18} parent=0 // pred_check_branch
    %11 = sbr.rel (0) target = $region5
  $region4: #{mae_forward.18} parent=0 // pred_region
    _
  $region5: #{mae_forward.18} parent=0 // pred_fallthru
    _
  // Predicated region
  $region6: #{mae_forward.18} parent=0 // pred_check
    _
  $region7: #{mae_forward.18} parent=0 // pred_check_branch
    %13 = sbr.rel (0) target = $region9
  $region8: #{mae_forward.18} parent=0 // pred_region
    _
  $region9: #{mae_forward.18} parent=0 // pred_fallthru
    _
  // Predicated region
  $region10: #{mae_forward.18} parent=0 // pred_check
    _
  $region11: #{mae_forward.18} parent=0 // pred_check_branch
    %15 = sbr.rel (0) target = $region13
  $region12: #{mae_forward.18} parent=0 // pred_region
    _
  $region13: #{mae_forward.18} parent=0 // pred_fallthru
    _
  // Predicated region
  $region14: #{mae_forward.18} parent=0 // pred_check
    _
  $region15: #{mae_forward.18} parent=0 // pred_check_branch
    %17 = sbr.rel (0) target = $region17
  $region16: #{mae_forward.18} parent=0 // pred_region
    _
  $region17: #{mae_forward.18} parent=0 // pred_fallthru
    _
  // Predicated region
  $region18: #{mae_forward.18} parent=0 // pred_check
    _
  $region19: #{mae_forward.18} parent=0 // pred_check_branch
    %19 = sbr.rel (0) target = $region21
  $region20: #{mae_forward.18} parent=0 // pred_region
    _
  $region21: #{mae_forward.18} parent=0 // pred_fallthru
    _
  %p21 = scmp.eq.s32.totalorder 0, 0
  // Predicated region
  $region22: #{mae_forward.18} parent=0 // pred_check
    %p22 = pneg %p21
  $region23: #{mae_forward.18} parent=0 // pred_check_branch
    %24 = sbr.rel (%p22) target = $region25
  $region24: #{mae_forward.18} parent=0 // pred_region
    %25 = vst [vmem:[#allocation2] sm:$0xff] 0.0
    %26 = vst [vmem:[#allocation2 + $0x8] sm:$0xff] 0.0
  $region25: #{mae_forward.18} parent=0 // pred_fallthru
    _
  %v27 = vld [vmem:[%s0] sm:$0xf]
  %v28 = vld [vmem:[%s0 + $0x4] sm:$0xf]
  %v29 = vunpack.c.l.bf16 %v27
  %v30 = vunpack.c.l.bf16 %v28
  %31 = vadd.xlane.f32.xlu0 %v29
  %v32 = vpop.xlane.xlu0 %31
  %33 = vadd.xlane.f32.xlu0 %v30
  %v34 = vpop.xlane.xlu0 %33
  %v35 = vmul.f32 %v32, 0.03125
  %v36 = vmul.f32 %v34, 0.03125
  %v37 = vmul.f32 %v29, %v29
  %v38 = vmul.f32 %v30, %v30
  %39 = vadd.xlane.f32.xlu0 %v37
  %v40 = vpop.xlane.xlu0 %39
  %41 = vadd.xlane.f32.xlu0 %v38
  %v42 = vpop.xlane.xlu0 %41
  %v43 = vmul.f32 %v40, 0.03125
  %v44 = vmul.f32 %v42, 0.03125
  %v45 = vmul.f32 %v35, %v35
  %v46 = vmul.f32 %v36, %v36
  %v47 = vsub.f32 %v43, %v45
  %v48 = vsub.f32 %v44, %v46
  %v49 = vsub.f32 %v29, %v35
  %v50 = vsub.f32 %v30, %v36
  %v51 = vadd.f32 %v47, 1e-06
  %v52 = vadd.f32 %v48, 1e-06
  %v53 = vrsqrt.pop %v51
  %v54 = vrsqrt.pop %v52
  %v55 = vmul.f32 %v49, %v53
  %v56 = vmul.f32 %v50, %v54
  %v57 = vld [vmem:[%s3] sm:$0x1]
  %v59 = vlaneseq
  %v60 = vshrl.u32 %v59, 7
  %v61 = vsub.s32 0, %v60
  %v62 = vrot.slane %v57, %v61
  %v64 = vmul.f32 %v55, %v62
  %v65 = vmul.f32 %v56, %v62
  %v66 = vld [vmem:[%s4] sm:$0x1]
  %v68 = vlaneseq
  %v69 = vshrl.u32 %v68, 7
  %v70 = vsub.s32 0, %v69
  %v71 = vrot.slane %v66, %v70
  %v73 = vadd.f32 %v64, %v71
  %v74 = vadd.f32 %v65, %v71
  %v75 = vpack.c.bf16 %v74, %v73
  %v76 = vld [vmem:[#allocation2] sm:$0xff]
  %v77 = vld [vmem:[#allocation2 + $0x8] sm:$0xff]
  %v78 = vld [vmem:[%s1] sm:$0xf]
  %v79 = vld [vmem:[%s1 + $0x4] sm:$0xf]
  %v80 = vld [vmem:[%s1 + $0x8] sm:$0xf]
  %v81 = vld [vmem:[%s1 + $0xc] sm:$0xf]
  %v82 = vld [vmem:[%s1 + $0x10] sm:$0xf]
  %v83 = vld [vmem:[%s1 + $0x14] sm:$0xf]
  %v84 = vld [vmem:[%s1 + $0x18] sm:$0xf]
  %v85 = vld [vmem:[%s1 + $0x1c] sm:$0xf]
  %v86 = vld [vmem:[%s1 + $0x20] sm:$0xf]
  %v87 = vld [vmem:[%s1 + $0x24] sm:$0xf]
  %v88 = vld [vmem:[%s1 + $0x28] sm:$0xf]
  %v89 = vld [vmem:[%s1 + $0x2c] sm:$0xf]
  %v90 = vld [vmem:[%s1 + $0x30] sm:$0xf]
  %v91 = vld [vmem:[%s1 + $0x34] sm:$0xf]
  %v92 = vld [vmem:[%s1 + $0x38] sm:$0xf]
  %v93 = vld [vmem:[%s1 + $0x3c] sm:$0xf]
  %v110 = vunpack.c.l.b16 %v78
  %v111 = vunpack.c.l.b16 %v79
  %v112 = vunpack.c.l.b16 %v80
  %v113 = vunpack.c.l.b16 %v81
  %v114 = vunpack.c.l.b16 %v82
  %v115 = vunpack.c.l.b16 %v83
  %v116 = vunpack.c.l.b16 %v84
  %v117 = vunpack.c.l.b16 %v85
  %v118 = vunpack.c.l.b16 %v86
  %v119 = vunpack.c.l.b16 %v87
  %v120 = vunpack.c.l.b16 %v88
  %v121 = vunpack.c.l.b16 %v89
  %v122 = vunpack.c.l.b16 %v90
  %v123 = vunpack.c.l.b16 %v91
  %v124 = vunpack.c.l.b16 %v92
  %v125 = vunpack.c.l.b16 %v93
  %v126 = vpack.c.b16 %v111, %v110
  %v127 = vpack.c.b16 %v113, %v112
  %v128 = vpack.c.b16 %v115, %v114
  %v129 = vpack.c.b16 %v117, %v116
  %v130 = vpack.c.b16 %v119, %v118
  %v131 = vpack.c.b16 %v121, %v120
  %v132 = vpack.c.b16 %v123, %v122
  %v133 = vpack.c.b16 %v125, %v124
  %142 = vmatprep.subr.bf16.mxu0 0
  %143 = vmatpush1.bf16.msra.mxu0 %v126
  %144 = vmatprep.subr.bf16.mxu0 0
  %145 = vmatpush1.bf16.msra.mxu0 %v127
  %146 = vmatprep.subr.bf16.mxu0 0
  %147 = vmatpush1.bf16.msra.mxu0 %v128
  %148 = vmatprep.subr.bf16.mxu0 0
  %149 = vmatpush1.bf16.msra.mxu0 %v129
  %150 = vmatprep.subr.bf16.mxu0 0
  %151 = vmatpush1.bf16.msra.mxu0 %v130
  %152 = vmatprep.subr.bf16.mxu0 0
  %153 = vmatpush1.bf16.msra.mxu0 %v131
  %154 = vmatprep.subr.bf16.mxu0 0
  %155 = vmatpush1.bf16.msra.mxu0 %v132
  %156 = vmatprep.subr.bf16.mxu0 0
  %157 = vmatpush1.bf16.msra.mxu0 %v133
  %158 = vmatprep.subr.bf16.mxu0 0
  %159 = vmatpush1.bf16.msra.mxu0 0
  %160 = vmatprep.subr.bf16.mxu0 0
  %161 = vmatpush1.bf16.msra.mxu0 0
  %162 = vmatprep.subr.bf16.mxu0 0
  %163 = vmatpush1.bf16.msra.mxu0 0
  %164 = vmatprep.subr.bf16.mxu0 0
  %165 = vmatpush1.bf16.msra.mxu0 0
  %166 = vmatprep.subr.bf16.mxu0 0
  %167 = vmatpush1.bf16.msra.mxu0 0
  %168 = vmatprep.subr.bf16.mxu0 0
  %169 = vmatpush1.bf16.msra.mxu0 0
  %170 = vmatprep.subr.bf16.mxu0 0
  %171 = vmatpush1.bf16.msra.mxu0 0
  %172 = vmatprep.subr.bf16.mxu0 0
  %173 = vmatpush1.bf16.msra.mxu0 0
  %174 = vmatprep.mubr.bf16.mxu0 0
  %175 = vmatmul.mubr.bf16.gmra.mrb[0].mxu0 %v75
  %v176 = vpop.f32.mrb[0].mxu0
  %v177 = vadd.f32 0.0, %v176
  %v178 = vpop.f32.mrb[0].mxu0
  %v179 = vpop.f32.mrb[0].mxu0
  %v180 = vadd.f32 0.0, %v179
  %v181 = vpop.f32.mrb[0].mxu0
  %182 = vdwg.mxu0
  %v183 = vadd.f32 %v76, %v177
  %v184 = vadd.f32 %v77, %v180
  %185 = vst [vmem:[#allocation2] sm:$0xff] %v183
  %186 = vst [vmem:[#allocation2 + $0x8] sm:$0xff] %v184
  // Predicated region
  $region26: #{mae_forward.18} parent=0 // pred_check
    %p187 = pneg %p21
  $region27: #{mae_forward.18} parent=0 // pred_check_branch
    %189 = sbr.rel (%p187) target = $region29
  $region28: #{mae_forward.18} parent=0 // pred_region
    %v190 = vld [vmem:[#allocation2] sm:$0xff]
    %v191 = vld [vmem:[#allocation2 + $0x8] sm:$0xff]
    %v192 = vld [vmem:[%s2] sm:$0x1]
    %v194 = vlaneseq
    %v195 = vshrl.u32 %v194, 7
    %v196 = vsub.s32 0, %v195
    %v197 = vrot.slane %v192, %v196
    %v199 = vadd.f32 %v190, %v197
    %v200 = vadd.f32 %v191, %v197
    %v201 = vmul.f32 %v199, 0.5
    %v202 = vmul.f32 %v200, 0.5
    %v203 = vmul.f32 %v199, 0.044715
    %v204 = vmul.f32 %v200, 0.044715
    %v205 = vmul.f32 %v203, %v199
    %v206 = vmul.f32 %v204, %v200
    %v207 = vmul.f32 %v205, %v199
    %v208 = vmul.f32 %v206, %v200
    %v209 = vadd.f32 %v199, %v207
    %v210 = vadd.f32 %v200, %v208
    %v211 = vmul.f32 %v209, 0.7978846
    %v212 = vmul.f32 %v210, 0.7978846
    %v213 = vtanh.pop %v211
    %v214 = vtanh.pop %v212
    %v215 = vadd.f32 %v213, 1.0
    %v216 = vadd.f32 %v214, 1.0
    %v217 = vmul.f32 %v201, %v215
    %v218 = vmul.f32 %v202, %v216
    %v219 = vpack.c.bf16 %v218, %v217
    %v221 = vunpack.c.l.b16 %v219
    %v222 = vunpack.c.h.b16 %v219
    %v223 = vpack.c.b16 %v221, %v221
    %v224 = vpack.c.b16 %v222, %v222
    %227 = vst [vmem:[%s5] sm:$0xf] %v223
    %228 = vst [vmem:[%s5 + $0x4] sm:$0xf] %v224
  $region29: #{mae_forward.18} parent=0 // pred_fallthru
    _
  // Predicated region
  $region30: #{mae_forward.18} parent=0 // pred_check
    _
  $region31: #{mae_forward.18} parent=0 // pred_check_branch
    %230 = sbr.rel (0) target = $region33
  $region32: #{mae_forward.18} parent=0 // pred_region
    _
  $region33: #{mae_forward.18} parent=0 // pred_fallthru
    _
  // Predicated region
  $region34: #{mae_forward.18} parent=0 // pred_check
    _
  $region35: #{mae_forward.18} parent=0 // pred_check_branch
    %232 = sbr.rel (0) target = $region37
  $region36: #{mae_forward.18} parent=0 // pred_region
    _
  $region37: #{mae_forward.18} parent=0 // pred_fallthru
    _

// kernel: mae_forward.23
$region0: #{mae_forward.23}
  #allocation0 [shape = 'u32[]', space=smem, size = 0x4, offset = 0x4, fixed_abs, tag = 'smem constant byte address 0x4 - core index']
  #allocation1 [shape = 'u32[144,128]{1,0:T(1,128)}', space=vmem, size = 0x12000, scoped, tag = 'internal scratch']
  #allocation2 [shape = 'f32[40,128]{1,0:T(8,128)}', space=vmem, size = 0x5000, scoped, tag = 'scratch operand']
  %s0 = inlined_call_operand.vmem [shape: bf16[40,128], index: 0, kind: input, shape index: {}]
  %s1 = inlined_call_operand.vmem [shape: bf16[128,128], index: 1, kind: input, shape index: {}]
  %s2 = inlined_call_operand.vmem [shape: f32[1,128], index: 2, kind: input, shape index: {}]
  %s3 = inlined_call_operand.vmem [shape: bf16[40,128], index: 3, kind: input, shape index: {}]
  %s4 = inlined_call_operand.vmem [shape: bf16[40,128], index: 4, kind: output, shape index: {}]
  %s5 = sld [smem:[#allocation0]]
  $region34: #{mae_forward.23} parent=0
    _
  %s7 = ssub.s32 1, %s5
  %s8 = scalar_select 0, %s7, %s5
  // Predicated region
  $region2: #{mae_forward.23} parent=0 // pred_check
    _
  $region3: #{mae_forward.23} parent=0 // pred_check_branch
    %10 = sbr.rel (0) target = $region5
  $region4: #{mae_forward.23} parent=0 // pred_region
    _
  $region5: #{mae_forward.23} parent=0 // pred_fallthru
    _
  // Predicated region
  $region6: #{mae_forward.23} parent=0 // pred_check
    _
  $region7: #{mae_forward.23} parent=0 // pred_check_branch
    %12 = sbr.rel (0) target = $region9
  $region8: #{mae_forward.23} parent=0 // pred_region
    _
  $region9: #{mae_forward.23} parent=0 // pred_fallthru
    _
  // Predicated region
  $region10: #{mae_forward.23} parent=0 // pred_check
    _
  $region11: #{mae_forward.23} parent=0 // pred_check_branch
    %14 = sbr.rel (0) target = $region13
  $region12: #{mae_forward.23} parent=0 // pred_region
    _
  $region13: #{mae_forward.23} parent=0 // pred_fallthru
    _
  // Predicated region
  $region14: #{mae_forward.23} parent=0 // pred_check
    _
  $region15: #{mae_forward.23} parent=0 // pred_check_branch
    %16 = sbr.rel (0) target = $region17
  $region16: #{mae_forward.23} parent=0 // pred_region
    _
  $region17: #{mae_forward.23} parent=0 // pred_fallthru
    _
  %p18 = scmp.eq.s32.totalorder 0, 0
  // Predicated region
  $region18: #{mae_forward.23} parent=0 // pred_check
    %p19 = pneg %p18
  $region19: #{mae_forward.23} parent=0 // pred_check_branch
    %21 = sbr.rel (%p19) target = $region21
  $region20: #{mae_forward.23} parent=0 // pred_region
    %22 = vst [vmem:[#allocation2] sm:$0xff] 0.0
    %23 = vst [vmem:[#allocation2 + $0x8] sm:$0xff] 0.0
    %24 = vst [vmem:[#allocation2 + $0x10] sm:$0xff] 0.0
    %25 = vst [vmem:[#allocation2 + $0x18] sm:$0xff] 0.0
    %26 = vst [vmem:[#allocation2 + $0x20] sm:$0xff] 0.0
  $region21: #{mae_forward.23} parent=0 // pred_fallthru
    _
  %v27 = vld [vmem:[%s0] sm:$0xf]
  %v28 = vld [vmem:[%s0 + $0x4] sm:$0xf]
  %v29 = vld [vmem:[%s0 + $0x8] sm:$0xf]
  %v30 = vld [vmem:[%s0 + $0xc] sm:$0xf]
  %v31 = vld [vmem:[%s0 + $0x10] sm:$0xf]
  %v32 = vld [vmem:[#allocation2] sm:$0xff]
  %v33 = vld [vmem:[#allocation2 + $0x8] sm:$0xff]
  %v34 = vld [vmem:[#allocation2 + $0x10] sm:$0xff]
  %v35 = vld [vmem:[#allocation2 + $0x18] sm:$0xff]
  %v36 = vld [vmem:[#allocation2 + $0x20] sm:$0xff]
  %v37 = vld [vmem:[%s1] sm:$0xf]
  %v38 = vld [vmem:[%s1 + $0x4] sm:$0xf]
  %v39 = vld [vmem:[%s1 + $0x8] sm:$0xf]
  %v40 = vld [vmem:[%s1 + $0xc] sm:$0xf]
  %v41 = vld [vmem:[%s1 + $0x10] sm:$0xf]
  %v42 = vld [vmem:[%s1 + $0x14] sm:$0xf]
  %v43 = vld [vmem:[%s1 + $0x18] sm:$0xf]
  %v44 = vld [vmem:[%s1 + $0x1c] sm:$0xf]
  %v45 = vld [vmem:[%s1 + $0x20] sm:$0xf]
  %v46 = vld [vmem:[%s1 + $0x24] sm:$0xf]
  %v47 = vld [vmem:[%s1 + $0x28] sm:$0xf]
  %v48 = vld [vmem:[%s1 + $0x2c] sm:$0xf]
  %v49 = vld [vmem:[%s1 + $0x30] sm:$0xf]
  %v50 = vld [vmem:[%s1 + $0x34] sm:$0xf]
  %v51 = vld [vmem:[%s1 + $0x38] sm:$0xf]
  %v52 = vld [vmem:[%s1 + $0x3c] sm:$0xf]
  %v58 = vunpack.c.l.b16 %v27
  %v59 = vunpack.c.l.b16 %v28
  %v60 = vunpack.c.l.b16 %v29
  %v61 = vunpack.c.l.b16 %v30
  %v62 = vunpack.c.l.b16 %v31
  %v63 = vpack.c.b16 %v59, %v58
  %v64 = vpack.c.b16 %v61, %v60
  %v65 = vpack.c.b16 %v62, %v62
  %v85 = vunpack.c.l.b16 %v37
  %v86 = vunpack.c.l.b16 %v38
  %v87 = vunpack.c.l.b16 %v39
  %v88 = vunpack.c.l.b16 %v40
  %v89 = vunpack.c.l.b16 %v41
  %v90 = vunpack.c.l.b16 %v42
  %v91 = vunpack.c.l.b16 %v43
  %v92 = vunpack.c.l.b16 %v44
  %v93 = vunpack.c.l.b16 %v45
  %v94 = vunpack.c.l.b16 %v46
  %v95 = vunpack.c.l.b16 %v47
  %v96 = vunpack.c.l.b16 %v48
  %v97 = vunpack.c.l.b16 %v49
  %v98 = vunpack.c.l.b16 %v50
  %v99 = vunpack.c.l.b16 %v51
  %v100 = vunpack.c.l.b16 %v52
  %v101 = vpack.c.b16 %v86, %v85
  %v102 = vpack.c.b16 %v88, %v87
  %v103 = vpack.c.b16 %v90, %v89
  %v104 = vpack.c.b16 %v92, %v91
  %v105 = vpack.c.b16 %v94, %v93
  %v106 = vpack.c.b16 %v96, %v95
  %v107 = vpack.c.b16 %v98, %v97
  %v108 = vpack.c.b16 %v100, %v99
  %117 = vmatprep.subr.bf16.mxu0 0
  %118 = vmatpush1.bf16.msra.mxu0 %v101
  %119 = vmatprep.subr.bf16.mxu0 0
  %120 = vmatpush1.bf16.msra.mxu0 %v102
  %121 = vmatprep.subr.bf16.mxu0 0
  %122 = vmatpush1.bf16.msra.mxu0 %v103
  %123 = vmatprep.subr.bf16.mxu0 0
  %124 = vmatpush1.bf16.msra.mxu0 %v104
  %125 = vmatprep.subr.bf16.mxu0 0
  %126 = vmatpush1.bf16.msra.mxu0 %v105
  %127 = vmatprep.subr.bf16.mxu0 0
  %128 = vmatpush1.bf16.msra.mxu0 %v106
  %129 = vmatprep.subr.bf16.mxu0 0
  %130 = vmatpush1.bf16.msra.mxu0 %v107
  %131 = vmatprep.subr.bf16.mxu0 0
  %132 = vmatpush1.bf16.msra.mxu0 %v108
  %133 = vmatprep.subr.bf16.mxu0 0
  %134 = vmatpush1.bf16.msra.mxu0 0
  %135 = vmatprep.subr.bf16.mxu0 0
  %136 = vmatpush1.bf16.msra.mxu0 0
  %137 = vmatprep.subr.bf16.mxu0 0
  %138 = vmatpush1.bf16.msra.mxu0 0
  %139 = vmatprep.subr.bf16.mxu0 0
  %140 = vmatpush1.bf16.msra.mxu0 0
  %141 = vmatprep.subr.bf16.mxu0 0
  %142 = vmatpush1.bf16.msra.mxu0 0
  %143 = vmatprep.subr.bf16.mxu0 0
  %144 = vmatpush1.bf16.msra.mxu0 0
  %145 = vmatprep.subr.bf16.mxu0 0
  %146 = vmatpush1.bf16.msra.mxu0 0
  %147 = vmatprep.subr.bf16.mxu0 0
  %148 = vmatpush1.bf16.msra.mxu0 0
  %149 = vmatprep.mubr.bf16.mxu0 0
  %150 = vmatmul.mubr.bf16.gmra.mrb[0].mxu0 %v63
  %v151 = vpop.f32.mrb[0].mxu0
  %v152 = vadd.f32 0.0, %v151
  %v153 = vpop.f32.mrb[0].mxu0
  %v154 = vpop.f32.mrb[0].mxu0
  %v155 = vadd.f32 0.0, %v154
  %v156 = vpop.f32.mrb[0].mxu0
  %157 = vmatprep.mubr.bf16.mxu0 0
  %158 = vmatmul.mubr.bf16.gmra.mrb[0].mxu0 %v64
  %v159 = vpop.f32.mrb[0].mxu0
  %v160 = vadd.f32 0.0, %v159
  %v161 = vpop.f32.mrb[0].mxu0
  %v162 = vpop.f32.mrb[0].mxu0
  %v163 = vadd.f32 0.0, %v162
  %v164 = vpop.f32.mrb[0].mxu0
  %165 = vmatprep.mubr.bf16.mxu0 0
  %166 = vmatmul.mubr.bf16.gmra.mrb[0].mxu0 %v65
  %v167 = vpop.f32.mrb[0].mxu0
  %v168 = vadd.f32 0.0, %v167
  %v169 = vpop.f32.mrb[0].mxu0
  %v170 = vpop.f32.mrb[0].mxu0
  %v171 = vpop.f32.mrb[0].mxu0
  %172 = vdwg.mxu0
  %v173 = vadd.f32 %v32, %v152
  %v174 = vadd.f32 %v33, %v155
  %v175 = vadd.f32 %v34, %v160
  %v176 = vadd.f32 %v35, %v163
  %v177 = vadd.f32 %v36, %v168
  %178 = vst [vmem:[#allocation2] sm:$0xff] %v173
  %179 = vst [vmem:[#allocation2 + $0x8] sm:$0xff] %v174
  %180 = vst [vmem:[#allocation2 + $0x10] sm:$0xff] %v175
  %181 = vst [vmem:[#allocation2 + $0x18] sm:$0xff] %v176
  %182 = vst [vmem:[#allocation2 + $0x20] sm:$0xff] %v177
  // Predicated region
  $region22: #{mae_forward.23} parent=0 // pred_check
    %p183 = pneg %p18
  $region23: #{mae_forward.23} parent=0 // pred_check_branch
    %185 = sbr.rel (%p183) target = $region25
  $region24: #{mae_forward.23} parent=0 // pred_region
    %v186 = vld [vmem:[#allocation2] sm:$0xff]
    %v187 = vld [vmem:[#allocation2 + $0x8] sm:$0xff]
    %v188 = vld [vmem:[#allocation2 + $0x10] sm:$0xff]
    %v189 = vld [vmem:[#allocation2 + $0x18] sm:$0xff]
    %v190 = vld [vmem:[#allocation2 + $0x20] sm:$0xff]
    %v191 = vld [vmem:[%s2] sm:$0x1]
    %v193 = vlaneseq
    %v194 = vshrl.u32 %v193, 7
    %v195 = vsub.s32 0, %v194
    %v196 = vrot.slane %v191, %v195
    %v198 = vadd.f32 %v186, %v196
    %v199 = vadd.f32 %v187, %v196
    %v200 = vadd.f32 %v188, %v196
    %v201 = vadd.f32 %v189, %v196
    %v202 = vadd.f32 %v190, %v196
    %v203 = vld [vmem:[%s3] sm:$0xf]
    %v204 = vld [vmem:[%s3 + $0x4] sm:$0xf]
    %v205 = vld [vmem:[%s3 + $0x8] sm:$0xf]
    %v206 = vld [vmem:[%s3 + $0xc] sm:$0xf]
    %v207 = vld [vmem:[%s3 + $0x10] sm:$0xf]
    %v208 = vunpack.c.l.bf16 %v203
    %v209 = vunpack.c.l.bf16 %v204
    %v210 = vunpack.c.l.bf16 %v205
    %v211 = vunpack.c.l.bf16 %v206
    %v212 = vunpack.c.l.bf16 %v207
    %v213 = vadd.f32 %v198, %v208
    %v214 = vadd.f32 %v199, %v209
    %v215 = vadd.f32 %v200, %v210
    %v216 = vadd.f32 %v201, %v211
    %v217 = vadd.f32 %v202, %v212
    %v218 = vpack.c.bf16 %v214, %v213
    %v219 = vpack.c.bf16 %v216, %v215
    %v220 = vpack.c.bf16 %v217, %v217
    %v224 = vunpack.c.l.b16 %v218
    %v225 = vunpack.c.h.b16 %v218
    %v226 = vunpack.c.l.b16 %v219
    %v227 = vunpack.c.h.b16 %v219
    %v228 = vunpack.c.l.b16 %v220
    %v229 = vpack.c.b16 %v224, %v224
    %v230 = vpack.c.b16 %v225, %v225
    %v231 = vpack.c.b16 %v226, %v226
    %v232 = vpack.c.b16 %v227, %v227
    %v233 = vpack.c.b16 %v228, %v228
    %239 = vst [vmem:[%s4] sm:$0xf] %v229
    %240 = vst [vmem:[%s4 + $0x4] sm:$0xf] %v230
    %241 = vst [vmem:[%s4 + $0x8] sm:$0xf] %v231
    %242 = vst [vmem:[%s4 + $0xc] sm:$0xf] %v232
    %243 = vst [vmem:[%s4 + $0x10] sm:$0xf] %v233
  $region25: #{mae_forward.23} parent=0 // pred_fallthru
    _
  // Predicated region
  $region26: #{mae_forward.23} parent=0 // pred_check
    _
  $region27: #{mae_forward.23} parent=0 // pred_check_branch
    %245 = sbr.rel (0) target = $region29
  $region28: #{mae_forward.23} parent=0 // pred_region
    _
  $region29: #{mae_forward.23} parent=0 // pred_fallthru
    _
  // Predicated region
  $region30: #{mae_forward.23} parent=0 // pred_check
    _
  $region31: #{mae_forward.23} parent=0 // pred_check_branch
    %247 = sbr.rel (0) target = $region33
  $region32: #{mae_forward.23} parent=0 // pred_region
    _
  $region33: #{mae_forward.23} parent=0 // pred_fallthru
    _

// kernel: mae_forward.21
$region0: #{mae_forward.21}
  #allocation0 [shape = 'u32[]', space=smem, size = 0x4, offset = 0x4, fixed_abs, tag = 'smem constant byte address 0x4 - core index']
  #allocation1 [shape = 'u32[144,128]{1,0:T(1,128)}', space=vmem, size = 0x12000, scoped, tag = 'internal scratch']
  #allocation2 [shape = 'f32[40,128]{1,0:T(8,128)}', space=vmem, size = 0x5000, scoped, tag = 'scratch operand']
  %s0 = inlined_call_operand.vmem [shape: bf16[40,128], index: 0, kind: input, shape index: {}]
  %s1 = inlined_call_operand.vmem [shape: bf16[128,128], index: 1, kind: input, shape index: {}]
  %s2 = inlined_call_operand.vmem [shape: f32[1,128], index: 2, kind: input, shape index: {}]
  %s3 = inlined_call_operand.vmem [shape: f32[1,128], index: 3, kind: input, shape index: {}]
  %s4 = inlined_call_operand.vmem [shape: f32[1,128], index: 4, kind: input, shape index: {}]
  %s5 = inlined_call_operand.vmem [shape: bf16[40,128], index: 5, kind: output, shape index: {}]
  %s6 = sld [smem:[#allocation0]]
  $region38: #{mae_forward.21} parent=0
    _
  %s8 = ssub.s32 1, %s6
  %s9 = scalar_select 0, %s8, %s6
  // Predicated region
  $region2: #{mae_forward.21} parent=0 // pred_check
    _
  $region3: #{mae_forward.21} parent=0 // pred_check_branch
    %11 = sbr.rel (0) target = $region5
  $region4: #{mae_forward.21} parent=0 // pred_region
    _
  $region5: #{mae_forward.21} parent=0 // pred_fallthru
    _
  // Predicated region
  $region6: #{mae_forward.21} parent=0 // pred_check
    _
  $region7: #{mae_forward.21} parent=0 // pred_check_branch
    %13 = sbr.rel (0) target = $region9
  $region8: #{mae_forward.21} parent=0 // pred_region
    _
  $region9: #{mae_forward.21} parent=0 // pred_fallthru
    _
  // Predicated region
  $region10: #{mae_forward.21} parent=0 // pred_check
    _
  $region11: #{mae_forward.21} parent=0 // pred_check_branch
    %15 = sbr.rel (0) target = $region13
  $region12: #{mae_forward.21} parent=0 // pred_region
    _
  $region13: #{mae_forward.21} parent=0 // pred_fallthru
    _
  // Predicated region
  $region14: #{mae_forward.21} parent=0 // pred_check
    _
  $region15: #{mae_forward.21} parent=0 // pred_check_branch
    %17 = sbr.rel (0) target = $region17
  $region16: #{mae_forward.21} parent=0 // pred_region
    _
  $region17: #{mae_forward.21} parent=0 // pred_fallthru
    _
  // Predicated region
  $region18: #{mae_forward.21} parent=0 // pred_check
    _
  $region19: #{mae_forward.21} parent=0 // pred_check_branch
    %19 = sbr.rel (0) target = $region21
  $region20: #{mae_forward.21} parent=0 // pred_region
    _
  $region21: #{mae_forward.21} parent=0 // pred_fallthru
    _
  %p21 = scmp.eq.s32.totalorder 0, 0
  // Predicated region
  $region22: #{mae_forward.21} parent=0 // pred_check
    %p22 = pneg %p21
  $region23: #{mae_forward.21} parent=0 // pred_check_branch
    %24 = sbr.rel (%p22) target = $region25
  $region24: #{mae_forward.21} parent=0 // pred_region
    %25 = vst [vmem:[#allocation2] sm:$0xff] 0.0
    %26 = vst [vmem:[#allocation2 + $0x8] sm:$0xff] 0.0
    %27 = vst [vmem:[#allocation2 + $0x10] sm:$0xff] 0.0
    %28 = vst [vmem:[#allocation2 + $0x18] sm:$0xff] 0.0
    %29 = vst [vmem:[#allocation2 + $0x20] sm:$0xff] 0.0
  $region25: #{mae_forward.21} parent=0 // pred_fallthru
    _
  %v30 = vld [vmem:[%s0] sm:$0xf]
  %v31 = vld [vmem:[%s0 + $0x4] sm:$0xf]
  %v32 = vld [vmem:[%s0 + $0x8] sm:$0xf]
  %v33 = vld [vmem:[%s0 + $0xc] sm:$0xf]
  %v34 = vld [vmem:[%s0 + $0x10] sm:$0xf]
  %v35 = vunpack.c.l.bf16 %v30
  %v36 = vunpack.c.l.bf16 %v31
  %v37 = vunpack.c.l.bf16 %v32
  %v38 = vunpack.c.l.bf16 %v33
  %v39 = vunpack.c.l.bf16 %v34
  %40 = vadd.xlane.f32.xlu0 %v35
  %v41 = vpop.xlane.xlu0 %40
  %42 = vadd.xlane.f32.xlu0 %v36
  %v43 = vpop.xlane.xlu0 %42
  %44 = vadd.xlane.f32.xlu0 %v37
  %v45 = vpop.xlane.xlu0 %44
  %46 = vadd.xlane.f32.xlu0 %v38
  %v47 = vpop.xlane.xlu0 %46
  %48 = vadd.xlane.f32.xlu0 %v39
  %v49 = vpop.xlane.xlu0 %48
  %v50 = vmul.f32 %v41, 0.03125
  %v51 = vmul.f32 %v43, 0.03125
  %v52 = vmul.f32 %v45, 0.03125
  %v53 = vmul.f32 %v47, 0.03125
  %v54 = vmul.f32 %v49, 0.03125
  %v55 = vmul.f32 %v35, %v35
  %v56 = vmul.f32 %v36, %v36
  %v57 = vmul.f32 %v37, %v37
  %v58 = vmul.f32 %v38, %v38
  %v59 = vmul.f32 %v39, %v39
  %60 = vadd.xlane.f32.xlu0 %v55
  %v61 = vpop.xlane.xlu0 %60
  %62 = vadd.xlane.f32.xlu0 %v56
  %v63 = vpop.xlane.xlu0 %62
  %64 = vadd.xlane.f32.xlu0 %v57
  %v65 = vpop.xlane.xlu0 %64
  %66 = vadd.xlane.f32.xlu0 %v58
  %v67 = vpop.xlane.xlu0 %66
  %68 = vadd.xlane.f32.xlu0 %v59
  %v69 = vpop.xlane.xlu0 %68
  %v70 = vmul.f32 %v61, 0.03125
  %v71 = vmul.f32 %v63, 0.03125
  %v72 = vmul.f32 %v65, 0.03125
  %v73 = vmul.f32 %v67, 0.03125
  %v74 = vmul.f32 %v69, 0.03125
  %v75 = vmul.f32 %v50, %v50
  %v76 = vmul.f32 %v51, %v51
  %v77 = vmul.f32 %v52, %v52
  %v78 = vmul.f32 %v53, %v53
  %v79 = vmul.f32 %v54, %v54
  %v80 = vsub.f32 %v70, %v75
  %v81 = vsub.f32 %v71, %v76
  %v82 = vsub.f32 %v72, %v77
  %v83 = vsub.f32 %v73, %v78
  %v84 = vsub.f32 %v74, %v79
  %v85 = vsub.f32 %v35, %v50
  %v86 = vsub.f32 %v36, %v51
  %v87 = vsub.f32 %v37, %v52
  %v88 = vsub.f32 %v38, %v53
  %v89 = vsub.f32 %v39, %v54
  %v90 = vadd.f32 %v80, 1e-06
  %v91 = vadd.f32 %v81, 1e-06
  %v92 = vadd.f32 %v82, 1e-06
  %v93 = vadd.f32 %v83, 1e-06
  %v94 = vadd.f32 %v84, 1e-06
  %v95 = vrsqrt.pop %v90
  %v96 = vrsqrt.pop %v91
  %v97 = vrsqrt.pop %v92
  %v98 = vrsqrt.pop %v93
  %v99 = vrsqrt.pop %v94
  %v100 = vmul.f32 %v85, %v95
  %v101 = vmul.f32 %v86, %v96
  %v102 = vmul.f32 %v87, %v97
  %v103 = vmul.f32 %v88, %v98
  %v104 = vmul.f32 %v89, %v99
  %v105 = vld [vmem:[%s3] sm:$0x1]
  %v107 = vlaneseq
  %v108 = vshrl.u32 %v107, 7
  %v109 = vsub.s32 0, %v108
  %v110 = vrot.slane %v105, %v109
  %v112 = vmul.f32 %v100, %v110
  %v113 = vmul.f32 %v101, %v110
  %v114 = vmul.f32 %v102, %v110
  %v115 = vmul.f32 %v103, %v110
  %v116 = vmul.f32 %v104, %v110
  %v117 = vld [vmem:[%s4] sm:$0x1]
  %v119 = vlaneseq
  %v120 = vshrl.u32 %v119, 7
  %v121 = vsub.s32 0, %v120
  %v122 = vrot.slane %v117, %v121
  %v124 = vadd.f32 %v112, %v122
  %v125 = vadd.f32 %v113, %v122
  %v126 = vadd.f32 %v114, %v122
  %v127 = vadd.f32 %v115, %v122
  %v128 = vadd.f32 %v116, %v122
  %v129 = vpack.c.bf16 %v125, %v124
  %v130 = vpack.c.bf16 %v127, %v126
  %v131 = vpack.c.bf16 %v128, %v128
  %v132 = vld [vmem:[#allocation2] sm:$0xff]
  %v133 = vld [vmem:[#allocation2 + $0x8] sm:$0xff]
  %v134 = vld [vmem:[#allocation2 + $0x10] sm:$0xff]
  %v135 = vld [vmem:[#allocation2 + $0x18] sm:$0xff]
  %v136 = vld [vmem:[#allocation2 + $0x20] sm:$0xff]
  %v137 = vld [vmem:[%s1] sm:$0xf]
  %v138 = vld [vmem:[%s1 + $0x4] sm:$0xf]
  %v139 = vld [vmem:[%s1 + $0x8] sm:$0xf]
  %v140 = vld [vmem:[%s1 + $0xc] sm:$0xf]
  %v141 = vld [vmem:[%s1 + $0x10] sm:$0xf]
  %v142 = vld [vmem:[%s1 + $0x14] sm:$0xf]
  %v143 = vld [vmem:[%s1 + $0x18] sm:$0xf]
  %v144 = vld [vmem:[%s1 + $0x1c] sm:$0xf]
  %v145 = vld [vmem:[%s1 + $0x20] sm:$0xf]
  %v146 = vld [vmem:[%s1 + $0x24] sm:$0xf]
  %v147 = vld [vmem:[%s1 + $0x28] sm:$0xf]
  %v148 = vld [vmem:[%s1 + $0x2c] sm:$0xf]
  %v149 = vld [vmem:[%s1 + $0x30] sm:$0xf]
  %v150 = vld [vmem:[%s1 + $0x34] sm:$0xf]
  %v151 = vld [vmem:[%s1 + $0x38] sm:$0xf]
  %v152 = vld [vmem:[%s1 + $0x3c] sm:$0xf]
  %v169 = vunpack.c.l.b16 %v137
  %v170 = vunpack.c.l.b16 %v138
  %v171 = vunpack.c.l.b16 %v139
  %v172 = vunpack.c.l.b16 %v140
  %v173 = vunpack.c.l.b16 %v141
  %v174 = vunpack.c.l.b16 %v142
  %v175 = vunpack.c.l.b16 %v143
  %v176 = vunpack.c.l.b16 %v144
  %v177 = vunpack.c.l.b16 %v145
  %v178 = vunpack.c.l.b16 %v146
  %v179 = vunpack.c.l.b16 %v147
  %v180 = vunpack.c.l.b16 %v148
  %v181 = vunpack.c.l.b16 %v149
  %v182 = vunpack.c.l.b16 %v150
  %v183 = vunpack.c.l.b16 %v151
  %v184 = vunpack.c.l.b16 %v152
  %v185 = vpack.c.b16 %v170, %v169
  %v186 = vpack.c.b16 %v172, %v171
  %v187 = vpack.c.b16 %v174, %v173
  %v188 = vpack.c.b16 %v176, %v175
  %v189 = vpack.c.b16 %v178, %v177
  %v190 = vpack.c.b16 %v180, %v179
  %v191 = vpack.c.b16 %v182, %v181
  %v192 = vpack.c.b16 %v184, %v183
  %201 = vmatprep.subr.bf16.mxu0 0
  %202 = vmatpush1.bf16.msra.mxu0 %v185
  %203 = vmatprep.subr.bf16.mxu0 0
  %204 = vmatpush1.bf16.msra.mxu0 %v186
  %205 = vmatprep.subr.bf16.mxu0 0
  %206 = vmatpush1.bf16.msra.mxu0 %v187
  %207 = vmatprep.subr.bf16.mxu0 0
  %208 = vmatpush1.bf16.msra.mxu0 %v188
  %209 = vmatprep.subr.bf16.mxu0 0
  %210 = vmatpush1.bf16.msra.mxu0 %v189
  %211 = vmatprep.subr.bf16.mxu0 0
  %212 = vmatpush1.bf16.msra.mxu0 %v190
  %213 = vmatprep.subr.bf16.mxu0 0
  %214 = vmatpush1.bf16.msra.mxu0 %v191
  %215 = vmatprep.subr.bf16.mxu0 0
  %216 = vmatpush1.bf16.msra.mxu0 %v192
  %217 = vmatprep.subr.bf16.mxu0 0
  %218 = vmatpush1.bf16.msra.mxu0 0
  %219 = vmatprep.subr.bf16.mxu0 0
  %220 = vmatpush1.bf16.msra.mxu0 0
  %221 = vmatprep.subr.bf16.mxu0 0
  %222 = vmatpush1.bf16.msra.mxu0 0
  %223 = vmatprep.subr.bf16.mxu0 0
  %224 = vmatpush1.bf16.msra.mxu0 0
  %225 = vmatprep.subr.bf16.mxu0 0
  %226 = vmatpush1.bf16.msra.mxu0 0
  %227 = vmatprep.subr.bf16.mxu0 0
  %228 = vmatpush1.bf16.msra.mxu0 0
  %229 = vmatprep.subr.bf16.mxu0 0
  %230 = vmatpush1.bf16.msra.mxu0 0
  %231 = vmatprep.subr.bf16.mxu0 0
  %232 = vmatpush1.bf16.msra.mxu0 0
  %233 = vmatprep.mubr.bf16.mxu0 0
  %234 = vmatmul.mubr.bf16.gmra.mrb[0].mxu0 %v129
  %v235 = vpop.f32.mrb[0].mxu0
  %v236 = vadd.f32 0.0, %v235
  %v237 = vpop.f32.mrb[0].mxu0
  %v238 = vpop.f32.mrb[0].mxu0
  %v239 = vadd.f32 0.0, %v238
  %v240 = vpop.f32.mrb[0].mxu0
  %241 = vmatprep.mubr.bf16.mxu0 0
  %242 = vmatmul.mubr.bf16.gmra.mrb[0].mxu0 %v130
  %v243 = vpop.f32.mrb[0].mxu0
  %v244 = vadd.f32 0.0, %v243
  %v245 = vpop.f32.mrb[0].mxu0
  %v246 = vpop.f32.mrb[0].mxu0
  %v247 = vadd.f32 0.0, %v246
  %v248 = vpop.f32.mrb[0].mxu0
  %249 = vmatprep.mubr.bf16.mxu0 0
  %250 = vmatmul.mubr.bf16.gmra.mrb[0].mxu0 %v131
  %v251 = vpop.f32.mrb[0].mxu0
  %v252 = vadd.f32 0.0, %v251
  %v253 = vpop.f32.mrb[0].mxu0
  %v254 = vpop.f32.mrb[0].mxu0
  %v255 = vpop.f32.mrb[0].mxu0
  %256 = vdwg.mxu0
  %v257 = vadd.f32 %v132, %v236
  %v258 = vadd.f32 %v133, %v239
  %v259 = vadd.f32 %v134, %v244
  %v260 = vadd.f32 %v135, %v247
  %v261 = vadd.f32 %v136, %v252
  %262 = vst [vmem:[#allocation2] sm:$0xff] %v257
  %263 = vst [vmem:[#allocation2 + $0x8] sm:$0xff] %v258
  %264 = vst [vmem:[#allocation2 + $0x10] sm:$0xff] %v259
  %265 = vst [vmem:[#allocation2 + $0x18] sm:$0xff] %v260
  %266 = vst [vmem:[#allocation2 + $0x20] sm:$0xff] %v261
  // Predicated region
  $region26: #{mae_forward.21} parent=0 // pred_check
    %p267 = pneg %p21
  $region27: #{mae_forward.21} parent=0 // pred_check_branch
    %269 = sbr.rel (%p267) target = $region29
  $region28: #{mae_forward.21} parent=0 // pred_region
    %v270 = vld [vmem:[#allocation2] sm:$0xff]
    %v271 = vld [vmem:[#allocation2 + $0x8] sm:$0xff]
    %v272 = vld [vmem:[#allocation2 + $0x10] sm:$0xff]
    %v273 = vld [vmem:[#allocation2 + $0x18] sm:$0xff]
    %v274 = vld [vmem:[#allocation2 + $0x20] sm:$0xff]
    %v275 = vld [vmem:[%s2] sm:$0x1]
    %v277 = vlaneseq
    %v278 = vshrl.u32 %v277, 7
    %v279 = vsub.s32 0, %v278
    %v280 = vrot.slane %v275, %v279
    %v282 = vadd.f32 %v270, %v280
    %v283 = vadd.f32 %v271, %v280
    %v284 = vadd.f32 %v272, %v280
    %v285 = vadd.f32 %v273, %v280
    %v286 = vadd.f32 %v274, %v280
    %v287 = vpack.c.bf16 %v283, %v282
    %v288 = vpack.c.bf16 %v285, %v284
    %v289 = vpack.c.bf16 %v286, %v286
    %v293 = vunpack.c.l.b16 %v287
    %v294 = vunpack.c.h.b16 %v287
    %v295 = vunpack.c.l.b16 %v288
    %v296 = vunpack.c.h.b16 %v288
    %v297 = vunpack.c.l.b16 %v289
    %v298 = vpack.c.b16 %v293, %v293
    %v299 = vpack.c.b16 %v294, %v294
    %v300 = vpack.c.b16 %v295, %v295
    %v301 = vpack.c.b16 %v296, %v296
    %v302 = vpack.c.b16 %v297, %v297
    %308 = vst [vmem:[%s5] sm:$0xf] %v298
    %309 = vst [vmem:[%s5 + $0x4] sm:$0xf] %v299
    %310 = vst [vmem:[%s5 + $0x8] sm:$0xf] %v300
    %311 = vst [vmem:[%s5 + $0xc] sm:$0xf] %v301
    %312 = vst [vmem:[%s5 + $0x10] sm:$0xf] %v302
  $region29: #{mae_forward.21} parent=0 // pred_fallthru
    _
  // Predicated region
  $region30: #{mae_forward.21} parent=0 // pred_check
    _
  $region31: #{mae_forward.21} parent=0 // pred_check_branch
    %314 = sbr.rel (0) target = $region33
  $region32: #{mae_forward.21} parent=0 // pred_region
    _
  $region33: #{mae_forward.21} parent=0 // pred_fallthru
    _
  // Predicated region
  $region34: #{mae_forward.21} parent=0 // pred_check
    _
  $region35: #{mae_forward.21} parent=0 // pred_check_branch
    %316 = sbr.rel (0) target = $region37
  $region36: #{mae_forward.21} parent=0 // pred_region
    _
  $region37: #{mae_forward.21} parent=0 // pred_fallthru
    _

// kernel: mae_forward.24
$region0: #{mae_forward.24}
  #allocation0 [shape = 'u32[]', space=smem, size = 0x4, offset = 0x4, fixed_abs, tag = 'smem constant byte address 0x4 - core index']
  #allocation1 [shape = 'u32[144,128]{1,0:T(1,128)}', space=vmem, size = 0x12000, scoped, tag = 'internal scratch']
  #allocation2 [shape = 'f32[40,128]{1,0:T(8,128)}', space=vmem, size = 0x5000, scoped, tag = 'scratch operand']
  %s0 = inlined_call_operand.vmem [shape: bf16[40,128], index: 0, kind: input, shape index: {}]
  %s1 = inlined_call_operand.vmem [shape: bf16[128,128], index: 1, kind: input, shape index: {}]
  %s2 = inlined_call_operand.vmem [shape: f32[1,128], index: 2, kind: input, shape index: {}]
  %s3 = inlined_call_operand.vmem [shape: f32[1,128], index: 3, kind: input, shape index: {}]
  %s4 = inlined_call_operand.vmem [shape: f32[1,128], index: 4, kind: input, shape index: {}]
  %s5 = inlined_call_operand.vmem [shape: bf16[40,128], index: 5, kind: output, shape index: {}]
  %s6 = sld [smem:[#allocation0]]
  $region38: #{mae_forward.24} parent=0
    _
  %s8 = ssub.s32 1, %s6
  %s9 = scalar_select 0, %s8, %s6
  // Predicated region
  $region2: #{mae_forward.24} parent=0 // pred_check
    _
  $region3: #{mae_forward.24} parent=0 // pred_check_branch
    %11 = sbr.rel (0) target = $region5
  $region4: #{mae_forward.24} parent=0 // pred_region
    _
  $region5: #{mae_forward.24} parent=0 // pred_fallthru
    _
  // Predicated region
  $region6: #{mae_forward.24} parent=0 // pred_check
    _
  $region7: #{mae_forward.24} parent=0 // pred_check_branch
    %13 = sbr.rel (0) target = $region9
  $region8: #{mae_forward.24} parent=0 // pred_region
    _
  $region9: #{mae_forward.24} parent=0 // pred_fallthru
    _
  // Predicated region
  $region10: #{mae_forward.24} parent=0 // pred_check
    _
  $region11: #{mae_forward.24} parent=0 // pred_check_branch
    %15 = sbr.rel (0) target = $region13
  $region12: #{mae_forward.24} parent=0 // pred_region
    _
  $region13: #{mae_forward.24} parent=0 // pred_fallthru
    _
  // Predicated region
  $region14: #{mae_forward.24} parent=0 // pred_check
    _
  $region15: #{mae_forward.24} parent=0 // pred_check_branch
    %17 = sbr.rel (0) target = $region17
  $region16: #{mae_forward.24} parent=0 // pred_region
    _
  $region17: #{mae_forward.24} parent=0 // pred_fallthru
    _
  // Predicated region
  $region18: #{mae_forward.24} parent=0 // pred_check
    _
  $region19: #{mae_forward.24} parent=0 // pred_check_branch
    %19 = sbr.rel (0) target = $region21
  $region20: #{mae_forward.24} parent=0 // pred_region
    _
  $region21: #{mae_forward.24} parent=0 // pred_fallthru
    _
  %p21 = scmp.eq.s32.totalorder 0, 0
  // Predicated region
  $region22: #{mae_forward.24} parent=0 // pred_check
    %p22 = pneg %p21
  $region23: #{mae_forward.24} parent=0 // pred_check_branch
    %24 = sbr.rel (%p22) target = $region25
  $region24: #{mae_forward.24} parent=0 // pred_region
    %25 = vst [vmem:[#allocation2] sm:$0xff] 0.0
    %26 = vst [vmem:[#allocation2 + $0x8] sm:$0xff] 0.0
    %27 = vst [vmem:[#allocation2 + $0x10] sm:$0xff] 0.0
    %28 = vst [vmem:[#allocation2 + $0x18] sm:$0xff] 0.0
    %29 = vst [vmem:[#allocation2 + $0x20] sm:$0xff] 0.0
  $region25: #{mae_forward.24} parent=0 // pred_fallthru
    _
  %v30 = vld [vmem:[%s0] sm:$0xf]
  %v31 = vld [vmem:[%s0 + $0x4] sm:$0xf]
  %v32 = vld [vmem:[%s0 + $0x8] sm:$0xf]
  %v33 = vld [vmem:[%s0 + $0xc] sm:$0xf]
  %v34 = vld [vmem:[%s0 + $0x10] sm:$0xf]
  %v35 = vunpack.c.l.bf16 %v30
  %v36 = vunpack.c.l.bf16 %v31
  %v37 = vunpack.c.l.bf16 %v32
  %v38 = vunpack.c.l.bf16 %v33
  %v39 = vunpack.c.l.bf16 %v34
  %40 = vadd.xlane.f32.xlu0 %v35
  %v41 = vpop.xlane.xlu0 %40
  %42 = vadd.xlane.f32.xlu0 %v36
  %v43 = vpop.xlane.xlu0 %42
  %44 = vadd.xlane.f32.xlu0 %v37
  %v45 = vpop.xlane.xlu0 %44
  %46 = vadd.xlane.f32.xlu0 %v38
  %v47 = vpop.xlane.xlu0 %46
  %48 = vadd.xlane.f32.xlu0 %v39
  %v49 = vpop.xlane.xlu0 %48
  %v50 = vmul.f32 %v41, 0.03125
  %v51 = vmul.f32 %v43, 0.03125
  %v52 = vmul.f32 %v45, 0.03125
  %v53 = vmul.f32 %v47, 0.03125
  %v54 = vmul.f32 %v49, 0.03125
  %v55 = vmul.f32 %v35, %v35
  %v56 = vmul.f32 %v36, %v36
  %v57 = vmul.f32 %v37, %v37
  %v58 = vmul.f32 %v38, %v38
  %v59 = vmul.f32 %v39, %v39
  %60 = vadd.xlane.f32.xlu0 %v55
  %v61 = vpop.xlane.xlu0 %60
  %62 = vadd.xlane.f32.xlu0 %v56
  %v63 = vpop.xlane.xlu0 %62
  %64 = vadd.xlane.f32.xlu0 %v57
  %v65 = vpop.xlane.xlu0 %64
  %66 = vadd.xlane.f32.xlu0 %v58
  %v67 = vpop.xlane.xlu0 %66
  %68 = vadd.xlane.f32.xlu0 %v59
  %v69 = vpop.xlane.xlu0 %68
  %v70 = vmul.f32 %v61, 0.03125
  %v71 = vmul.f32 %v63, 0.03125
  %v72 = vmul.f32 %v65, 0.03125
  %v73 = vmul.f32 %v67, 0.03125
  %v74 = vmul.f32 %v69, 0.03125
  %v75 = vmul.f32 %v50, %v50
  %v76 = vmul.f32 %v51, %v51
  %v77 = vmul.f32 %v52, %v52
  %v78 = vmul.f32 %v53, %v53
  %v79 = vmul.f32 %v54, %v54
  %v80 = vsub.f32 %v70, %v75
  %v81 = vsub.f32 %v71, %v76
  %v82 = vsub.f32 %v72, %v77
  %v83 = vsub.f32 %v73, %v78
  %v84 = vsub.f32 %v74, %v79
  %v85 = vsub.f32 %v35, %v50
  %v86 = vsub.f32 %v36, %v51
  %v87 = vsub.f32 %v37, %v52
  %v88 = vsub.f32 %v38, %v53
  %v89 = vsub.f32 %v39, %v54
  %v90 = vadd.f32 %v80, 1e-06
  %v91 = vadd.f32 %v81, 1e-06
  %v92 = vadd.f32 %v82, 1e-06
  %v93 = vadd.f32 %v83, 1e-06
  %v94 = vadd.f32 %v84, 1e-06
  %v95 = vrsqrt.pop %v90
  %v96 = vrsqrt.pop %v91
  %v97 = vrsqrt.pop %v92
  %v98 = vrsqrt.pop %v93
  %v99 = vrsqrt.pop %v94
  %v100 = vmul.f32 %v85, %v95
  %v101 = vmul.f32 %v86, %v96
  %v102 = vmul.f32 %v87, %v97
  %v103 = vmul.f32 %v88, %v98
  %v104 = vmul.f32 %v89, %v99
  %v105 = vld [vmem:[%s3] sm:$0x1]
  %v107 = vlaneseq
  %v108 = vshrl.u32 %v107, 7
  %v109 = vsub.s32 0, %v108
  %v110 = vrot.slane %v105, %v109
  %v112 = vmul.f32 %v100, %v110
  %v113 = vmul.f32 %v101, %v110
  %v114 = vmul.f32 %v102, %v110
  %v115 = vmul.f32 %v103, %v110
  %v116 = vmul.f32 %v104, %v110
  %v117 = vld [vmem:[%s4] sm:$0x1]
  %v119 = vlaneseq
  %v120 = vshrl.u32 %v119, 7
  %v121 = vsub.s32 0, %v120
  %v122 = vrot.slane %v117, %v121
  %v124 = vadd.f32 %v112, %v122
  %v125 = vadd.f32 %v113, %v122
  %v126 = vadd.f32 %v114, %v122
  %v127 = vadd.f32 %v115, %v122
  %v128 = vadd.f32 %v116, %v122
  %v129 = vpack.c.bf16 %v125, %v124
  %v130 = vpack.c.bf16 %v127, %v126
  %v131 = vpack.c.bf16 %v128, %v128
  %v132 = vld [vmem:[#allocation2] sm:$0xff]
  %v133 = vld [vmem:[#allocation2 + $0x8] sm:$0xff]
  %v134 = vld [vmem:[#allocation2 + $0x10] sm:$0xff]
  %v135 = vld [vmem:[#allocation2 + $0x18] sm:$0xff]
  %v136 = vld [vmem:[#allocation2 + $0x20] sm:$0xff]
  %v137 = vld [vmem:[%s1] sm:$0xf]
  %v138 = vld [vmem:[%s1 + $0x4] sm:$0xf]
  %v139 = vld [vmem:[%s1 + $0x8] sm:$0xf]
  %v140 = vld [vmem:[%s1 + $0xc] sm:$0xf]
  %v141 = vld [vmem:[%s1 + $0x10] sm:$0xf]
  %v142 = vld [vmem:[%s1 + $0x14] sm:$0xf]
  %v143 = vld [vmem:[%s1 + $0x18] sm:$0xf]
  %v144 = vld [vmem:[%s1 + $0x1c] sm:$0xf]
  %v145 = vld [vmem:[%s1 + $0x20] sm:$0xf]
  %v146 = vld [vmem:[%s1 + $0x24] sm:$0xf]
  %v147 = vld [vmem:[%s1 + $0x28] sm:$0xf]
  %v148 = vld [vmem:[%s1 + $0x2c] sm:$0xf]
  %v149 = vld [vmem:[%s1 + $0x30] sm:$0xf]
  %v150 = vld [vmem:[%s1 + $0x34] sm:$0xf]
  %v151 = vld [vmem:[%s1 + $0x38] sm:$0xf]
  %v152 = vld [vmem:[%s1 + $0x3c] sm:$0xf]
  %v169 = vunpack.c.l.b16 %v137
  %v170 = vunpack.c.l.b16 %v138
  %v171 = vunpack.c.l.b16 %v139
  %v172 = vunpack.c.l.b16 %v140
  %v173 = vunpack.c.l.b16 %v141
  %v174 = vunpack.c.l.b16 %v142
  %v175 = vunpack.c.l.b16 %v143
  %v176 = vunpack.c.l.b16 %v144
  %v177 = vunpack.c.l.b16 %v145
  %v178 = vunpack.c.l.b16 %v146
  %v179 = vunpack.c.l.b16 %v147
  %v180 = vunpack.c.l.b16 %v148
  %v181 = vunpack.c.l.b16 %v149
  %v182 = vunpack.c.l.b16 %v150
  %v183 = vunpack.c.l.b16 %v151
  %v184 = vunpack.c.l.b16 %v152
  %v185 = vpack.c.b16 %v170, %v169
  %v186 = vpack.c.b16 %v172, %v171
  %v187 = vpack.c.b16 %v174, %v173
  %v188 = vpack.c.b16 %v176, %v175
  %v189 = vpack.c.b16 %v178, %v177
  %v190 = vpack.c.b16 %v180, %v179
  %v191 = vpack.c.b16 %v182, %v181
  %v192 = vpack.c.b16 %v184, %v183
  %201 = vmatprep.subr.bf16.mxu0 0
  %202 = vmatpush1.bf16.msra.mxu0 %v185
  %203 = vmatprep.subr.bf16.mxu0 0
  %204 = vmatpush1.bf16.msra.mxu0 %v186
  %205 = vmatprep.subr.bf16.mxu0 0
  %206 = vmatpush1.bf16.msra.mxu0 %v187
  %207 = vmatprep.subr.bf16.mxu0 0
  %208 = vmatpush1.bf16.msra.mxu0 %v188
  %209 = vmatprep.subr.bf16.mxu0 0
  %210 = vmatpush1.bf16.msra.mxu0 %v189
  %211 = vmatprep.subr.bf16.mxu0 0
  %212 = vmatpush1.bf16.msra.mxu0 %v190
  %213 = vmatprep.subr.bf16.mxu0 0
  %214 = vmatpush1.bf16.msra.mxu0 %v191
  %215 = vmatprep.subr.bf16.mxu0 0
  %216 = vmatpush1.bf16.msra.mxu0 %v192
  %217 = vmatprep.subr.bf16.mxu0 0
  %218 = vmatpush1.bf16.msra.mxu0 0
  %219 = vmatprep.subr.bf16.mxu0 0
  %220 = vmatpush1.bf16.msra.mxu0 0
  %221 = vmatprep.subr.bf16.mxu0 0
  %222 = vmatpush1.bf16.msra.mxu0 0
  %223 = vmatprep.subr.bf16.mxu0 0
  %224 = vmatpush1.bf16.msra.mxu0 0
  %225 = vmatprep.subr.bf16.mxu0 0
  %226 = vmatpush1.bf16.msra.mxu0 0
  %227 = vmatprep.subr.bf16.mxu0 0
  %228 = vmatpush1.bf16.msra.mxu0 0
  %229 = vmatprep.subr.bf16.mxu0 0
  %230 = vmatpush1.bf16.msra.mxu0 0
  %231 = vmatprep.subr.bf16.mxu0 0
  %232 = vmatpush1.bf16.msra.mxu0 0
  %233 = vmatprep.mubr.bf16.mxu0 0
  %234 = vmatmul.mubr.bf16.gmra.mrb[0].mxu0 %v129
  %v235 = vpop.f32.mrb[0].mxu0
  %v236 = vadd.f32 0.0, %v235
  %v237 = vpop.f32.mrb[0].mxu0
  %v238 = vpop.f32.mrb[0].mxu0
  %v239 = vadd.f32 0.0, %v238
  %v240 = vpop.f32.mrb[0].mxu0
  %241 = vmatprep.mubr.bf16.mxu0 0
  %242 = vmatmul.mubr.bf16.gmra.mrb[0].mxu0 %v130
  %v243 = vpop.f32.mrb[0].mxu0
  %v244 = vadd.f32 0.0, %v243
  %v245 = vpop.f32.mrb[0].mxu0
  %v246 = vpop.f32.mrb[0].mxu0
  %v247 = vadd.f32 0.0, %v246
  %v248 = vpop.f32.mrb[0].mxu0
  %249 = vmatprep.mubr.bf16.mxu0 0
  %250 = vmatmul.mubr.bf16.gmra.mrb[0].mxu0 %v131
  %v251 = vpop.f32.mrb[0].mxu0
  %v252 = vadd.f32 0.0, %v251
  %v253 = vpop.f32.mrb[0].mxu0
  %v254 = vpop.f32.mrb[0].mxu0
  %v255 = vpop.f32.mrb[0].mxu0
  %256 = vdwg.mxu0
  %v257 = vadd.f32 %v132, %v236
  %v258 = vadd.f32 %v133, %v239
  %v259 = vadd.f32 %v134, %v244
  %v260 = vadd.f32 %v135, %v247
  %v261 = vadd.f32 %v136, %v252
  %262 = vst [vmem:[#allocation2] sm:$0xff] %v257
  %263 = vst [vmem:[#allocation2 + $0x8] sm:$0xff] %v258
  %264 = vst [vmem:[#allocation2 + $0x10] sm:$0xff] %v259
  %265 = vst [vmem:[#allocation2 + $0x18] sm:$0xff] %v260
  %266 = vst [vmem:[#allocation2 + $0x20] sm:$0xff] %v261
  // Predicated region
  $region26: #{mae_forward.24} parent=0 // pred_check
    %p267 = pneg %p21
  $region27: #{mae_forward.24} parent=0 // pred_check_branch
    %269 = sbr.rel (%p267) target = $region29
  $region28: #{mae_forward.24} parent=0 // pred_region
    %v270 = vld [vmem:[#allocation2] sm:$0xff]
    %v271 = vld [vmem:[#allocation2 + $0x8] sm:$0xff]
    %v272 = vld [vmem:[#allocation2 + $0x10] sm:$0xff]
    %v273 = vld [vmem:[#allocation2 + $0x18] sm:$0xff]
    %v274 = vld [vmem:[#allocation2 + $0x20] sm:$0xff]
    %v275 = vld [vmem:[%s2] sm:$0x1]
    %v277 = vlaneseq
    %v278 = vshrl.u32 %v277, 7
    %v279 = vsub.s32 0, %v278
    %v280 = vrot.slane %v275, %v279
    %v282 = vadd.f32 %v270, %v280
    %v283 = vadd.f32 %v271, %v280
    %v284 = vadd.f32 %v272, %v280
    %v285 = vadd.f32 %v273, %v280
    %v286 = vadd.f32 %v274, %v280
    %v287 = vmul.f32 %v282, 0.5
    %v288 = vmul.f32 %v283, 0.5
    %v289 = vmul.f32 %v284, 0.5
    %v290 = vmul.f32 %v285, 0.5
    %v291 = vmul.f32 %v286, 0.5
    %v292 = vmul.f32 %v282, 0.044715
    %v293 = vmul.f32 %v283, 0.044715
    %v294 = vmul.f32 %v284, 0.044715
    %v295 = vmul.f32 %v285, 0.044715
    %v296 = vmul.f32 %v286, 0.044715
    %v297 = vmul.f32 %v292, %v282
    %v298 = vmul.f32 %v293, %v283
    %v299 = vmul.f32 %v294, %v284
    %v300 = vmul.f32 %v295, %v285
    %v301 = vmul.f32 %v296, %v286
    %v302 = vmul.f32 %v297, %v282
    %v303 = vmul.f32 %v298, %v283
    %v304 = vmul.f32 %v299, %v284
    %v305 = vmul.f32 %v300, %v285
    %v306 = vmul.f32 %v301, %v286
    %v307 = vadd.f32 %v282, %v302
    %v308 = vadd.f32 %v283, %v303
    %v309 = vadd.f32 %v284, %v304
    %v310 = vadd.f32 %v285, %v305
    %v311 = vadd.f32 %v286, %v306
    %v312 = vmul.f32 %v307, 0.7978846
    %v313 = vmul.f32 %v308, 0.7978846
    %v314 = vmul.f32 %v309, 0.7978846
    %v315 = vmul.f32 %v310, 0.7978846
    %v316 = vmul.f32 %v311, 0.7978846
    %v317 = vtanh.pop %v312
    %v318 = vtanh.pop %v313
    %v319 = vtanh.pop %v314
    %v320 = vtanh.pop %v315
    %v321 = vtanh.pop %v316
    %v322 = vadd.f32 %v317, 1.0
    %v323 = vadd.f32 %v318, 1.0
    %v324 = vadd.f32 %v319, 1.0
    %v325 = vadd.f32 %v320, 1.0
    %v326 = vadd.f32 %v321, 1.0
    %v327 = vmul.f32 %v287, %v322
    %v328 = vmul.f32 %v288, %v323
    %v329 = vmul.f32 %v289, %v324
    %v330 = vmul.f32 %v290, %v325
    %v331 = vmul.f32 %v291, %v326
    %v332 = vpack.c.bf16 %v328, %v327
    %v333 = vpack.c.bf16 %v330, %v329
    %v334 = vpack.c.bf16 %v331, %v331
    %v338 = vunpack.c.l.b16 %v332
    %v339 = vunpack.c.h.b16 %v332
    %v340 = vunpack.c.l.b16 %v333
    %v341 = vunpack.c.h.b16 %v333
    %v342 = vunpack.c.l.b16 %v334
    %v343 = vpack.c.b16 %v338, %v338
    %v344 = vpack.c.b16 %v339, %v339
    %v345 = vpack.c.b16 %v340, %v340
    %v346 = vpack.c.b16 %v341, %v341
    %v347 = vpack.c.b16 %v342, %v342
    %353 = vst [vmem:[%s5] sm:$0xf] %v343
    %354 = vst [vmem:[%s5 + $0x4] sm:$0xf] %v344
    %355 = vst [vmem:[%s5 + $0x8] sm:$0xf] %v345
    %356 = vst [vmem:[%s5 + $0xc] sm:$0xf] %v346
    %357 = vst [vmem:[%s5 + $0x10] sm:$0xf] %v347
  $region29: #{mae_forward.24} parent=0 // pred_fallthru
    _
  // Predicated region
  $region30: #{mae_forward.24} parent=0 // pred_check
    _
  $region31: #{mae_forward.24} parent=0 // pred_check_branch
    %359 = sbr.rel (0) target = $region33
  $region32: #{mae_forward.24} parent=0 // pred_region
    _
  $region33: #{mae_forward.24} parent=0 // pred_fallthru
    _
  // Predicated region
  $region34: #{mae_forward.24} parent=0 // pred_check
    _
  $region35: #{mae_forward.24} parent=0 // pred_check_branch
    %361 = sbr.rel (0) target = $region37
  $region36: #{mae_forward.24} parent=0 // pred_region
    _
  $region37: #{mae_forward.24} parent=0 // pred_fallthru
    _

// kernel: mae_forward.22
$region0: #{mae_forward.22}
  #allocation0 [shape = 'u32[]', space=smem, size = 0x4, offset = 0x4, fixed_abs, tag = 'smem constant byte address 0x4 - core index']
  #allocation1 [shape = 'u32[144,128]{1,0:T(1,128)}', space=vmem, size = 0x12000, scoped, tag = 'internal scratch']
  %s0 = inlined_call_operand.vmem [shape: bf16[2,17,96], index: 0, kind: input, shape index: {}]
  %s1 = inlined_call_operand.vmem [shape: bf16[2,17,32], index: 1, kind: output, shape index: {}]
  %s2 = sld [smem:[#allocation0]]
  $region37: #{mae_forward.22} parent=0
    _
  %s4 = ssub.s32 1, %s2
  %s5 = scalar_select 0, %s4, %s2
  loop: start=0, step=1, limit=4
  $region2: #{mae_forward.22} parent=0 // loop_pre_header
    _
  $region3: #{mae_forward.22} parent=0 // loop_header
    %s7 = sphi 0, %s11
    %p8 = scmp.ge.s32.totalorder %s7, 4
    %s17 = sphi 0, %s19
    %s20 = sphi 0, %s17
    %s21 = sphi 0, %s20
    %s37 = sphi 0, %s21
    %s43 = sphi 0, %s45
    %s46 = sphi 0, %s43
    %s47 = sphi 0, %s46
    %s63 = sphi 0, %s47
  $region4: #{mae_forward.22} parent=0 // loop_header_branch
    %10 = sbr.rel (%p8) target = $region8
  $region5: #{mae_forward.22} parent=0 // loop_body
    %s12 = ssub.s32 %s7, 1
    %s13 = ssub.s32 %s7, 2
    %s14 = sadd.s32 %s7, 1
    %s15 = ssub.s32 %s7, %s14
    %p16 = scmp.eq.s32.totalorder %s15, 0
    %s18 = sadd.s32 %s17, 1
    %s19 = scalar_select %p16, %s17, %s18
    %p22 = pneg %p16
    %p23 = scmp.eq.s32.totalorder %s7, 1
    %p24 = por %p22, %p23
    %p25 = scmp.ne.s32.totalorder %s17, %s20
    %p26 = scmp.eq.s32.totalorder %s7, 0
    %p27 = por %p25, %p26
    %p28 = scmp.ne.s32.totalorder %s17, %s20
    %p29 = scmp.eq.s32.totalorder %s12, 1
    %p30 = por %p28, %p29
    %p31 = scmp.ne.s32.totalorder %s20, %s21
    %p32 = scmp.eq.s32.totalorder %s12, 0
    %p33 = por %p31, %p32
    %p34 = scmp.ne.s32.totalorder %s20, %s21
    %p35 = scmp.eq.s32.totalorder %s13, 1
    %p36 = por %p34, %p35
    %p38 = scmp.ne.s32.totalorder %s21, %s37
    %p39 = scmp.eq.s32.totalorder %s13, 0
    %p40 = por %p38, %p39
    %s41 = ssub.s32 %s7, %s14
    %p42 = scmp.eq.s32.totalorder %s41, 0
    %s44 = sadd.s32 %s43, 1
    %s45 = scalar_select %p42, %s43, %s44
    %p48 = pneg %p42
    %p49 = scmp.eq.s32.totalorder %s7, 1
    %p50 = por %p48, %p49
    %p51 = scmp.ne.s32.totalorder %s43, %s46
    %p52 = scmp.eq.s32.totalorder %s7, 0
    %p53 = por %p51, %p52
    %p54 = scmp.ne.s32.totalorder %s43, %s46
    %p55 = scmp.eq.s32.totalorder %s12, 1
    %p56 = por %p54, %p55
    %p57 = scmp.ne.s32.totalorder %s46, %s47
    %p58 = scmp.eq.s32.totalorder %s12, 0
    %p59 = por %p57, %p58
    %p60 = scmp.ne.s32.totalorder %s46, %s47
    %p61 = scmp.eq.s32.totalorder %s13, 1
    %p62 = por %p60, %p61
    %p64 = scmp.ne.s32.totalorder %s47, %s63
    %p65 = scmp.eq.s32.totalorder %s13, 0
    %p66 = por %p64, %p65
    %p67 = scmp.le.s32.totalorder 1, %s7
    %p68 = scmp.lt.s32.totalorder %s7, 3
    %p69 = pnand %p67, %p68
    %p70 = pneg %p69
    // Predicated region
    $region9: #{mae_forward.22} parent=5 // pred_check
      _
    $region10: #{mae_forward.22} parent=5 // pred_check_branch
      %72 = sbr.rel (%p69) target = $region12
    $region11: #{mae_forward.22} parent=5 // pred_region
      %s73 = ssub.s32 %s7, 1
    $region12: #{mae_forward.22} parent=5 // pred_fallthru
      _
    %p74 = scmp.lt.s32.totalorder %s7, 2
    // Predicated region
    $region13: #{mae_forward.22} parent=5 // pred_check
      %p75 = pneg %p74
    $region14: #{mae_forward.22} parent=5 // pred_check_branch
      %77 = sbr.rel (%p75) target = $region16
    $region15: #{mae_forward.22} parent=5 // pred_region
      // Predicated region
      $region17: #{mae_forward.22} parent=15 // pred_check
        %p78 = pneg %p27
      $region18: #{mae_forward.22} parent=15 // pred_check_branch
        %80 = sbr.rel (%p78) target = $region20
      $region19: #{mae_forward.22} parent=15 // pred_region
        %p81 = scmp.lt.s32.totalorder %s7, 1
        %s82 = scalar_select %p81, %s7, 1
        %s83 = smul.addr %s82, 3
        %s84 = smul.addr %s83, 4
        %s85 = scalar_lea.vmem %s0, %s84
      $region20: #{mae_forward.22} parent=15 // pred_fallthru
        _
    $region16: #{mae_forward.22} parent=5 // pred_fallthru
      _
    %p86 = scmp.le.s32.totalorder 1, %s7
    %p87 = scmp.lt.s32.totalorder %s7, 3
    %p88 = pnand %p86, %p87
    %p89 = pneg %p88
    // Predicated region
    $region21: #{mae_forward.22} parent=5 // pred_check
      _
    $region22: #{mae_forward.22} parent=5 // pred_check_branch
      %91 = sbr.rel (%p88) target = $region24
    $region23: #{mae_forward.22} parent=5 // pred_region
      %s92 = ssub.s32 %s7, 1
      %p93 = scmp.lt.s32.totalorder %s12, 1
      %s94 = scalar_select %p93, %s12, 1
      %s95 = smul.addr %s94, 3
      %s96 = smul.addr %s95, 4
      %s97 = scalar_lea.vmem %s0, %s96
      %p98 = pneg %p33
      %p99 = pneg %p30
      %p100 = pneg %p59
      %p101 = pneg %p56
      %p102 = scmp.lt.s32.totalorder %s12, 1
      %s103 = scalar_select %p102, %s12, 1
      %s104 = smul.addr %s103, 3
      %s105 = smul.addr %s104, 4
      %s106 = scalar_lea.vmem %s1, %s105
      %p107 = scmp.lt.s32.totalorder %s12, 1
      %s108 = scalar_select %p107, %s12, 1
      %s109 = smul.addr %s108, 3
      %s110 = smul.addr %s109, 4
      %s111 = scalar_lea.vmem %s0, %s110
      %p112 = scmp.lt.s32.totalorder %s12, 1
      %s113 = scalar_select %p112, %s12, 1
      %s114 = smul.addr %s113, 3
      %s115 = smul.addr %s114, 4
      %s116 = scalar_lea.vmem %s1, %s115
      %v118 = vld [vmem:[%s111] sm:$0xf]
      %v119 = vld [vmem:[%s111 + $0x4] sm:$0xf]
      %v120 = vld [vmem:[%s111 + $0x8] sm:$0x1]
      %v124 = vunpack.c.l.b16 %v118
      %v125 = vunpack.c.l.b16 %v119
      %v126 = vunpack.c.l.b16 %v120
      %v127 = vpack.c.b16 %v125, %v124
      %v128 = vpack.c.b16 %v126, %v126
      %129 = vrot.lane.b32.xlu0 %v127, 96
      %v130 = vpop.permute.xlu0 %129
      %131 = vrot.lane.b32.xlu0 %v128, 96
      %v132 = vpop.permute.xlu0 %131
      %vm133 = vcmask 64512
      %v135 = vsel %vm133, %v127, 0
      %v138 = vsel %vm133, %v128, 0
      %v141 = vsel %vm133, %v130, 0
      %v144 = vsel %vm133, %v132, 0
      %146 = vmatprep.subr.bf16.mxu0 0
      %147 = vmatpush1.bf16.xpose.msra.mxu0 %v141
      %148 = vmatprep.subr.bf16.mxu0 0
      %149 = vmatpush1.bf16.xpose.msra.mxu0 %v144
      %150 = vmatprep.subr.bf16.mxu0 0
      %151 = vmatpush1.bf16.xpose.msra.mxu0 0
      %152 = vmatprep.subr.bf16.mxu0 0
      %153 = vmatpush1.bf16.xpose.msra.mxu0 0
      %154 = vmatprep.subr.bf16.mxu0 0
      %155 = vmatpush1.bf16.xpose.msra.mxu0 0
      %156 = vmatprep.subr.bf16.mxu0 0
      %157 = vmatpush1.bf16.xpose.msra.mxu0 0
      %158 = vmatprep.subr.bf16.mxu0 0
      %159 = vmatpush1.bf16.xpose.msra.mxu0 0
      %160 = vmatprep.subr.bf16.mxu0 0
      %161 = vmatpush1.bf16.xpose.msra.mxu0 0
      %162 = vmatprep.subr.bf16.mxu0 0
      %163 = vmatpush1.bf16.xpose.msra.mxu0 0
      %164 = vmatprep.subr.bf16.mxu0 0
      %165 = vmatpush1.bf16.xpose.msra.mxu0 0
      %166 = vmatprep.subr.bf16.mxu0 0
      %167 = vmatpush1.bf16.xpose.msra.mxu0 0
      %168 = vmatprep.subr.bf16.mxu0 0
      %169 = vmatpush1.bf16.xpose.msra.mxu0 0
      %170 = vmatprep.subr.bf16.mxu0 0
      %171 = vmatpush1.bf16.xpose.msra.mxu0 0
      %172 = vmatprep.subr.bf16.mxu0 0
      %173 = vmatpush1.bf16.xpose.msra.mxu0 0
      %174 = vmatprep.subr.bf16.mxu0 0
      %175 = vmatpush1.bf16.xpose.msra.mxu0 0
      %176 = vmatprep.subr.bf16.mxu0 0
      %177 = vmatpush1.bf16.xpose.msra.mxu0 0
      %178 = vmatprep.mubr.bf16.mxu0 0
      %179 = vmatmul.mubr.bf16.gmra.mrb[0].mxu0 %v135
      %v180 = vpop.f32.mrb[0].mxu0
      %v181 = vadd.f32 0.0, %v180
      %v182 = vpop.f32.mrb[0].mxu0
      %v183 = vpop.f32.mrb[0].mxu0
      %v184 = vadd.f32 0.0, %v183
      %v185 = vpop.f32.mrb[0].mxu0
      %186 = vmatprep.mubr.bf16.mxu0 0
      %187 = vmatmul.mubr.bf16.gmra.mrb[0].mxu0 %v138
      %v188 = vpop.f32.mrb[0].mxu0
      %v189 = vadd.f32 0.0, %v188
      %v190 = vpop.f32.mrb[0].mxu0
      %v191 = vpop.f32.mrb[0].mxu0
      %v192 = vpop.f32.mrb[0].mxu0
      %193 = vdwg.mxu0
      %v194 = vmul.f32 %v181, 0.35355338
      %v195 = vmul.f32 %v184, 0.35355338
      %v196 = vmul.f32 %v189, 0.35355338
      %vm197 = vcmask 138240
      %v198 = vsel %vm197, %v194, -inf
      %199 = vmax.xlane.f32.xlu0 %v198
      %v200 = vpop.xlane.xlu0 %199
      %v201 = vsel %vm197, %v195, -inf
      %202 = vmax.xlane.f32.xlu0 %v201
      %v203 = vpop.xlane.xlu0 %202
      %vm204 = vcmask 131072
      %v205 = vsel %vm204, %v196, -inf
      %206 = vmax.xlane.f32.xlu0 %v205
      %v207 = vpop.xlane.xlu0 %206
      %v208 = vsub.f32 %v194, %v200
      %v209 = vsub.f32 %v195, %v203
      %v210 = vsub.f32 %v196, %v207
      %v211 = vmul.f32 %v208, 1.442695
      %v212 = vpow.pop %v211
      %v213 = vmul.f32 %v209, 1.442695
      %v214 = vpow.pop %v213
      %v215 = vmul.f32 %v210, 1.442695
      %v216 = vpow.pop %v215
      %v217 = vsel %vm197, %v212, 0.0
      %218 = vadd.xlane.f32.xlu0 %v217
      %v219 = vpop.xlane.xlu0 %218
      %v220 = vsel %vm197, %v214, 0.0
      %221 = vadd.xlane.f32.xlu0 %v220
      %v222 = vpop.xlane.xlu0 %221
      %v223 = vsel %vm204, %v216, 0.0
      %224 = vadd.xlane.f32.xlu0 %v223
      %v225 = vpop.xlane.xlu0 %224
      %v226 = vrcp.pop %v219
      %v227 = vrcp.pop %v222
      %v228 = vrcp.pop %v225
      %v229 = vmul.f32 %v212, %v226
      %v230 = vmul.f32 %v214, %v227
      %v231 = vmul.f32 %v216, %v228
      %v232 = vpack.c.bf16 %v230, %v229
      %v233 = vpack.c.bf16 %v231, %v231
      %234 = vrot.lane.b32.xlu0 %v127, 64
      %v235 = vpop.permute.xlu0 %234
      %236 = vrot.lane.b32.xlu0 %v128, 64
      %v237 = vpop.permute.xlu0 %236
      %v240 = vsel %vm197, %v232, 0
      %v243 = vsel %vm197, %v233, 0
      %vm245 = vcmask 1040384
      %v246 = vsel 0, 4294967295, 65535
      %v247 = vsel %vm245, %v246, 0
      %v249 = vand.u32 %v237, %v247
      %251 = vmatprep.subr.bf16.mxu0 0
      %252 = vmatpush1.bf16.msra.mxu0 %v235
      %253 = vmatprep.subr.bf16.mxu0 0
      %254 = vmatpush1.bf16.msra.mxu0 %v249
      %255 = vmatprep.subr.bf16.mxu0 0
      %256 = vmatpush1.bf16.msra.mxu0 0
      %257 = vmatprep.subr.bf16.mxu0 0
      %258 = vmatpush1.bf16.msra.mxu0 0
      %259 = vmatprep.subr.bf16.mxu0 0
      %260 = vmatpush1.bf16.msra.mxu0 0
      %261 = vmatprep.subr.bf16.mxu0 0
      %262 = vmatpush1.bf16.msra.mxu0 0
      %263 = vmatprep.subr.bf16.mxu0 0
      %264 = vmatpush1.bf16.msra.mxu0 0
      %265 = vmatprep.subr.bf16.mxu0 0
      %266 = vmatpush1.bf16.msra.mxu0 0
      %267 = vmatprep.subr.bf16.mxu0 0
      %268 = vmatpush1.bf16.msra.mxu0 0
      %269 = vmatprep.subr.bf16.mxu0 0
      %270 = vmatpush1.bf16.msra.mxu0 0
      %271 = vmatprep.subr.bf16.mxu0 0
      %272 = vmatpush1.bf16.msra.mxu0 0
      %273 = vmatprep.subr.bf16.mxu0 0
      %274 = vmatpush1.bf16.msra.mxu0 0
      %275 = vmatprep.subr.bf16.mxu0 0
      %276 = vmatpush1.bf16.msra.mxu0 0
      %277 = vmatprep.subr.bf16.mxu0 0
      %278 = vmatpush1.bf16.msra.mxu0 0
      %279 = vmatprep.subr.bf16.mxu0 0
      %280 = vmatpush1.bf16.msra.mxu0 0
      %281 = vmatprep.subr.bf16.mxu0 0
      %282 = vmatpush1.bf16.msra.mxu0 0
      %283 = vmatprep.mubr.bf16.mxu0 0
      %284 = vmatmul.mubr.bf16.gmra.mrb[0].mxu0 %v240
      %v285 = vpop.f32.mrb[0].mxu0
      %v286 = vadd.f32 0.0, %v285
      %v287 = vpop.f32.mrb[0].mxu0
      %v288 = vpop.f32.mrb[0].mxu0
      %v289 = vadd.f32 0.0, %v288
      %v290 = vpop.f32.mrb[0].mxu0
      %291 = vmatprep.mubr.bf16.mxu0 0
      %292 = vmatmul.mubr.bf16.gmra.mrb[0].mxu0 %v243
      %v293 = vpop.f32.mrb[0].mxu0
      %v294 = vadd.f32 0.0, %v293
      %v295 = vpop.f32.mrb[0].mxu0
      %v296 = vpop.f32.mrb[0].mxu0
      %v297 = vpop.f32.mrb[0].mxu0
      %298 = vdwg.mxu0
      %299 = vrot.lane.b32.xlu0 %v127, 120
      %v300 = vpop.permute.xlu0 %299
      %301 = vrot.lane.b32.xlu0 %v128, 120
      %v302 = vpop.permute.xlu0 %301
      %303 = vrot.lane.b32.xlu0 %v127, 88
      %v304 = vpop.permute.xlu0 %303
      %305 = vrot.lane.b32.xlu0 %v128, 88
      %v306 = vpop.permute.xlu0 %305
      %v308 = vsel %vm133, %v300, 0
      %v311 = vsel %vm133, %v302, 0
      %v314 = vsel %vm133, %v304, 0
      %v317 = vsel %vm133, %v306, 0
      %319 = vmatprep.subr.bf16.mxu0 0
      %320 = vmatpush1.bf16.xpose.msra.mxu0 %v314
      %321 = vmatprep.subr.bf16.mxu0 0
      %322 = vmatpush1.bf16.xpose.msra.mxu0 %v317
      %323 = vmatprep.subr.bf16.mxu0 0
      %324 = vmatpush1.bf16.xpose.msra.mxu0 0
      %325 = vmatprep.subr.bf16.mxu0 0
      %326 = vmatpush1.bf16.xpose.msra.mxu0 0
      %327 = vmatprep.subr.bf16.mxu0 0
      %328 = vmatpush1.bf16.xpose.msra.mxu0 0
      %329 = vmatprep.subr.bf16.mxu0 0
      %330 = vmatpush1.bf16.xpose.msra.mxu0 0
      %331 = vmatprep.subr.bf16.mxu0 0
      %332 = vmatpush1.bf16.xpose.msra.mxu0 0
      %333 = vmatprep.subr.bf16.mxu0 0
      %334 = vmatpush1.bf16.xpose.msra.mxu0 0
      %335 = vmatprep.subr.bf16.mxu0 0
      %336 = vmatpush1.bf16.xpose.msra.mxu0 0
      %337 = vmatprep.subr.bf16.mxu0 0
      %338 = vmatpush1.bf16.xpose.msra.mxu0 0
      %339 = vmatprep.subr.bf16.mxu0 0
      %340 = vmatpush1.bf16.xpose.msra.mxu0 0
      %341 = vmatprep.subr.bf16.mxu0 0
      %342 = vmatpush1.bf16.xpose.msra.mxu0 0
      %343 = vmatprep.subr.bf16.mxu0 0
      %344 = vmatpush1.bf16.xpose.msra.mxu0 0
      %345 = vmatprep.subr.bf16.mxu0 0
      %346 = vmatpush1.bf16.xpose.msra.mxu0 0
      %347 = vmatprep.subr.bf16.mxu0 0
      %348 = vmatpush1.bf16.xpose.msra.mxu0 0
      %349 = vmatprep.subr.bf16.mxu0 0
      %350 = vmatpush1.bf16.xpose.msra.mxu0 0
      %351 = vmatprep.mubr.bf16.mxu0 0
      %352 = vmatmul.mubr.bf16.gmra.mrb[0].mxu0 %v308
      %v353 = vpop.f32.mrb[0].mxu0
      %v354 = vadd.f32 0.0, %v353
      %v355 = vpop.f32.mrb[0].mxu0
      %v356 = vpop.f32.mrb[0].mxu0
      %v357 = vadd.f32 0.0, %v356
      %v358 = vpop.f32.mrb[0].mxu0
      %359 = vmatprep.mubr.bf16.mxu0 0
      %360 = vmatmul.mubr.bf16.gmra.mrb[0].mxu0 %v311
      %v361 = vpop.f32.mrb[0].mxu0
      %v362 = vadd.f32 0.0, %v361
      %v363 = vpop.f32.mrb[0].mxu0
      %v364 = vpop.f32.mrb[0].mxu0
      %v365 = vpop.f32.mrb[0].mxu0
      %366 = vdwg.mxu0
      %v367 = vmul.f32 %v354, 0.35355338
      %v368 = vmul.f32 %v357, 0.35355338
      %v369 = vmul.f32 %v362, 0.35355338
      %v370 = vsel %vm197, %v367, -inf
      %371 = vmax.xlane.f32.xlu0 %v370
      %v372 = vpop.xlane.xlu0 %371
      %v373 = vsel %vm197, %v368, -inf
      %374 = vmax.xlane.f32.xlu0 %v373
      %v375 = vpop.xlane.xlu0 %374
      %v376 = vsel %vm204, %v369, -inf
      %377 = vmax.xlane.f32.xlu0 %v376
      %v378 = vpop.xlane.xlu0 %377
      %v379 = vsub.f32 %v367, %v372
      %v380 = vsub.f32 %v368, %v375
      %v381 = vsub.f32 %v369, %v378
      %v382 = vmul.f32 %v379, 1.442695
      %v383 = vpow.pop %v382
      %v384 = vmul.f32 %v380, 1.442695
      %v385 = vpow.pop %v384
      %v386 = vmul.f32 %v381, 1.442695
      %v387 = vpow.pop %v386
      %v388 = vsel %vm197, %v383, 0.0
      %389 = vadd.xlane.f32.xlu0 %v388
      %v390 = vpop.xlane.xlu0 %389
      %v391 = vsel %vm197, %v385, 0.0
      %392 = vadd.xlane.f32.xlu0 %v391
      %v393 = vpop.xlane.xlu0 %392
      %v394 = vsel %vm204, %v387, 0.0
      %395 = vadd.xlane.f32.xlu0 %v394
      %v396 = vpop.xlane.xlu0 %395
      %v397 = vrcp.pop %v390
      %v398 = vrcp.pop %v393
      %v399 = vrcp.pop %v396
      %v400 = vmul.f32 %v383, %v397
      %v401 = vmul.f32 %v385, %v398
      %v402 = vmul.f32 %v387, %v399
      %v403 = vpack.c.bf16 %v401, %v400
      %v404 = vpack.c.bf16 %v402, %v402
      %405 = vrot.lane.b32.xlu0 %v127, 56
      %v406 = vpop.permute.xlu0 %405
      %407 = vrot.lane.b32.xlu0 %v128, 56
      %v408 = vpop.permute.xlu0 %407
      %v411 = vsel %vm197, %v403, 0
      %v414 = vsel %vm197, %v404, 0
      %v417 = vand.u32 %v408, %v247
      %419 = vmatprep.subr.bf16.mxu0 0
      %420 = vmatpush1.bf16.msra.mxu0 %v406
      %421 = vmatprep.subr.bf16.mxu0 0
      %422 = vmatpush1.bf16.msra.mxu0 %v417
      %423 = vmatprep.subr.bf16.mxu0 0
      %424 = vmatpush1.bf16.msra.mxu0 0
      %425 = vmatprep.subr.bf16.mxu0 0
      %426 = vmatpush1.bf16.msra.mxu0 0
      %427 = vmatprep.subr.bf16.mxu0 0
      %428 = vmatpush1.bf16.msra.mxu0 0
      %429 = vmatprep.subr.bf16.mxu0 0
      %430 = vmatpush1.bf16.msra.mxu0 0
      %431 = vmatprep.subr.bf16.mxu0 0
      %432 = vmatpush1.bf16.msra.mxu0 0
      %433 = vmatprep.subr.bf16.mxu0 0
      %434 = vmatpush1.bf16.msra.mxu0 0
      %435 = vmatprep.subr.bf16.mxu0 0
      %436 = vmatpush1.bf16.msra.mxu0 0
      %437 = vmatprep.subr.bf16.mxu0 0
      %438 = vmatpush1.bf16.msra.mxu0 0
      %439 = vmatprep.subr.bf16.mxu0 0
      %440 = vmatpush1.bf16.msra.mxu0 0
      %441 = vmatprep.subr.bf16.mxu0 0
      %442 = vmatpush1.bf16.msra.mxu0 0
      %443 = vmatprep.subr.bf16.mxu0 0
      %444 = vmatpush1.bf16.msra.mxu0 0
      %445 = vmatprep.subr.bf16.mxu0 0
      %446 = vmatpush1.bf16.msra.mxu0 0
      %447 = vmatprep.subr.bf16.mxu0 0
      %448 = vmatpush1.bf16.msra.mxu0 0
      %449 = vmatprep.subr.bf16.mxu0 0
      %450 = vmatpush1.bf16.msra.mxu0 0
      %451 = vmatprep.mubr.bf16.mxu0 0
      %452 = vmatmul.mubr.bf16.gmra.mrb[0].mxu0 %v411
      %v453 = vpop.f32.mrb[0].mxu0
      %v454 = vadd.f32 0.0, %v453
      %v455 = vpop.f32.mrb[0].mxu0
      %v456 = vpop.f32.mrb[0].mxu0
      %v457 = vadd.f32 0.0, %v456
      %v458 = vpop.f32.mrb[0].mxu0
      %459 = vmatprep.mubr.bf16.mxu0 0
      %460 = vmatmul.mubr.bf16.gmra.mrb[0].mxu0 %v414
      %v461 = vpop.f32.mrb[0].mxu0
      %v462 = vadd.f32 0.0, %v461
      %v463 = vpop.f32.mrb[0].mxu0
      %v464 = vpop.f32.mrb[0].mxu0
      %v465 = vpop.f32.mrb[0].mxu0
      %466 = vdwg.mxu0
      %467 = vrot.lane.b32.xlu0 %v127, 112
      %v468 = vpop.permute.xlu0 %467
      %469 = vrot.lane.b32.xlu0 %v128, 112
      %v470 = vpop.permute.xlu0 %469
      %471 = vrot.lane.b32.xlu0 %v127, 80
      %v472 = vpop.permute.xlu0 %471
      %473 = vrot.lane.b32.xlu0 %v128, 80
      %v474 = vpop.permute.xlu0 %473
      %v476 = vsel %vm133, %v468, 0
      %v479 = vsel %vm133, %v470, 0
      %v482 = vsel %vm133, %v472, 0
      %v485 = vsel %vm133, %v474, 0
      %487 = vmatprep.subr.bf16.mxu0 0
      %488 = vmatpush1.bf16.xpose.msra.mxu0 %v482
      %489 = vmatprep.subr.bf16.mxu0 0
      %490 = vmatpush1.bf16.xpose.msra.mxu0 %v485
      %491 = vmatprep.subr.bf16.mxu0 0
      %492 = vmatpush1.bf16.xpose.msra.mxu0 0
      %493 = vmatprep.subr.bf16.mxu0 0
      %494 = vmatpush1.bf16.xpose.msra.mxu0 0
      %495 = vmatprep.subr.bf16.mxu0 0
      %496 = vmatpush1.bf16.xpose.msra.mxu0 0
      %497 = vmatprep.subr.bf16.mxu0 0
      %498 = vmatpush1.bf16.xpose.msra.mxu0 0
      %499 = vmatprep.subr.bf16.mxu0 0
      %500 = vmatpush1.bf16.xpose.msra.mxu0 0
      %501 = vmatprep.subr.bf16.mxu0 0
      %502 = vmatpush1.bf16.xpose.msra.mxu0 0
      %503 = vmatprep.subr.bf16.mxu0 0
      %504 = vmatpush1.bf16.xpose.msra.mxu0 0
      %505 = vmatprep.subr.bf16.mxu0 0
      %506 = vmatpush1.bf16.xpose.msra.mxu0 0
      %507 = vmatprep.subr.bf16.mxu0 0
      %508 = vmatpush1.bf16.xpose.msra.mxu0 0
      %509 = vmatprep.subr.bf16.mxu0 0
      %510 = vmatpush1.bf16.xpose.msra.mxu0 0
      %511 = vmatprep.subr.bf16.mxu0 0
      %512 = vmatpush1.bf16.xpose.msra.mxu0 0
      %513 = vmatprep.subr.bf16.mxu0 0
      %514 = vmatpush1.bf16.xpose.msra.mxu0 0
      %515 = vmatprep.subr.bf16.mxu0 0
      %516 = vmatpush1.bf16.xpose.msra.mxu0 0
      %517 = vmatprep.subr.bf16.mxu0 0
      %518 = vmatpush1.bf16.xpose.msra.mxu0 0
      %519 = vmatprep.mubr.bf16.mxu0 0
      %520 = vmatmul.mubr.bf16.gmra.mrb[0].mxu0 %v476
      %v521 = vpop.f32.mrb[0].mxu0
      %v522 = vadd.f32 0.0, %v521
      %v523 = vpop.f32.mrb[0].mxu0
      %v524 = vpop.f32.mrb[0].mxu0
      %v525 = vadd.f32 0.0, %v524
      %v526 = vpop.f32.mrb[0].mxu0
      %527 = vmatprep.mubr.bf16.mxu0 0
      %528 = vmatmul.mubr.bf16.gmra.mrb[0].mxu0 %v479
      %v529 = vpop.f32.mrb[0].mxu0
      %v530 = vadd.f32 0.0, %v529
      %v531 = vpop.f32.mrb[0].mxu0
      %v532 = vpop.f32.mrb[0].mxu0
      %v533 = vpop.f32.mrb[0].mxu0
      %534 = vdwg.mxu0
      %v535 = vmul.f32 %v522, 0.35355338
      %v536 = vmul.f32 %v525, 0.35355338
      %v537 = vmul.f32 %v530, 0.35355338
      %v538 = vsel %vm197, %v535, -inf
      %539 = vmax.xlane.f32.xlu0 %v538
      %v540 = vpop.xlane.xlu0 %539
      %v541 = vsel %vm197, %v536, -inf
      %542 = vmax.xlane.f32.xlu0 %v541
      %v543 = vpop.xlane.xlu0 %542
      %v544 = vsel %vm204, %v537, -inf
      %545 = vmax.xlane.f32.xlu0 %v544
      %v546 = vpop.xlane.xlu0 %545
      %v547 = vsub.f32 %v535, %v540
      %v548 = vsub.f32 %v536, %v543
      %v549 = vsub.f32 %v537, %v546
      %v550 = vmul.f32 %v547, 1.442695
      %v551 = vpow.pop %v550
      %v552 = vmul.f32 %v548, 1.442695
      %v553 = vpow.pop %v552
      %v554 = vmul.f32 %v549, 1.442695
      %v555 = vpow.pop %v554
      %v556 = vsel %vm197, %v551, 0.0
      %557 = vadd.xlane.f32.xlu0 %v556
      %v558 = vpop.xlane.xlu0 %557
      %v559 = vsel %vm197, %v553, 0.0
      %560 = vadd.xlane.f32.xlu0 %v559
      %v561 = vpop.xlane.xlu0 %560
      %v562 = vsel %vm204, %v555, 0.0
      %563 = vadd.xlane.f32.xlu0 %v562
      %v564 = vpop.xlane.xlu0 %563
      %v565 = vrcp.pop %v558
      %v566 = vrcp.pop %v561
      %v567 = vrcp.pop %v564
      %v568 = vmul.f32 %v551, %v565
      %v569 = vmul.f32 %v553, %v566
      %v570 = vmul.f32 %v555, %v567
      %v571 = vpack.c.bf16 %v569, %v568
      %v572 = vpack.c.bf16 %v570, %v570
      %573 = vrot.lane.b32.xlu0 %v127, 48
      %v574 = vpop.permute.xlu0 %573
      %575 = vrot.lane.b32.xlu0 %v128, 48
      %v576 = vpop.permute.xlu0 %575
      %v579 = vsel %vm197, %v571, 0
      %v582 = vsel %vm197, %v572, 0
      %v585 = vand.u32 %v576, %v247
      %587 = vmatprep.subr.bf16.mxu0 0
      %588 = vmatpush1.bf16.msra.mxu0 %v574
      %589 = vmatprep.subr.bf16.mxu0 0
      %590 = vmatpush1.bf16.msra.mxu0 %v585
      %591 = vmatprep.subr.bf16.mxu0 0
      %592 = vmatpush1.bf16.msra.mxu0 0
      %593 = vmatprep.subr.bf16.mxu0 0
      %594 = vmatpush1.bf16.msra.mxu0 0
      %595 = vmatprep.subr.bf16.mxu0 0
      %596 = vmatpush1.bf16.msra.mxu0 0
      %597 = vmatprep.subr.bf16.mxu0 0
      %598 = vmatpush1.bf16.msra.mxu0 0
      %599 = vmatprep.subr.bf16.mxu0 0
      %600 = vmatpush1.bf16.msra.mxu0 0
      %601 = vmatprep.subr.bf16.mxu0 0
      %602 = vmatpush1.bf16.msra.mxu0 0
      %603 = vmatprep.subr.bf16.mxu0 0
      %604 = vmatpush1.bf16.msra.mxu0 0
      %605 = vmatprep.subr.bf16.mxu0 0
      %606 = vmatpush1.bf16.msra.mxu0 0
      %607 = vmatprep.subr.bf16.mxu0 0
      %608 = vmatpush1.bf16.msra.mxu0 0
      %609 = vmatprep.subr.bf16.mxu0 0
      %610 = vmatpush1.bf16.msra.mxu0 0
      %611 = vmatprep.subr.bf16.mxu0 0
      %612 = vmatpush1.bf16.msra.mxu0 0
      %613 = vmatprep.subr.bf16.mxu0 0
      %614 = vmatpush1.bf16.msra.mxu0 0
      %615 = vmatprep.subr.bf16.mxu0 0
      %616 = vmatpush1.bf16.msra.mxu0 0
      %617 = vmatprep.subr.bf16.mxu0 0
      %618 = vmatpush1.bf16.msra.mxu0 0
      %619 = vmatprep.mubr.bf16.mxu0 0
      %620 = vmatmul.mubr.bf16.gmra.mrb[0].mxu0 %v579
      %v621 = vpop.f32.mrb[0].mxu0
      %v622 = vadd.f32 0.0, %v621
      %v623 = vpop.f32.mrb[0].mxu0
      %v624 = vpop.f32.mrb[0].mxu0
      %v625 = vadd.f32 0.0, %v624
      %v626 = vpop.f32.mrb[0].mxu0
      %627 = vmatprep.mubr.bf16.mxu0 0
      %628 = vmatmul.mubr.bf16.gmra.mrb[0].mxu0 %v582
      %v629 = vpop.f32.mrb[0].mxu0
      %v630 = vadd.f32 0.0, %v629
      %v631 = vpop.f32.mrb[0].mxu0
      %v632 = vpop.f32.mrb[0].mxu0
      %v633 = vpop.f32.mrb[0].mxu0
      %634 = vdwg.mxu0
      %635 = vrot.lane.b32.xlu0 %v127, 104
      %v636 = vpop.permute.xlu0 %635
      %637 = vrot.lane.b32.xlu0 %v128, 104
      %v638 = vpop.permute.xlu0 %637
      %639 = vrot.lane.b32.xlu0 %v127, 72
      %v640 = vpop.permute.xlu0 %639
      %641 = vrot.lane.b32.xlu0 %v128, 72
      %v642 = vpop.permute.xlu0 %641
      %v644 = vsel %vm133, %v636, 0
      %v647 = vsel %vm133, %v638, 0
      %v650 = vsel %vm133, %v640, 0
      %v653 = vsel %vm133, %v642, 0
      %655 = vmatprep.subr.bf16.mxu0 0
      %656 = vmatpush1.bf16.xpose.msra.mxu0 %v650
      %657 = vmatprep.subr.bf16.mxu0 0
      %658 = vmatpush1.bf16.xpose.msra.mxu0 %v653
      %659 = vmatprep.subr.bf16.mxu0 0
      %660 = vmatpush1.bf16.xpose.msra.mxu0 0
      %661 = vmatprep.subr.bf16.mxu0 0
      %662 = vmatpush1.bf16.xpose.msra.mxu0 0
      %663 = vmatprep.subr.bf16.mxu0 0
      %664 = vmatpush1.bf16.xpose.msra.mxu0 0
      %665 = vmatprep.subr.bf16.mxu0 0
      %666 = vmatpush1.bf16.xpose.msra.mxu0 0
      %667 = vmatprep.subr.bf16.mxu0 0
      %668 = vmatpush1.bf16.xpose.msra.mxu0 0
      %669 = vmatprep.subr.bf16.mxu0 0
      %670 = vmatpush1.bf16.xpose.msra.mxu0 0
      %671 = vmatprep.subr.bf16.mxu0 0
      %672 = vmatpush1.bf16.xpose.msra.mxu0 0
      %673 = vmatprep.subr.bf16.mxu0 0
      %674 = vmatpush1.bf16.xpose.msra.mxu0 0
      %675 = vmatprep.subr.bf16.mxu0 0
      %676 = vmatpush1.bf16.xpose.msra.mxu0 0
      %677 = vmatprep.subr.bf16.mxu0 0
      %678 = vmatpush1.bf16.xpose.msra.mxu0 0
      %679 = vmatprep.subr.bf16.mxu0 0
      %680 = vmatpush1.bf16.xpose.msra.mxu0 0
      %681 = vmatprep.subr.bf16.mxu0 0
      %682 = vmatpush1.bf16.xpose.msra.mxu0 0
      %683 = vmatprep.subr.bf16.mxu0 0
      %684 = vmatpush1.bf16.xpose.msra.mxu0 0
      %685 = vmatprep.subr.bf16.mxu0 0
      %686 = vmatpush1.bf16.xpose.msra.mxu0 0
      %687 = vmatprep.mubr.bf16.mxu0 0
      %688 = vmatmul.mubr.bf16.gmra.mrb[0].mxu0 %v644
      %v689 = vpop.f32.mrb[0].mxu0
      %v690 = vadd.f32 0.0, %v689
      %v691 = vpop.f32.mrb[0].mxu0
      %v692 = vpop.f32.mrb[0].mxu0
      %v693 = vadd.f32 0.0, %v692
      %v694 = vpop.f32.mrb[0].mxu0
      %695 = vmatprep.mubr.bf16.mxu0 0
      %696 = vmatmul.mubr.bf16.gmra.mrb[0].mxu0 %v647
      %v697 = vpop.f32.mrb[0].mxu0
      %v698 = vadd.f32 0.0, %v697
      %v699 = vpop.f32.mrb[0].mxu0
      %v700 = vpop.f32.mrb[0].mxu0
      %v701 = vpop.f32.mrb[0].mxu0
      %702 = vdwg.mxu0
      %v703 = vmul.f32 %v690, 0.35355338
      %v704 = vmul.f32 %v693, 0.35355338
      %v705 = vmul.f32 %v698, 0.35355338
      %v706 = vsel %vm197, %v703, -inf
      %707 = vmax.xlane.f32.xlu0 %v706
      %v708 = vpop.xlane.xlu0 %707
      %v709 = vsel %vm197, %v704, -inf
      %710 = vmax.xlane.f32.xlu0 %v709
      %v711 = vpop.xlane.xlu0 %710
      %v712 = vsel %vm204, %v705, -inf
      %713 = vmax.xlane.f32.xlu0 %v712
      %v714 = vpop.xlane.xlu0 %713
      %v715 = vsub.f32 %v703, %v708
      %v716 = vsub.f32 %v704, %v711
      %v717 = vsub.f32 %v705, %v714
      %v718 = vmul.f32 %v715, 1.442695
      %v719 = vpow.pop %v718
      %v720 = vmul.f32 %v716, 1.442695
      %v721 = vpow.pop %v720
      %v722 = vmul.f32 %v717, 1.442695
      %v723 = vpow.pop %v722
      %v724 = vsel %vm197, %v719, 0.0
      %725 = vadd.xlane.f32.xlu0 %v724
      %v726 = vpop.xlane.xlu0 %725
      %v727 = vsel %vm197, %v721, 0.0
      %728 = vadd.xlane.f32.xlu0 %v727
      %v729 = vpop.xlane.xlu0 %728
      %v730 = vsel %vm204, %v723, 0.0
      %731 = vadd.xlane.f32.xlu0 %v730
      %v732 = vpop.xlane.xlu0 %731
      %v733 = vrcp.pop %v726
      %v734 = vrcp.pop %v729
      %v735 = vrcp.pop %v732
      %v736 = vmul.f32 %v719, %v733
      %v737 = vmul.f32 %v721, %v734
      %v738 = vmul.f32 %v723, %v735
      %v739 = vpack.c.bf16 %v737, %v736
      %v740 = vpack.c.bf16 %v738, %v738
      %741 = vrot.lane.b32.xlu0 %v127, 40
      %v742 = vpop.permute.xlu0 %741
      %743 = vrot.lane.b32.xlu0 %v128, 40
      %v744 = vpop.permute.xlu0 %743
      %v747 = vsel %vm197, %v739, 0
      %v750 = vsel %vm197, %v740, 0
      %v753 = vand.u32 %v744, %v247
      %755 = vmatprep.subr.bf16.mxu0 0
      %756 = vmatpush1.bf16.msra.mxu0 %v742
      %757 = vmatprep.subr.bf16.mxu0 0
      %758 = vmatpush1.bf16.msra.mxu0 %v753
      %759 = vmatprep.subr.bf16.mxu0 0
      %760 = vmatpush1.bf16.msra.mxu0 0
      %761 = vmatprep.subr.bf16.mxu0 0
      %762 = vmatpush1.bf16.msra.mxu0 0
      %763 = vmatprep.subr.bf16.mxu0 0
      %764 = vmatpush1.bf16.msra.mxu0 0
      %765 = vmatprep.subr.bf16.mxu0 0
      %766 = vmatpush1.bf16.msra.mxu0 0
      %767 = vmatprep.subr.bf16.mxu0 0
      %768 = vmatpush1.bf16.msra.mxu0 0
      %769 = vmatprep.subr.bf16.mxu0 0
      %770 = vmatpush1.bf16.msra.mxu0 0
      %771 = vmatprep.subr.bf16.mxu0 0
      %772 = vmatpush1.bf16.msra.mxu0 0
      %773 = vmatprep.subr.bf16.mxu0 0
      %774 = vmatpush1.bf16.msra.mxu0 0
      %775 = vmatprep.subr.bf16.mxu0 0
      %776 = vmatpush1.bf16.msra.mxu0 0
      %777 = vmatprep.subr.bf16.mxu0 0
      %778 = vmatpush1.bf16.msra.mxu0 0
      %779 = vmatprep.subr.bf16.mxu0 0
      %780 = vmatpush1.bf16.msra.mxu0 0
      %781 = vmatprep.subr.bf16.mxu0 0
      %782 = vmatpush1.bf16.msra.mxu0 0
      %783 = vmatprep.subr.bf16.mxu0 0
      %784 = vmatpush1.bf16.msra.mxu0 0
      %785 = vmatprep.subr.bf16.mxu0 0
      %786 = vmatpush1.bf16.msra.mxu0 0
      %787 = vmatprep.mubr.bf16.mxu0 0
      %788 = vmatmul.mubr.bf16.gmra.mrb[0].mxu0 %v747
      %v789 = vpop.f32.mrb[0].mxu0
      %v790 = vadd.f32 0.0, %v789
      %v791 = vpop.f32.mrb[0].mxu0
      %v792 = vpop.f32.mrb[0].mxu0
      %v793 = vadd.f32 0.0, %v792
      %v794 = vpop.f32.mrb[0].mxu0
      %795 = vmatprep.mubr.bf16.mxu0 0
      %796 = vmatmul.mubr.bf16.gmra.mrb[0].mxu0 %v750
      %v797 = vpop.f32.mrb[0].mxu0
      %v798 = vadd.f32 0.0, %v797
      %v799 = vpop.f32.mrb[0].mxu0
      %v800 = vpop.f32.mrb[0].mxu0
      %v801 = vpop.f32.mrb[0].mxu0
      %802 = vdwg.mxu0
      %806 = vrot.lane.b32.xlu0 %v454, 8
      %v807 = vpop.permute.xlu0 %806
      %808 = vrot.lane.b32.xlu0 %v457, 8
      %v809 = vpop.permute.xlu0 %808
      %810 = vrot.lane.b32.xlu0 %v462, 8
      %v811 = vpop.permute.xlu0 %810
      %818 = vrot.lane.b32.xlu0 %v622, 16
      %v819 = vpop.permute.xlu0 %818
      %820 = vrot.lane.b32.xlu0 %v625, 16
      %v821 = vpop.permute.xlu0 %820
      %822 = vrot.lane.b32.xlu0 %v630, 16
      %v823 = vpop.permute.xlu0 %822
      %830 = vrot.lane.b32.xlu0 %v790, 24
      %v831 = vpop.permute.xlu0 %830
      %832 = vrot.lane.b32.xlu0 %v793, 24
      %v833 = vpop.permute.xlu0 %832
      %834 = vrot.lane.b32.xlu0 %v798, 24
      %v835 = vpop.permute.xlu0 %834
      %v839 = vsel %vm133, %v286, %v807
      %v840 = vsel %vm133, %v289, %v809
      %v841 = vsel %vm133, %v294, %v811
      %vm842 = vcmask 130048
      %v843 = vsel %vm842, %v839, %v819
      %v844 = vsel %vm842, %v840, %v821
      %v845 = vsel %vm842, %v841, %v823
      %vm846 = vcmask 195584
      %v847 = vsel %vm846, %v843, %v831
      %v848 = vsel %vm846, %v844, %v833
      %v849 = vsel %vm846, %v845, %v835
      %v850 = vpack.c.bf16 %v848, %v847
      %v851 = vpack.c.bf16 %v849, %v849
      %v854 = vunpack.c.l.b16 %v850
      %v855 = vunpack.c.h.b16 %v850
      %v856 = vunpack.c.l.b16 %v851
      %v857 = vpack.c.b16 %v854, %v854
      %v858 = vpack.c.b16 %v855, %v855
      %v859 = vpack.c.b16 %v856, %v856
      %vm863 = vcmask 257024
      %864 = vst.msk [vmem:[%s116] sm:$0xf] %vm863, %v857
      %865 = vst.msk [vmem:[%s116 + $0x4] sm:$0xf] %vm863, %v858
      %vm866 = vcmask 253952
      %vm867 = vsmask.f32 256
      %vm868 = vmand %vm866, %vm867
      %v869 = vld [vmem:[%s116 + $0x8] sm:$0x1]
      %v870 = vsel %vm868, %v859, %v869
      %871 = vst [vmem:[%s116 + $0x8] sm:$0x1] %v870
      %p872 = scmp.lt.s32.totalorder %s12, 1
      %s873 = scalar_select %p872, %s12, 1
      %s874 = smul.addr %s873, 3
      %s875 = smul.addr %s874, 4
      %s876 = scalar_lea.vmem %s1, %s875
      // Predicated region
      $region25: #{mae_forward.22} parent=23 // pred_check
        %p877 = pneg %p56
      $region26: #{mae_forward.22} parent=23 // pred_check_branch
        %879 = sbr.rel (%p877) target = $region28
      $region27: #{mae_forward.22} parent=23 // pred_region
        _
      $region28: #{mae_forward.22} parent=23 // pred_fallthru
        _
    $region24: #{mae_forward.22} parent=5 // pred_fallthru
      _
    %p880 = scmp.le.s32.totalorder 2, %s7
    // Predicated region
    $region29: #{mae_forward.22} parent=5 // pred_check
      %p881 = pneg %p880
    $region30: #{mae_forward.22} parent=5 // pred_check_branch
      %883 = sbr.rel (%p881) target = $region32
    $region31: #{mae_forward.22} parent=5 // pred_region
      %s884 = ssub.s32 %s7, 2
      // Predicated region
      $region33: #{mae_forward.22} parent=31 // pred_check
        %p885 = pneg %p62
      $region34: #{mae_forward.22} parent=31 // pred_check_branch
        %887 = sbr.rel (%p885) target = $region36
      $region35: #{mae_forward.22} parent=31 // pred_region
        %p888 = scmp.lt.s32.totalorder %s13, 1
        %s889 = scalar_select %p888, %s13, 1
        %s890 = smul.addr %s889, 3
        %s891 = smul.addr %s890, 4
        %s892 = scalar_lea.vmem %s1, %s891
      $region36: #{mae_forward.22} parent=31 // pred_fallthru
        _
    $region32: #{mae_forward.22} parent=5 // pred_fallthru
      _
  $region6: #{mae_forward.22} parent=0 // loop_footer
    %s11 = sadd.s32 1, %s7
  $region7: #{mae_forward.22} parent=0 // loop_footer_branch
    %6 = sbr.rel target = $region3
  $region8: #{mae_forward.22} parent=0 // loop_exit
    _

// kernel: mae_forward.26
$region0: #{mae_forward.26}
  #allocation0 [shape = 'u32[]', space=smem, size = 0x4, offset = 0x4, fixed_abs, tag = 'smem constant byte address 0x4 - core index']
  #allocation1 [shape = 'u32[144,128]{1,0:T(1,128)}', space=vmem, size = 0x12000, scoped, tag = 'internal scratch']
  #allocation2 [shape = 'f32[40,128]{1,0:T(8,128)}', space=vmem, size = 0x5000, scoped, tag = 'scratch operand']
  %s0 = inlined_call_operand.vmem [shape: bf16[40,128], index: 0, kind: input, shape index: {}]
  %s1 = inlined_call_operand.vmem [shape: bf16[128,128], index: 1, kind: input, shape index: {}]
  %s2 = inlined_call_operand.vmem [shape: f32[1,128], index: 2, kind: input, shape index: {}]
  %s3 = inlined_call_operand.vmem [shape: f32[1,128], index: 3, kind: input, shape index: {}]
  %s4 = inlined_call_operand.vmem [shape: f32[1,128], index: 4, kind: input, shape index: {}]
  %s5 = inlined_call_operand.vmem [shape: f32[40,128], index: 5, kind: output, shape index: {}]
  %s6 = sld [smem:[#allocation0]]
  $region38: #{mae_forward.26} parent=0
    _
  %s8 = ssub.s32 1, %s6
  %s9 = scalar_select 0, %s8, %s6
  // Predicated region
  $region2: #{mae_forward.26} parent=0 // pred_check
    _
  $region3: #{mae_forward.26} parent=0 // pred_check_branch
    %11 = sbr.rel (0) target = $region5
  $region4: #{mae_forward.26} parent=0 // pred_region
    _
  $region5: #{mae_forward.26} parent=0 // pred_fallthru
    _
  // Predicated region
  $region6: #{mae_forward.26} parent=0 // pred_check
    _
  $region7: #{mae_forward.26} parent=0 // pred_check_branch
    %13 = sbr.rel (0) target = $region9
  $region8: #{mae_forward.26} parent=0 // pred_region
    _
  $region9: #{mae_forward.26} parent=0 // pred_fallthru
    _
  // Predicated region
  $region10: #{mae_forward.26} parent=0 // pred_check
    _
  $region11: #{mae_forward.26} parent=0 // pred_check_branch
    %15 = sbr.rel (0) target = $region13
  $region12: #{mae_forward.26} parent=0 // pred_region
    _
  $region13: #{mae_forward.26} parent=0 // pred_fallthru
    _
  // Predicated region
  $region14: #{mae_forward.26} parent=0 // pred_check
    _
  $region15: #{mae_forward.26} parent=0 // pred_check_branch
    %17 = sbr.rel (0) target = $region17
  $region16: #{mae_forward.26} parent=0 // pred_region
    _
  $region17: #{mae_forward.26} parent=0 // pred_fallthru
    _
  // Predicated region
  $region18: #{mae_forward.26} parent=0 // pred_check
    _
  $region19: #{mae_forward.26} parent=0 // pred_check_branch
    %19 = sbr.rel (0) target = $region21
  $region20: #{mae_forward.26} parent=0 // pred_region
    _
  $region21: #{mae_forward.26} parent=0 // pred_fallthru
    _
  %p21 = scmp.eq.s32.totalorder 0, 0
  // Predicated region
  $region22: #{mae_forward.26} parent=0 // pred_check
    %p22 = pneg %p21
  $region23: #{mae_forward.26} parent=0 // pred_check_branch
    %24 = sbr.rel (%p22) target = $region25
  $region24: #{mae_forward.26} parent=0 // pred_region
    %25 = vst [vmem:[#allocation2] sm:$0xff] 0.0
    %26 = vst [vmem:[#allocation2 + $0x8] sm:$0xff] 0.0
    %27 = vst [vmem:[#allocation2 + $0x10] sm:$0xff] 0.0
    %28 = vst [vmem:[#allocation2 + $0x18] sm:$0xff] 0.0
    %29 = vst [vmem:[#allocation2 + $0x20] sm:$0xff] 0.0
  $region25: #{mae_forward.26} parent=0 // pred_fallthru
    _
  %v30 = vld [vmem:[%s0] sm:$0xf]
  %v31 = vld [vmem:[%s0 + $0x4] sm:$0xf]
  %v32 = vld [vmem:[%s0 + $0x8] sm:$0xf]
  %v33 = vld [vmem:[%s0 + $0xc] sm:$0xf]
  %v34 = vld [vmem:[%s0 + $0x10] sm:$0xf]
  %v35 = vunpack.c.l.bf16 %v30
  %v36 = vunpack.c.l.bf16 %v31
  %v37 = vunpack.c.l.bf16 %v32
  %v38 = vunpack.c.l.bf16 %v33
  %v39 = vunpack.c.l.bf16 %v34
  %40 = vadd.xlane.f32.xlu0 %v35
  %v41 = vpop.xlane.xlu0 %40
  %42 = vadd.xlane.f32.xlu0 %v36
  %v43 = vpop.xlane.xlu0 %42
  %44 = vadd.xlane.f32.xlu0 %v37
  %v45 = vpop.xlane.xlu0 %44
  %46 = vadd.xlane.f32.xlu0 %v38
  %v47 = vpop.xlane.xlu0 %46
  %48 = vadd.xlane.f32.xlu0 %v39
  %v49 = vpop.xlane.xlu0 %48
  %v50 = vmul.f32 %v41, 0.03125
  %v51 = vmul.f32 %v43, 0.03125
  %v52 = vmul.f32 %v45, 0.03125
  %v53 = vmul.f32 %v47, 0.03125
  %v54 = vmul.f32 %v49, 0.03125
  %v55 = vmul.f32 %v35, %v35
  %v56 = vmul.f32 %v36, %v36
  %v57 = vmul.f32 %v37, %v37
  %v58 = vmul.f32 %v38, %v38
  %v59 = vmul.f32 %v39, %v39
  %60 = vadd.xlane.f32.xlu0 %v55
  %v61 = vpop.xlane.xlu0 %60
  %62 = vadd.xlane.f32.xlu0 %v56
  %v63 = vpop.xlane.xlu0 %62
  %64 = vadd.xlane.f32.xlu0 %v57
  %v65 = vpop.xlane.xlu0 %64
  %66 = vadd.xlane.f32.xlu0 %v58
  %v67 = vpop.xlane.xlu0 %66
  %68 = vadd.xlane.f32.xlu0 %v59
  %v69 = vpop.xlane.xlu0 %68
  %v70 = vmul.f32 %v61, 0.03125
  %v71 = vmul.f32 %v63, 0.03125
  %v72 = vmul.f32 %v65, 0.03125
  %v73 = vmul.f32 %v67, 0.03125
  %v74 = vmul.f32 %v69, 0.03125
  %v75 = vmul.f32 %v50, %v50
  %v76 = vmul.f32 %v51, %v51
  %v77 = vmul.f32 %v52, %v52
  %v78 = vmul.f32 %v53, %v53
  %v79 = vmul.f32 %v54, %v54
  %v80 = vsub.f32 %v70, %v75
  %v81 = vsub.f32 %v71, %v76
  %v82 = vsub.f32 %v72, %v77
  %v83 = vsub.f32 %v73, %v78
  %v84 = vsub.f32 %v74, %v79
  %v85 = vsub.f32 %v35, %v50
  %v86 = vsub.f32 %v36, %v51
  %v87 = vsub.f32 %v37, %v52
  %v88 = vsub.f32 %v38, %v53
  %v89 = vsub.f32 %v39, %v54
  %v90 = vadd.f32 %v80, 1e-06
  %v91 = vadd.f32 %v81, 1e-06
  %v92 = vadd.f32 %v82, 1e-06
  %v93 = vadd.f32 %v83, 1e-06
  %v94 = vadd.f32 %v84, 1e-06
  %v95 = vrsqrt.pop %v90
  %v96 = vrsqrt.pop %v91
  %v97 = vrsqrt.pop %v92
  %v98 = vrsqrt.pop %v93
  %v99 = vrsqrt.pop %v94
  %v100 = vmul.f32 %v85, %v95
  %v101 = vmul.f32 %v86, %v96
  %v102 = vmul.f32 %v87, %v97
  %v103 = vmul.f32 %v88, %v98
  %v104 = vmul.f32 %v89, %v99
  %v105 = vld [vmem:[%s3] sm:$0x1]
  %v107 = vlaneseq
  %v108 = vshrl.u32 %v107, 7
  %v109 = vsub.s32 0, %v108
  %v110 = vrot.slane %v105, %v109
  %v112 = vmul.f32 %v100, %v110
  %v113 = vmul.f32 %v101, %v110
  %v114 = vmul.f32 %v102, %v110
  %v115 = vmul.f32 %v103, %v110
  %v116 = vmul.f32 %v104, %v110
  %v117 = vld [vmem:[%s4] sm:$0x1]
  %v119 = vlaneseq
  %v120 = vshrl.u32 %v119, 7
  %v121 = vsub.s32 0, %v120
  %v122 = vrot.slane %v117, %v121
  %v124 = vadd.f32 %v112, %v122
  %v125 = vadd.f32 %v113, %v122
  %v126 = vadd.f32 %v114, %v122
  %v127 = vadd.f32 %v115, %v122
  %v128 = vadd.f32 %v116, %v122
  %v129 = vpack.c.bf16 %v125, %v124
  %v130 = vpack.c.bf16 %v127, %v126
  %v131 = vpack.c.bf16 %v128, %v128
  %v132 = vld [vmem:[#allocation2] sm:$0xff]
  %v133 = vld [vmem:[#allocation2 + $0x8] sm:$0xff]
  %v134 = vld [vmem:[#allocation2 + $0x10] sm:$0xff]
  %v135 = vld [vmem:[#allocation2 + $0x18] sm:$0xff]
  %v136 = vld [vmem:[#allocation2 + $0x20] sm:$0xff]
  %v137 = vld [vmem:[%s1] sm:$0xf]
  %v138 = vld [vmem:[%s1 + $0x4] sm:$0xf]
  %v139 = vld [vmem:[%s1 + $0x8] sm:$0xf]
  %v140 = vld [vmem:[%s1 + $0xc] sm:$0xf]
  %v141 = vld [vmem:[%s1 + $0x10] sm:$0xf]
  %v142 = vld [vmem:[%s1 + $0x14] sm:$0xf]
  %v143 = vld [vmem:[%s1 + $0x18] sm:$0xf]
  %v144 = vld [vmem:[%s1 + $0x1c] sm:$0xf]
  %v145 = vld [vmem:[%s1 + $0x20] sm:$0xf]
  %v146 = vld [vmem:[%s1 + $0x24] sm:$0xf]
  %v147 = vld [vmem:[%s1 + $0x28] sm:$0xf]
  %v148 = vld [vmem:[%s1 + $0x2c] sm:$0xf]
  %v149 = vld [vmem:[%s1 + $0x30] sm:$0xf]
  %v150 = vld [vmem:[%s1 + $0x34] sm:$0xf]
  %v151 = vld [vmem:[%s1 + $0x38] sm:$0xf]
  %v152 = vld [vmem:[%s1 + $0x3c] sm:$0xf]
  %v169 = vunpack.c.l.b16 %v137
  %v170 = vunpack.c.l.b16 %v138
  %v171 = vunpack.c.l.b16 %v139
  %v172 = vunpack.c.l.b16 %v140
  %v173 = vunpack.c.l.b16 %v141
  %v174 = vunpack.c.l.b16 %v142
  %v175 = vunpack.c.l.b16 %v143
  %v176 = vunpack.c.l.b16 %v144
  %v177 = vunpack.c.l.b16 %v145
  %v178 = vunpack.c.l.b16 %v146
  %v179 = vunpack.c.l.b16 %v147
  %v180 = vunpack.c.l.b16 %v148
  %v181 = vunpack.c.l.b16 %v149
  %v182 = vunpack.c.l.b16 %v150
  %v183 = vunpack.c.l.b16 %v151
  %v184 = vunpack.c.l.b16 %v152
  %v185 = vpack.c.b16 %v170, %v169
  %v186 = vpack.c.b16 %v172, %v171
  %v187 = vpack.c.b16 %v174, %v173
  %v188 = vpack.c.b16 %v176, %v175
  %v189 = vpack.c.b16 %v178, %v177
  %v190 = vpack.c.b16 %v180, %v179
  %v191 = vpack.c.b16 %v182, %v181
  %v192 = vpack.c.b16 %v184, %v183
  %201 = vmatprep.subr.bf16.mxu0 0
  %202 = vmatpush1.bf16.msra.mxu0 %v185
  %203 = vmatprep.subr.bf16.mxu0 0
  %204 = vmatpush1.bf16.msra.mxu0 %v186
  %205 = vmatprep.subr.bf16.mxu0 0
  %206 = vmatpush1.bf16.msra.mxu0 %v187
  %207 = vmatprep.subr.bf16.mxu0 0
  %208 = vmatpush1.bf16.msra.mxu0 %v188
  %209 = vmatprep.subr.bf16.mxu0 0
  %210 = vmatpush1.bf16.msra.mxu0 %v189
  %211 = vmatprep.subr.bf16.mxu0 0
  %212 = vmatpush1.bf16.msra.mxu0 %v190
  %213 = vmatprep.subr.bf16.mxu0 0
  %214 = vmatpush1.bf16.msra.mxu0 %v191
  %215 = vmatprep.subr.bf16.mxu0 0
  %216 = vmatpush1.bf16.msra.mxu0 %v192
  %217 = vmatprep.subr.bf16.mxu0 0
  %218 = vmatpush1.bf16.msra.mxu0 0
  %219 = vmatprep.subr.bf16.mxu0 0
  %220 = vmatpush1.bf16.msra.mxu0 0
  %221 = vmatprep.subr.bf16.mxu0 0
  %222 = vmatpush1.bf16.msra.mxu0 0
  %223 = vmatprep.subr.bf16.mxu0 0
  %224 = vmatpush1.bf16.msra.mxu0 0
  %225 = vmatprep.subr.bf16.mxu0 0
  %226 = vmatpush1.bf16.msra.mxu0 0
  %227 = vmatprep.subr.bf16.mxu0 0
  %228 = vmatpush1.bf16.msra.mxu0 0
  %229 = vmatprep.subr.bf16.mxu0 0
  %230 = vmatpush1.bf16.msra.mxu0 0
  %231 = vmatprep.subr.bf16.mxu0 0
  %232 = vmatpush1.bf16.msra.mxu0 0
  %233 = vmatprep.mubr.bf16.mxu0 0
  %234 = vmatmul.mubr.bf16.gmra.mrb[0].mxu0 %v129
  %v235 = vpop.f32.mrb[0].mxu0
  %v236 = vadd.f32 0.0, %v235
  %v237 = vpop.f32.mrb[0].mxu0
  %v238 = vpop.f32.mrb[0].mxu0
  %v239 = vadd.f32 0.0, %v238
  %v240 = vpop.f32.mrb[0].mxu0
  %241 = vmatprep.mubr.bf16.mxu0 0
  %242 = vmatmul.mubr.bf16.gmra.mrb[0].mxu0 %v130
  %v243 = vpop.f32.mrb[0].mxu0
  %v244 = vadd.f32 0.0, %v243
  %v245 = vpop.f32.mrb[0].mxu0
  %v246 = vpop.f32.mrb[0].mxu0
  %v247 = vadd.f32 0.0, %v246
  %v248 = vpop.f32.mrb[0].mxu0
  %249 = vmatprep.mubr.bf16.mxu0 0
  %250 = vmatmul.mubr.bf16.gmra.mrb[0].mxu0 %v131
  %v251 = vpop.f32.mrb[0].mxu0
  %v252 = vadd.f32 0.0, %v251
  %v253 = vpop.f32.mrb[0].mxu0
  %v254 = vpop.f32.mrb[0].mxu0
  %v255 = vpop.f32.mrb[0].mxu0
  %256 = vdwg.mxu0
  %v257 = vadd.f32 %v132, %v236
  %v258 = vadd.f32 %v133, %v239
  %v259 = vadd.f32 %v134, %v244
  %v260 = vadd.f32 %v135, %v247
  %v261 = vadd.f32 %v136, %v252
  %262 = vst [vmem:[#allocation2] sm:$0xff] %v257
  %263 = vst [vmem:[#allocation2 + $0x8] sm:$0xff] %v258
  %264 = vst [vmem:[#allocation2 + $0x10] sm:$0xff] %v259
  %265 = vst [vmem:[#allocation2 + $0x18] sm:$0xff] %v260
  %266 = vst [vmem:[#allocation2 + $0x20] sm:$0xff] %v261
  // Predicated region
  $region26: #{mae_forward.26} parent=0 // pred_check
    %p267 = pneg %p21
  $region27: #{mae_forward.26} parent=0 // pred_check_branch
    %269 = sbr.rel (%p267) target = $region29
  $region28: #{mae_forward.26} parent=0 // pred_region
    %v270 = vld [vmem:[#allocation2] sm:$0xff]
    %v271 = vld [vmem:[#allocation2 + $0x8] sm:$0xff]
    %v272 = vld [vmem:[#allocation2 + $0x10] sm:$0xff]
    %v273 = vld [vmem:[#allocation2 + $0x18] sm:$0xff]
    %v274 = vld [vmem:[#allocation2 + $0x20] sm:$0xff]
    %v275 = vld [vmem:[%s2] sm:$0x1]
    %v277 = vlaneseq
    %v278 = vshrl.u32 %v277, 7
    %v279 = vsub.s32 0, %v278
    %v280 = vrot.slane %v275, %v279
    %v282 = vadd.f32 %v270, %v280
    %v283 = vadd.f32 %v271, %v280
    %v284 = vadd.f32 %v272, %v280
    %v285 = vadd.f32 %v273, %v280
    %v286 = vadd.f32 %v274, %v280
    %287 = vst [vmem:[%s5] sm:$0xff] %v282
    %288 = vst [vmem:[%s5 + $0x8] sm:$0xff] %v283
    %289 = vst [vmem:[%s5 + $0x10] sm:$0xff] %v284
    %290 = vst [vmem:[%s5 + $0x18] sm:$0xff] %v285
    %291 = vst [vmem:[%s5 + $0x20] sm:$0xff] %v286
  $region29: #{mae_forward.26} parent=0 // pred_fallthru
    _
  // Predicated region
  $region30: #{mae_forward.26} parent=0 // pred_check
    _
  $region31: #{mae_forward.26} parent=0 // pred_check_branch
    %293 = sbr.rel (0) target = $region33
  $region32: #{mae_forward.26} parent=0 // pred_region
    _
  $region33: #{mae_forward.26} parent=0 // pred_fallthru
    _
  // Predicated region
  $region34: #{mae_forward.26} parent=0 // pred_check
    _
  $region35: #{mae_forward.26} parent=0 // pred_check_branch
    %295 = sbr.rel (0) target = $region37
  $region36: #{mae_forward.26} parent=0 // pred_region
    _
  $region37: #{mae_forward.26} parent=0 // pred_fallthru
    _

// kernel: mae_forward.27
$region0: #{mae_forward.27}
  #allocation0 [shape = 'u32[]', space=smem, size = 0x4, offset = 0x4, fixed_abs, tag = 'smem constant byte address 0x4 - core index']
  #allocation1 [shape = 'u32[144,128]{1,0:T(1,128)}', space=vmem, size = 0x12000, scoped, tag = 'internal scratch']
  %s0 = inlined_call_operand.vmem [shape: f32[32,32], index: 0, kind: input, shape index: {}]
  %s1 = inlined_call_operand.vmem [shape: f32[32,32], index: 1, kind: input, shape index: {}]
  %s2 = inlined_call_operand.vmem [shape: f32[32,1], index: 2, kind: input, shape index: {}]
  %s3 = inlined_call_operand.hbm [shape: f32[1,1], index: 3, kind: output, shape index: {0}]
  %s4 = inlined_call_operand.hbm [shape: f32[1,1], index: 4, kind: output, shape index: {1}]
  %5 = xla_tuple %s3, %s4
  %s6 = sld [smem:[#allocation0]]
  $region34: #{mae_forward.27} parent=0
    _
  %s8 = ssub.s32 1, %s6
  %s9 = scalar_select 0, %s8, %s6
  $region1: #{mae_forward.27} parent=0
    #allocation2 [shape = 'u8[512]{0}', space=vmem, size = 0x400, scoped, tag = 'output window, operand 0, single buffered']
    #allocation3 [shape = 's32[1]{0}', space=sflag, size = 0x4, scoped, tag = 'scoped memory for mae_forward.27']
    #allocation4 [shape = 'u8[512]{0}', space=vmem, size = 0x400, scoped, tag = 'output window, operand 1, single buffered']
    #allocation5 [shape = 's32[1]{0}', space=sflag, size = 0x4, scoped, tag = 'scoped memory for mae_forward.27']
    %10 = vsyncpa [#allocation3], 0
    %11 = vsyncpa [#allocation5], 0
    // Predicated region
    $region2: #{mae_forward.27} parent=1 // pred_check
      _
    $region3: #{mae_forward.27} parent=1 // pred_check_branch
      %13 = sbr.rel (0) target = $region5
    $region4: #{mae_forward.27} parent=1 // pred_region
      _
    $region5: #{mae_forward.27} parent=1 // pred_fallthru
      _
    // Predicated region
    $region6: #{mae_forward.27} parent=1 // pred_check
      _
    $region7: #{mae_forward.27} parent=1 // pred_check_branch
      %15 = sbr.rel (0) target = $region9
    $region8: #{mae_forward.27} parent=1 // pred_region
      _
    $region9: #{mae_forward.27} parent=1 // pred_fallthru
      _
    // Predicated region
    $region10: #{mae_forward.27} parent=1 // pred_check
      _
    $region11: #{mae_forward.27} parent=1 // pred_check_branch
      %17 = sbr.rel (0) target = $region13
    $region12: #{mae_forward.27} parent=1 // pred_region
      _
    $region13: #{mae_forward.27} parent=1 // pred_fallthru
      _
    %p18 = scmp.eq.s32.totalorder 0, 0
    // Predicated region
    $region14: #{mae_forward.27} parent=1 // pred_check
      %p19 = pneg %p18
    $region15: #{mae_forward.27} parent=1 // pred_check_branch
      %21 = sbr.rel (%p19) target = $region17
    $region16: #{mae_forward.27} parent=1 // pred_region
      %vm22 = vcmask 0
      %23 = vst.msk [vmem:[#allocation2] sm:$0x1] %vm22, 0.0
      %24 = vst.msk [vmem:[#allocation4] sm:$0x1] %vm22, 0.0
    $region17: #{mae_forward.27} parent=1 // pred_fallthru
      _
    %v25 = vld [vmem:[%s0] sm:$0xff]
    %v26 = vld [vmem:[%s0 + $0x8] sm:$0xff]
    %v27 = vld [vmem:[%s0 + $0x10] sm:$0xff]
    %v28 = vld [vmem:[%s0 + $0x18] sm:$0xff]
    %v29 = vld [vmem:[%s1] sm:$0xff]
    %v30 = vld [vmem:[%s1 + $0x8] sm:$0xff]
    %v31 = vld [vmem:[%s1 + $0x10] sm:$0xff]
    %v32 = vld [vmem:[%s1 + $0x18] sm:$0xff]
    %v33 = vsub.f32 %v25, %v29
    %v34 = vsub.f32 %v26, %v30
    %v35 = vsub.f32 %v27, %v31
    %v36 = vsub.f32 %v28, %v32
    %v37 = vmul.f32 %v33, %v33
    %v38 = vmul.f32 %v34, %v34
    %v39 = vmul.f32 %v35, %v35
    %v40 = vmul.f32 %v36, %v36
    %vm41 = vcmask 261120
    %v42 = vsel %vm41, %v37, 0.0
    %43 = vadd.xlane.f32.xlu0 %v42
    %v44 = vpop.xlane.xlu0 %43
    %v45 = vsel %vm41, %v38, 0.0
    %46 = vadd.xlane.f32.xlu0 %v45
    %v47 = vpop.xlane.xlu0 %46
    %v48 = vsel %vm41, %v39, 0.0
    %49 = vadd.xlane.f32.xlu0 %v48
    %v50 = vpop.xlane.xlu0 %49
    %v51 = vsel %vm41, %v40, 0.0
    %52 = vadd.xlane.f32.xlu0 %v51
    %v53 = vpop.xlane.xlu0 %52
    %v54 = vmul.f32 %v44, 0.03125
    %v55 = vmul.f32 %v47, 0.03125
    %v56 = vmul.f32 %v50, 0.03125
    %v57 = vmul.f32 %v53, 0.03125
    %v58 = vld [vmem:[%s2] sm:$0xff]
    %v59 = vld [vmem:[%s2 + $0x8] sm:$0xff]
    %v60 = vld [vmem:[%s2 + $0x10] sm:$0xff]
    %v61 = vld [vmem:[%s2 + $0x18] sm:$0xff]
    %v62 = vld [vmem:[#allocation2] sm:$0x1]
    %v63 = vmul.f32 %v54, %v58
    %v64 = vmul.f32 %v55, %v59
    %v65 = vmul.f32 %v56, %v60
    %v66 = vmul.f32 %v57, %v61
    %vm67 = vcmask 7168
    %v68 = vsel %vm67, %v63, 0.0
    %v69 = vsel %vm67, %v64, 0.0
    %v70 = vadd.f32 %v68, %v69
    %v71 = vsel %vm67, %v65, 0.0
    %v72 = vadd.f32 %v70, %v71
    %v73 = vsel %vm67, %v66, 0.0
    %v74 = vadd.f32 %v72, %v73
    %v75 = vrot.slane %v74, 4
    %v76 = vadd.f32 %v74, %v75
    %v77 = vrot.slane %v76, 2
    %v78 = vadd.f32 %v76, %v77
    %v79 = vrot.slane %v78, 1
    %v80 = vadd.f32 %v78, %v79
    %v81 = vadd.f32 %v62, %v80
    %vm82 = vcmask 0
    %83 = vst.msk [vmem:[#allocation2] sm:$0x1] %vm82, %v81
    %v84 = vld [vmem:[#allocation4] sm:$0x1]
    %v85 = vsel %vm67, %v58, 0.0
    %v86 = vsel %vm67, %v59, 0.0
    %v87 = vadd.f32 %v85, %v86
    %v88 = vsel %vm67, %v60, 0.0
    %v89 = vadd.f32 %v87, %v88
    %v90 = vsel %vm67, %v61, 0.0
    %v91 = vadd.f32 %v89, %v90
    %v92 = vrot.slane %v91, 4
    %v93 = vadd.f32 %v91, %v92
    %v94 = vrot.slane %v93, 2
    %v95 = vadd.f32 %v93, %v94
    %v96 = vrot.slane %v95, 1
    %v97 = vadd.f32 %v95, %v96
    %v98 = vadd.f32 %v84, %v97
    %99 = vst.msk [vmem:[#allocation4] sm:$0x1] %vm82, %v98
    // Predicated region
    $region18: #{mae_forward.27} parent=1 // pred_check
      _
    $region19: #{mae_forward.27} parent=1 // pred_check_branch
      %101 = sbr.rel (0) target = $region21
    $region20: #{mae_forward.27} parent=1 // pred_region
      %s103 = ssub.s32 16, 16
      %104 = vsyncadd [#allocation3], %s103
      %s106 = sshll.u32 [#allocation2], 4
      %s107 = int_to_ptr.vmem [resolvable:$true] %s106
      %109 = dma.vmem_to_hbm [thread:$0]  %s107, 16, %s3, [#allocation3]
    $region21: #{mae_forward.27} parent=1 // pred_fallthru
      _
    // Predicated region
    $region22: #{mae_forward.27} parent=1 // pred_check
      _
    $region23: #{mae_forward.27} parent=1 // pred_check_branch
      %111 = sbr.rel (0) target = $region25
    $region24: #{mae_forward.27} parent=1 // pred_region
      %s113 = ssub.s32 16, 16
      %114 = vsyncadd [#allocation5], %s113
      %s116 = sshll.u32 [#allocation4], 4
      %s117 = int_to_ptr.vmem [resolvable:$true] %s116
      %119 = dma.vmem_to_hbm [thread:$0]  %s117, 16, %s4, [#allocation5]
    $region25: #{mae_forward.27} parent=1 // pred_fallthru
      _
    // Predicated region
    $region26: #{mae_forward.27} parent=1 // pred_check
      _
    $region27: #{mae_forward.27} parent=1 // pred_check_branch
      %121 = sbr.rel (0) target = $region29
    $region28: #{mae_forward.27} parent=1 // pred_region
      %122 = dma.done [#allocation3], 16
    $region29: #{mae_forward.27} parent=1 // pred_fallthru
      _
    // Predicated region
    $region30: #{mae_forward.27} parent=1 // pred_check
      _
    $region31: #{mae_forward.27} parent=1 // pred_check_branch
      %124 = sbr.rel (0) target = $region33
    $region32: #{mae_forward.27} parent=1 // pred_region
      %125 = dma.done [#allocation5], 16
    $region33: #{mae_forward.27} parent=1 // pred_fallthru
      _
    %126 = vsyncpa [#allocation3], 1
    %127 = vsyncpa [#allocation5], 1

</llo_original>
